<compile_context>
chip_gen: v7x
topology: tpu7x:2x2x1
jax: 0.10.0
libtpu: 0.0.40
codegen_flags: <defaults>
</compile_context>

<pallas_src>
import jax
import jax.numpy as jnp
from jax import lax
from jax.experimental import pallas as pl
from jax.experimental.pallas import tpu as pltpu

# ---- model dimensions (small, consistent with the module's __init__) -------
B = 2        # lines per batch
T = 8        # tokens per line (max_len)
C = 6        # chars per token
V = 20       # char vocab size
E = 50       # char embedding dim (char_encoder input_size=50)
E_PAD = 64   # lane-friendly padded embedding dim (zero padded, exact)
H = 256      # LSTM hidden size (texar UnidirectionalRNNEncoder default 256)
N = 5        # num_tags
BT = B * T   # tokens per kernel call


# ---------------------------------------------------------------------------
# Fused kernel: char-LSTM -> token-LSTM -> classifier -> CRF Viterbi decode.
# Token rows are ordered r = t*B + b (time-major tokens) so emissions at time
# t are the contiguous rows [t*B, t*B+B) of the logits tile.
# ---------------------------------------------------------------------------
def ner_kernel(x_ref, wih1_ref, whh1_ref, b1_ref,
               wih2_ref, b2_ref, wcls_ref, bcls_ref,
               trans_ref, start_ref, end_ref,
               tags_ref, g_sc):
    # ---- char LSTM: hoisted input projection (one big matmul) --------------
    g_sc[...] = (jnp.dot(x_ref[...], wih1_ref[...],
                         preferred_element_type=jnp.float32)
                 + b1_ref[...])                                  # (C*BT, 4H)

    h = jnp.zeros((BT, H), jnp.float32)
    c = jnp.zeros((BT, H), jnp.float32)
    for step in range(C):                         # static unroll, C small
        g = (g_sc[pl.ds(step * BT, BT), :]
             + jnp.dot(h, whh1_ref[...],
                       preferred_element_type=jnp.float32))      # (BT, 4H)
        i = jax.nn.sigmoid(g[:, 0:H])
        f = jax.nn.sigmoid(g[:, H:2 * H])
        gg = jnp.tanh(g[:, 2 * H:3 * H])
        o = jax.nn.sigmoid(g[:, 3 * H:4 * H])
        c = f * c + i * gg
        h = o * jnp.tanh(c)

    # ---- token LSTM: single step from zero state ---------------------------
    # forget-gate block dropped (f * c0 == 0); wih2/b2 pre-sliced to [i|g|o].
    g2 = (jnp.dot(h, wih2_ref[...], preferred_element_type=jnp.float32)
          + b2_ref[...])                                         # (BT, 3H)
    i2 = jax.nn.sigmoid(g2[:, 0:H])
    gg2 = jnp.tanh(g2[:, H:2 * H])
    o2 = jax.nn.sigmoid(g2[:, 2 * H:3 * H])
    h2 = o2 * jnp.tanh(i2 * gg2)                                 # (BT, H)

    # ---- classifier -> emissions (kept on-chip, never written to HBM) ------
    logits = (jnp.dot(h2, wcls_ref[...], preferred_element_type=jnp.float32)
              + bcls_ref[...])                                   # (BT, N)
    em = [logits[t * B:(t + 1) * B, :] for t in range(T)]        # T x (B, N)

    # ---- CRF Viterbi forward (max-plus), statically unrolled ----------------
    # Score path kept in f32; first-max tie-break matches torchcrf.
    trans = trans_ref[...]                                       # (N, N)
    iota_mid = lax.broadcasted_iota(jnp.int32, (B, N, N), 1)
    iota_n = lax.broadcasted_iota(jnp.int32, (B, N), 1)

    score = start_ref[...] + em[0]                               # (B, N)
    hist = [None] * T                                            # hist[0] unused
    for t in range(1, T):
        bscore = score[:, :, None] + trans[None, :, :]           # (B, N, N)
        best = jnp.max(bscore, axis=1)                           # (B, N)
        hist[t] = jnp.min(
            jnp.where(bscore == best[:, None, :], iota_mid, N),
            axis=1).astype(jnp.int32)                            # (B, N)
        score = best + em[t]

    final = score + end_ref[...]                                 # (B, N)
    best_f = jnp.max(final, axis=-1, keepdims=True)
    cur = jnp.min(jnp.where(final == best_f, iota_n, N),
                  axis=-1, keepdims=True).astype(jnp.int32)      # (B, 1)

    # ---- backtrace: integer select-gather, tags built in registers ----------
    time_iota = lax.broadcasted_iota(jnp.int32, (B, T), 1)
    tags = jnp.where(time_iota == T - 1, jnp.broadcast_to(cur, (B, T)), 0)
    for t in range(T - 2, -1, -1):
        prev = jnp.sum(jnp.where(iota_n == cur, hist[t + 1], 0),
                       axis=-1, keepdims=True)                   # (B, 1) int32
        tags = jnp.where(time_iota == t, jnp.broadcast_to(prev, (B, T)), tags)
        cur = prev
    tags_ref[...] = tags                                         # single store


# ---------------------------------------------------------------------------
# Host-side param prep (done ONCE, outside the hot path):
#   * zero-pad embedding feature dim and w_ih1 rows 50 -> 64 (exact)
#   * slice token-LSTM weights to the 3 used gate blocks [i | g | o]
# ---------------------------------------------------------------------------
def prepare_params(p):
    emb_p = jnp.pad(p["embedding"], ((0, 0), (0, E_PAD - E)))
    w_ih1_p = jnp.pad(p["w_ih1"], ((0, E_PAD - E), (0, 0)))
    w_ih2_3 = jnp.concatenate([p["w_ih2"][:, 0:H], p["w_ih2"][:, 2 * H:4 * H]],
                              axis=1)                            # (H, 3H)
    b2_3 = jnp.concatenate([p["b2"][:, 0:H], p["b2"][:, 2 * H:4 * H]], axis=1)
    out = dict(p)
    out.update(embedding=emb_p, w_ih1=w_ih1_p, w_ih2=w_ih2_3, b2=b2_3)
    return out


# ---------------------------------------------------------------------------
# Full forward pass (NERModel.forward): one fused pallas_call -> tags (B, T)
# ---------------------------------------------------------------------------
def ner_forward(char_ids, p):
    # Gather char embeddings directly in kernel order (C, T, B): only the tiny
    # int id tensor is transposed, never the activations.
    ids_ctb = jnp.transpose(char_ids, (2, 1, 0)).reshape(C * T * B)
    xflat = p["embedding"][ids_ctb]                              # (C*BT, E_PAD)

    return pl.pallas_call(
        ner_kernel,
        out_shape=jax.ShapeDtypeStruct((B, T), jnp.int32),
        in_specs=[pl.BlockSpec(memory_space=pltpu.MemorySpace.VMEM)] * 11,
        out_specs=pl.BlockSpec(memory_space=pltpu.MemorySpace.VMEM),
        scratch_shapes=[pltpu.VMEM((C * BT, 4 * H), jnp.float32)],
    )(xflat, p["w_ih1"], p["w_hh1"], p["b1"],
      p["w_ih2"], p["b2"], p["w_cls"], p["b_cls"],
      p["trans"], p["start"], p["end"])


# ---------------------------------------------------------------------------
# Pure-JAX reference (unpadded, unsliced params) used only for validation.
# ---------------------------------------------------------------------------
def ref_emissions_and_best_score(char_ids, p):
    emb = p["embedding"][char_ids]                               # (B, T, C, E)
    x = emb.reshape(B * T, C, E)
    h = jnp.zeros((B * T, H), jnp.float32)
    c = jnp.zeros((B * T, H), jnp.float32)
    for t in range(C):
        g = x[:, t, :] @ p["w_ih1"] + h @ p["w_hh1"] + p["b1"]
        i = jax.nn.sigmoid(g[:, 0:H])
        f = jax.nn.sigmoid(g[:, H:2 * H])
        gg = jnp.tanh(g[:, 2 * H:3 * H])
        o = jax.nn.sigmoid(g[:, 3 * H:4 * H])
        c = f * c + i * gg
        h = o * jnp.tanh(c)
    g2 = h @ p["w_ih2"] + p["b2"]
    i2 = jax.nn.sigmoid(g2[:, 0:H])
    gg2 = jnp.tanh(g2[:, 2 * H:3 * H])
    o2 = jax.nn.sigmoid(g2[:, 3 * H:4 * H])
    h2 = o2 * jnp.tanh(i2 * gg2)
    logits = h2 @ p["w_cls"] + p["b_cls"]                        # (BT, N)
    em = logits.reshape(B, T, N).transpose(1, 0, 2)              # (T, B, N)
    score = p["start"] + em[0]
    for t in range(1, T):
        score = jnp.max(score[:, :, None] + p["trans"][None], axis=1) + em[t]
    best = jnp.max(score + p["end"], axis=-1)                    # (B,)
    return em, best


def crf_path_score(em, tags, p):
    b_idx = jnp.arange(B)
    s = p["start"][0, tags[:, 0]] + em[0, b_idx, tags[:, 0]]
    for t in range(1, T):
        s = s + p["trans"][tags[:, t - 1], tags[:, t]] + em[t, b_idx, tags[:, t]]
    return s + p["end"][0, tags[:, T - 1]]


if __name__ == "__main__":
    key = jax.random.PRNGKey(0)
    ks = jax.random.split(key, 12)
    params = {
        "embedding": 0.5 * jax.random.normal(ks[0], (V, E), jnp.float32),
        "w_ih1": 0.1 * jax.random.normal(ks[1], (E, 4 * H), jnp.float32),
        "w_hh1": 0.1 * jax.random.normal(ks[2], (H, 4 * H), jnp.float32),
        "b1":    0.1 * jax.random.normal(ks[3], (1, 4 * H), jnp.float32),
        "w_ih2": 0.1 * jax.random.normal(ks[4], (H, 4 * H), jnp.float32),
        "b2":    0.1 * jax.random.normal(ks[5], (1, 4 * H), jnp.float32),
        "w_cls": 0.1 * jax.random.normal(ks[6], (H, N), jnp.float32),
        "b_cls": 0.1 * jax.random.normal(ks[7], (1, N), jnp.float32),
        "trans": 0.1 * jax.random.normal(ks[8], (N, N), jnp.float32),
        "start": 0.1 * jax.random.normal(ks[9], (1, N), jnp.float32),
        "end":   0.1 * jax.random.normal(ks[10], (1, N), jnp.float32),
    }
    char_ids = jax.random.randint(ks[11], (B, T, C), 0, V)

    prepped = prepare_params(params)
    tags = jax.jit(ner_forward)(char_ids, prepped)
    tags = jax.block_until_ready(tags)

    # sanity + correctness: decoded path must be an optimal Viterbi path
    assert tags.shape == (B, T) and tags.dtype == jnp.int32
    assert bool(jnp.all((tags >= 0) & (tags < N)))
    em_ref, best_ref = ref_emissions_and_best_score(char_ids, params)
    path_score = crf_path_score(em_ref, tags, params)
    assert bool(jnp.allclose(path_score, best_ref, atol=1e-3))
    print("KERNEL_OK")
</pallas_src>

<mosaic_0001>
module attributes {stable_mosaic.version = 11 : i64} {
  func.func @ner_kernel(%arg0: memref<96x64xf32, #tpu.memory_space<vmem>>, %arg1: memref<64x1024xf32, #tpu.memory_space<vmem>>, %arg2: memref<256x1024xf32, #tpu.memory_space<vmem>>, %arg3: memref<1x1024xf32, #tpu.memory_space<vmem>>, %arg4: memref<256x768xf32, #tpu.memory_space<vmem>>, %arg5: memref<1x768xf32, #tpu.memory_space<vmem>>, %arg6: memref<256x5xf32, #tpu.memory_space<vmem>>, %arg7: memref<1x5xf32, #tpu.memory_space<vmem>>, %arg8: memref<5x5xf32, #tpu.memory_space<vmem>>, %arg9: memref<1x5xf32, #tpu.memory_space<vmem>>, %arg10: memref<1x5xf32, #tpu.memory_space<vmem>>, %arg11: memref<2x8xi32, #tpu.memory_space<vmem>>, %arg12: memref<96x1024xf32, #tpu.memory_space<vmem>>) attributes {dimension_semantics = [], scalar_prefetch = 0 : i64, scratch_operands = 1 : i64, tpu.core_type = #tpu.core_type<tc>} {
    %c0 = arith.constant 0 : index
    %c0_0 = arith.constant 0 : index
    %0 = vector.load %arg0[%c0, %c0_0] : memref<96x64xf32, #tpu.memory_space<vmem>>, vector<96x64xf32>
    %c0_1 = arith.constant 0 : index
    %c0_2 = arith.constant 0 : index
    %1 = vector.load %arg1[%c0_1, %c0_2] : memref<64x1024xf32, #tpu.memory_space<vmem>>, vector<64x1024xf32>
    %cst = arith.constant dense<0.000000e+00> : vector<96x1024xf32>
    %2 = tpu.matmul %0, %1, %cst {dimension_numbers = #tpu.dot_dimension_numbers<[1], [0], [0], [1], [0, 0, 1, 1], [], []>} : vector<96x64xf32>, vector<64x1024xf32>, vector<96x1024xf32> -> vector<96x1024xf32>
    %c0_3 = arith.constant 0 : index
    %c0_4 = arith.constant 0 : index
    %3 = vector.load %arg3[%c0_3, %c0_4] : memref<1x1024xf32, #tpu.memory_space<vmem>>, vector<1x1024xf32>
    %4 = vector.broadcast %3 : vector<1x1024xf32> to vector<96x1024xf32>
    %5 = arith.addf %2, %4 : vector<96x1024xf32>
    %c0_5 = arith.constant 0 : index
    %c0_6 = arith.constant 0 : index
    %6 = vector.load %arg12[%c0_5, %c0_6] : memref<96x1024xf32, #tpu.memory_space<vmem>>, vector<96x1024xf32>
    tpu.vector_store %arg12[%c0_5, %c0_6], %5 {strides = array<i32>} : memref<96x1024xf32, #tpu.memory_space<vmem>>, vector<96x1024xf32>,
    %cst_7 = arith.constant 0.000000e+00 : f32
    %7 = vector.broadcast %cst_7 : f32 to vector<16x256xf32>
    %cst_8 = arith.constant 0.000000e+00 : f32
    %8 = vector.broadcast %cst_8 : f32 to vector<16x256xf32>
    %c0_9 = arith.constant 0 : index
    %c0_10 = arith.constant 0 : index
    %9 = vector.load %arg12[%c0_9, %c0_10] : memref<96x1024xf32, #tpu.memory_space<vmem>>, vector<16x1024xf32>
    %c0_11 = arith.constant 0 : index
    %c0_12 = arith.constant 0 : index
    %10 = vector.load %arg2[%c0_11, %c0_12] : memref<256x1024xf32, #tpu.memory_space<vmem>>, vector<256x1024xf32>
    %cst_13 = arith.constant dense<0.000000e+00> : vector<16x1024xf32>
    %11 = tpu.matmul %7, %10, %cst_13 {dimension_numbers = #tpu.dot_dimension_numbers<[1], [0], [0], [1], [0, 0, 1, 1], [], []>} : vector<16x256xf32>, vector<256x1024xf32>, vector<16x1024xf32> -> vector<16x1024xf32>
    %12 = arith.addf %9, %11 : vector<16x1024xf32>
    %13 = vector.extract_strided_slice %12 {offsets = [0, 0], sizes = [16, 256], strides = [1, 1]} : vector<16x1024xf32> to vector<16x256xf32>
    %14 = arith.negf %13 : vector<16x256xf32>
    %15 = math.exp %14 : vector<16x256xf32>
    %cst_14 = arith.constant 1.000000e+00 : f32
    %16 = vector.broadcast %cst_14 : f32 to vector<16x256xf32>
    %17 = arith.addf %16, %15 : vector<16x256xf32>
    %18 = arith.divf %16, %17 : vector<16x256xf32>
    %19 = vector.extract_strided_slice %12 {offsets = [0, 256], sizes = [16, 256], strides = [1, 1]} : vector<16x1024xf32> to vector<16x256xf32>
    %20 = arith.negf %19 : vector<16x256xf32>
    %21 = math.exp %20 : vector<16x256xf32>
    %cst_15 = arith.constant 1.000000e+00 : f32
    %22 = vector.broadcast %cst_15 : f32 to vector<16x256xf32>
    %23 = arith.addf %22, %21 : vector<16x256xf32>
    %24 = arith.divf %22, %23 : vector<16x256xf32>
    %25 = vector.extract_strided_slice %12 {offsets = [0, 512], sizes = [16, 256], strides = [1, 1]} : vector<16x1024xf32> to vector<16x256xf32>
    %26 = math.tanh %25 : vector<16x256xf32>
    %27 = vector.extract_strided_slice %12 {offsets = [0, 768], sizes = [16, 256], strides = [1, 1]} : vector<16x1024xf32> to vector<16x256xf32>
    %28 = arith.negf %27 : vector<16x256xf32>
    %29 = math.exp %28 : vector<16x256xf32>
    %cst_16 = arith.constant 1.000000e+00 : f32
    %30 = vector.broadcast %cst_16 : f32 to vector<16x256xf32>
    %31 = arith.addf %30, %29 : vector<16x256xf32>
    %32 = arith.divf %30, %31 : vector<16x256xf32>
    %33 = arith.mulf %24, %8 : vector<16x256xf32>
    %34 = arith.mulf %18, %26 : vector<16x256xf32>
    %35 = arith.addf %33, %34 : vector<16x256xf32>
    %36 = math.tanh %35 : vector<16x256xf32>
    %37 = arith.mulf %32, %36 : vector<16x256xf32>
    %c16 = arith.constant 16 : index
    %c0_17 = arith.constant 0 : index
    %38 = vector.load %arg12[%c16, %c0_17] : memref<96x1024xf32, #tpu.memory_space<vmem>>, vector<16x1024xf32>
    %c0_18 = arith.constant 0 : index
    %c0_19 = arith.constant 0 : index
    %39 = vector.load %arg2[%c0_18, %c0_19] : memref<256x1024xf32, #tpu.memory_space<vmem>>, vector<256x1024xf32>
    %cst_20 = arith.constant dense<0.000000e+00> : vector<16x1024xf32>
    %40 = tpu.matmul %37, %39, %cst_20 {dimension_numbers = #tpu.dot_dimension_numbers<[1], [0], [0], [1], [0, 0, 1, 1], [], []>} : vector<16x256xf32>, vector<256x1024xf32>, vector<16x1024xf32> -> vector<16x1024xf32>
    %41 = arith.addf %38, %40 : vector<16x1024xf32>
    %42 = vector.extract_strided_slice %41 {offsets = [0, 0], sizes = [16, 256], strides = [1, 1]} : vector<16x1024xf32> to vector<16x256xf32>
    %43 = arith.negf %42 : vector<16x256xf32>
    %44 = math.exp %43 : vector<16x256xf32>
    %cst_21 = arith.constant 1.000000e+00 : f32
    %45 = vector.broadcast %cst_21 : f32 to vector<16x256xf32>
    %46 = arith.addf %45, %44 : vector<16x256xf32>
    %47 = arith.divf %45, %46 : vector<16x256xf32>
    %48 = vector.extract_strided_slice %41 {offsets = [0, 256], sizes = [16, 256], strides = [1, 1]} : vector<16x1024xf32> to vector<16x256xf32>
    %49 = arith.negf %48 : vector<16x256xf32>
    %50 = math.exp %49 : vector<16x256xf32>
    %cst_22 = arith.constant 1.000000e+00 : f32
    %51 = vector.broadcast %cst_22 : f32 to vector<16x256xf32>
    %52 = arith.addf %51, %50 : vector<16x256xf32>
    %53 = arith.divf %51, %52 : vector<16x256xf32>
    %54 = vector.extract_strided_slice %41 {offsets = [0, 512], sizes = [16, 256], strides = [1, 1]} : vector<16x1024xf32> to vector<16x256xf32>
    %55 = math.tanh %54 : vector<16x256xf32>
    %56 = vector.extract_strided_slice %41 {offsets = [0, 768], sizes = [16, 256], strides = [1, 1]} : vector<16x1024xf32> to vector<16x256xf32>
    %57 = arith.negf %56 : vector<16x256xf32>
    %58 = math.exp %57 : vector<16x256xf32>
    %cst_23 = arith.constant 1.000000e+00 : f32
    %59 = vector.broadcast %cst_23 : f32 to vector<16x256xf32>
    %60 = arith.addf %59, %58 : vector<16x256xf32>
    %61 = arith.divf %59, %60 : vector<16x256xf32>
    %62 = arith.mulf %53, %35 : vector<16x256xf32>
    %63 = arith.mulf %47, %55 : vector<16x256xf32>
    %64 = arith.addf %62, %63 : vector<16x256xf32>
    %65 = math.tanh %64 : vector<16x256xf32>
    %66 = arith.mulf %61, %65 : vector<16x256xf32>
    %c32 = arith.constant 32 : index
    %c0_24 = arith.constant 0 : index
    %67 = vector.load %arg12[%c32, %c0_24] : memref<96x1024xf32, #tpu.memory_space<vmem>>, vector<16x1024xf32>
    %c0_25 = arith.constant 0 : index
    %c0_26 = arith.constant 0 : index
    %68 = vector.load %arg2[%c0_25, %c0_26] : memref<256x1024xf32, #tpu.memory_space<vmem>>, vector<256x1024xf32>
    %cst_27 = arith.constant dense<0.000000e+00> : vector<16x1024xf32>
    %69 = tpu.matmul %66, %68, %cst_27 {dimension_numbers = #tpu.dot_dimension_numbers<[1], [0], [0], [1], [0, 0, 1, 1], [], []>} : vector<16x256xf32>, vector<256x1024xf32>, vector<16x1024xf32> -> vector<16x1024xf32>
    %70 = arith.addf %67, %69 : vector<16x1024xf32>
    %71 = vector.extract_strided_slice %70 {offsets = [0, 0], sizes = [16, 256], strides = [1, 1]} : vector<16x1024xf32> to vector<16x256xf32>
    %72 = arith.negf %71 : vector<16x256xf32>
    %73 = math.exp %72 : vector<16x256xf32>
    %cst_28 = arith.constant 1.000000e+00 : f32
    %74 = vector.broadcast %cst_28 : f32 to vector<16x256xf32>
    %75 = arith.addf %74, %73 : vector<16x256xf32>
    %76 = arith.divf %74, %75 : vector<16x256xf32>
    %77 = vector.extract_strided_slice %70 {offsets = [0, 256], sizes = [16, 256], strides = [1, 1]} : vector<16x1024xf32> to vector<16x256xf32>
    %78 = arith.negf %77 : vector<16x256xf32>
    %79 = math.exp %78 : vector<16x256xf32>
    %cst_29 = arith.constant 1.000000e+00 : f32
    %80 = vector.broadcast %cst_29 : f32 to vector<16x256xf32>
    %81 = arith.addf %80, %79 : vector<16x256xf32>
    %82 = arith.divf %80, %81 : vector<16x256xf32>
    %83 = vector.extract_strided_slice %70 {offsets = [0, 512], sizes = [16, 256], strides = [1, 1]} : vector<16x1024xf32> to vector<16x256xf32>
    %84 = math.tanh %83 : vector<16x256xf32>
    %85 = vector.extract_strided_slice %70 {offsets = [0, 768], sizes = [16, 256], strides = [1, 1]} : vector<16x1024xf32> to vector<16x256xf32>
    %86 = arith.negf %85 : vector<16x256xf32>
    %87 = math.exp %86 : vector<16x256xf32>
    %cst_30 = arith.constant 1.000000e+00 : f32
    %88 = vector.broadcast %cst_30 : f32 to vector<16x256xf32>
    %89 = arith.addf %88, %87 : vector<16x256xf32>
    %90 = arith.divf %88, %89 : vector<16x256xf32>
    %91 = arith.mulf %82, %64 : vector<16x256xf32>
    %92 = arith.mulf %76, %84 : vector<16x256xf32>
    %93 = arith.addf %91, %92 : vector<16x256xf32>
    %94 = math.tanh %93 : vector<16x256xf32>
    %95 = arith.mulf %90, %94 : vector<16x256xf32>
    %c48 = arith.constant 48 : index
    %c0_31 = arith.constant 0 : index
    %96 = vector.load %arg12[%c48, %c0_31] : memref<96x1024xf32, #tpu.memory_space<vmem>>, vector<16x1024xf32>
    %c0_32 = arith.constant 0 : index
    %c0_33 = arith.constant 0 : index
    %97 = vector.load %arg2[%c0_32, %c0_33] : memref<256x1024xf32, #tpu.memory_space<vmem>>, vector<256x1024xf32>
    %cst_34 = arith.constant dense<0.000000e+00> : vector<16x1024xf32>
    %98 = tpu.matmul %95, %97, %cst_34 {dimension_numbers = #tpu.dot_dimension_numbers<[1], [0], [0], [1], [0, 0, 1, 1], [], []>} : vector<16x256xf32>, vector<256x1024xf32>, vector<16x1024xf32> -> vector<16x1024xf32>
    %99 = arith.addf %96, %98 : vector<16x1024xf32>
    %100 = vector.extract_strided_slice %99 {offsets = [0, 0], sizes = [16, 256], strides = [1, 1]} : vector<16x1024xf32> to vector<16x256xf32>
    %101 = arith.negf %100 : vector<16x256xf32>
    %102 = math.exp %101 : vector<16x256xf32>
    %cst_35 = arith.constant 1.000000e+00 : f32
    %103 = vector.broadcast %cst_35 : f32 to vector<16x256xf32>
    %104 = arith.addf %103, %102 : vector<16x256xf32>
    %105 = arith.divf %103, %104 : vector<16x256xf32>
    %106 = vector.extract_strided_slice %99 {offsets = [0, 256], sizes = [16, 256], strides = [1, 1]} : vector<16x1024xf32> to vector<16x256xf32>
    %107 = arith.negf %106 : vector<16x256xf32>
    %108 = math.exp %107 : vector<16x256xf32>
    %cst_36 = arith.constant 1.000000e+00 : f32
    %109 = vector.broadcast %cst_36 : f32 to vector<16x256xf32>
    %110 = arith.addf %109, %108 : vector<16x256xf32>
    %111 = arith.divf %109, %110 : vector<16x256xf32>
    %112 = vector.extract_strided_slice %99 {offsets = [0, 512], sizes = [16, 256], strides = [1, 1]} : vector<16x1024xf32> to vector<16x256xf32>
    %113 = math.tanh %112 : vector<16x256xf32>
    %114 = vector.extract_strided_slice %99 {offsets = [0, 768], sizes = [16, 256], strides = [1, 1]} : vector<16x1024xf32> to vector<16x256xf32>
    %115 = arith.negf %114 : vector<16x256xf32>
    %116 = math.exp %115 : vector<16x256xf32>
    %cst_37 = arith.constant 1.000000e+00 : f32
    %117 = vector.broadcast %cst_37 : f32 to vector<16x256xf32>
    %118 = arith.addf %117, %116 : vector<16x256xf32>
    %119 = arith.divf %117, %118 : vector<16x256xf32>
    %120 = arith.mulf %111, %93 : vector<16x256xf32>
    %121 = arith.mulf %105, %113 : vector<16x256xf32>
    %122 = arith.addf %120, %121 : vector<16x256xf32>
    %123 = math.tanh %122 : vector<16x256xf32>
    %124 = arith.mulf %119, %123 : vector<16x256xf32>
    %c64 = arith.constant 64 : index
    %c0_38 = arith.constant 0 : index
    %125 = vector.load %arg12[%c64, %c0_38] : memref<96x1024xf32, #tpu.memory_space<vmem>>, vector<16x1024xf32>
    %c0_39 = arith.constant 0 : index
    %c0_40 = arith.constant 0 : index
    %126 = vector.load %arg2[%c0_39, %c0_40] : memref<256x1024xf32, #tpu.memory_space<vmem>>, vector<256x1024xf32>
    %cst_41 = arith.constant dense<0.000000e+00> : vector<16x1024xf32>
    %127 = tpu.matmul %124, %126, %cst_41 {dimension_numbers = #tpu.dot_dimension_numbers<[1], [0], [0], [1], [0, 0, 1, 1], [], []>} : vector<16x256xf32>, vector<256x1024xf32>, vector<16x1024xf32> -> vector<16x1024xf32>
    %128 = arith.addf %125, %127 : vector<16x1024xf32>
    %129 = vector.extract_strided_slice %128 {offsets = [0, 0], sizes = [16, 256], strides = [1, 1]} : vector<16x1024xf32> to vector<16x256xf32>
    %130 = arith.negf %129 : vector<16x256xf32>
    %131 = math.exp %130 : vector<16x256xf32>
    %cst_42 = arith.constant 1.000000e+00 : f32
    %132 = vector.broadcast %cst_42 : f32 to vector<16x256xf32>
    %133 = arith.addf %132, %131 : vector<16x256xf32>
    %134 = arith.divf %132, %133 : vector<16x256xf32>
    %135 = vector.extract_strided_slice %128 {offsets = [0, 256], sizes = [16, 256], strides = [1, 1]} : vector<16x1024xf32> to vector<16x256xf32>
    %136 = arith.negf %135 : vector<16x256xf32>
    %137 = math.exp %136 : vector<16x256xf32>
    %cst_43 = arith.constant 1.000000e+00 : f32
    %138 = vector.broadcast %cst_43 : f32 to vector<16x256xf32>
    %139 = arith.addf %138, %137 : vector<16x256xf32>
    %140 = arith.divf %138, %139 : vector<16x256xf32>
    %141 = vector.extract_strided_slice %128 {offsets = [0, 512], sizes = [16, 256], strides = [1, 1]} : vector<16x1024xf32> to vector<16x256xf32>
    %142 = math.tanh %141 : vector<16x256xf32>
    %143 = vector.extract_strided_slice %128 {offsets = [0, 768], sizes = [16, 256], strides = [1, 1]} : vector<16x1024xf32> to vector<16x256xf32>
    %144 = arith.negf %143 : vector<16x256xf32>
    %145 = math.exp %144 : vector<16x256xf32>
    %cst_44 = arith.constant 1.000000e+00 : f32
    %146 = vector.broadcast %cst_44 : f32 to vector<16x256xf32>
    %147 = arith.addf %146, %145 : vector<16x256xf32>
    %148 = arith.divf %146, %147 : vector<16x256xf32>
    %149 = arith.mulf %140, %122 : vector<16x256xf32>
    %150 = arith.mulf %134, %142 : vector<16x256xf32>
    %151 = arith.addf %149, %150 : vector<16x256xf32>
    %152 = math.tanh %151 : vector<16x256xf32>
    %153 = arith.mulf %148, %152 : vector<16x256xf32>
    %c80 = arith.constant 80 : index
    %c0_45 = arith.constant 0 : index
    %154 = vector.load %arg12[%c80, %c0_45] : memref<96x1024xf32, #tpu.memory_space<vmem>>, vector<16x1024xf32>
    %c0_46 = arith.constant 0 : index
    %c0_47 = arith.constant 0 : index
    %155 = vector.load %arg2[%c0_46, %c0_47] : memref<256x1024xf32, #tpu.memory_space<vmem>>, vector<256x1024xf32>
    %cst_48 = arith.constant dense<0.000000e+00> : vector<16x1024xf32>
    %156 = tpu.matmul %153, %155, %cst_48 {dimension_numbers = #tpu.dot_dimension_numbers<[1], [0], [0], [1], [0, 0, 1, 1], [], []>} : vector<16x256xf32>, vector<256x1024xf32>, vector<16x1024xf32> -> vector<16x1024xf32>
    %157 = arith.addf %154, %156 : vector<16x1024xf32>
    %158 = vector.extract_strided_slice %157 {offsets = [0, 0], sizes = [16, 256], strides = [1, 1]} : vector<16x1024xf32> to vector<16x256xf32>
    %159 = arith.negf %158 : vector<16x256xf32>
    %160 = math.exp %159 : vector<16x256xf32>
    %cst_49 = arith.constant 1.000000e+00 : f32
    %161 = vector.broadcast %cst_49 : f32 to vector<16x256xf32>
    %162 = arith.addf %161, %160 : vector<16x256xf32>
    %163 = arith.divf %161, %162 : vector<16x256xf32>
    %164 = vector.extract_strided_slice %157 {offsets = [0, 256], sizes = [16, 256], strides = [1, 1]} : vector<16x1024xf32> to vector<16x256xf32>
    %165 = arith.negf %164 : vector<16x256xf32>
    %166 = math.exp %165 : vector<16x256xf32>
    %cst_50 = arith.constant 1.000000e+00 : f32
    %167 = vector.broadcast %cst_50 : f32 to vector<16x256xf32>
    %168 = arith.addf %167, %166 : vector<16x256xf32>
    %169 = arith.divf %167, %168 : vector<16x256xf32>
    %170 = vector.extract_strided_slice %157 {offsets = [0, 512], sizes = [16, 256], strides = [1, 1]} : vector<16x1024xf32> to vector<16x256xf32>
    %171 = math.tanh %170 : vector<16x256xf32>
    %172 = vector.extract_strided_slice %157 {offsets = [0, 768], sizes = [16, 256], strides = [1, 1]} : vector<16x1024xf32> to vector<16x256xf32>
    %173 = arith.negf %172 : vector<16x256xf32>
    %174 = math.exp %173 : vector<16x256xf32>
    %cst_51 = arith.constant 1.000000e+00 : f32
    %175 = vector.broadcast %cst_51 : f32 to vector<16x256xf32>
    %176 = arith.addf %175, %174 : vector<16x256xf32>
    %177 = arith.divf %175, %176 : vector<16x256xf32>
    %178 = arith.mulf %169, %151 : vector<16x256xf32>
    %179 = arith.mulf %163, %171 : vector<16x256xf32>
    %180 = arith.addf %178, %179 : vector<16x256xf32>
    %181 = math.tanh %180 : vector<16x256xf32>
    %182 = arith.mulf %177, %181 : vector<16x256xf32>
    %c0_52 = arith.constant 0 : index
    %c0_53 = arith.constant 0 : index
    %183 = vector.load %arg4[%c0_52, %c0_53] : memref<256x768xf32, #tpu.memory_space<vmem>>, vector<256x768xf32>
    %cst_54 = arith.constant dense<0.000000e+00> : vector<16x768xf32>
    %184 = tpu.matmul %182, %183, %cst_54 {dimension_numbers = #tpu.dot_dimension_numbers<[1], [0], [0], [1], [0, 0, 1, 1], [], []>} : vector<16x256xf32>, vector<256x768xf32>, vector<16x768xf32> -> vector<16x768xf32>
    %c0_55 = arith.constant 0 : index
    %c0_56 = arith.constant 0 : index
    %185 = vector.load %arg5[%c0_55, %c0_56] : memref<1x768xf32, #tpu.memory_space<vmem>>, vector<1x768xf32>
    %186 = vector.broadcast %185 : vector<1x768xf32> to vector<16x768xf32>
    %187 = arith.addf %184, %186 : vector<16x768xf32>
    %188 = vector.extract_strided_slice %187 {offsets = [0, 0], sizes = [16, 256], strides = [1, 1]} : vector<16x768xf32> to vector<16x256xf32>
    %189 = arith.negf %188 : vector<16x256xf32>
    %190 = math.exp %189 : vector<16x256xf32>
    %cst_57 = arith.constant 1.000000e+00 : f32
    %191 = vector.broadcast %cst_57 : f32 to vector<16x256xf32>
    %192 = arith.addf %191, %190 : vector<16x256xf32>
    %193 = arith.divf %191, %192 : vector<16x256xf32>
    %194 = vector.extract_strided_slice %187 {offsets = [0, 256], sizes = [16, 256], strides = [1, 1]} : vector<16x768xf32> to vector<16x256xf32>
    %195 = math.tanh %194 : vector<16x256xf32>
    %196 = vector.extract_strided_slice %187 {offsets = [0, 512], sizes = [16, 256], strides = [1, 1]} : vector<16x768xf32> to vector<16x256xf32>
    %197 = arith.negf %196 : vector<16x256xf32>
    %198 = math.exp %197 : vector<16x256xf32>
    %cst_58 = arith.constant 1.000000e+00 : f32
    %199 = vector.broadcast %cst_58 : f32 to vector<16x256xf32>
    %200 = arith.addf %199, %198 : vector<16x256xf32>
    %201 = arith.divf %199, %200 : vector<16x256xf32>
    %202 = arith.mulf %193, %195 : vector<16x256xf32>
    %203 = math.tanh %202 : vector<16x256xf32>
    %204 = arith.mulf %201, %203 : vector<16x256xf32>
    %c0_59 = arith.constant 0 : index
    %c0_60 = arith.constant 0 : index
    %205 = vector.load %arg6[%c0_59, %c0_60] : memref<256x5xf32, #tpu.memory_space<vmem>>, vector<256x5xf32>
    %cst_61 = arith.constant dense<0.000000e+00> : vector<16x5xf32>
    %206 = tpu.matmul %204, %205, %cst_61 {dimension_numbers = #tpu.dot_dimension_numbers<[1], [0], [0], [1], [0, 0, 1, 1], [], []>} : vector<16x256xf32>, vector<256x5xf32>, vector<16x5xf32> -> vector<16x5xf32>
    %c0_62 = arith.constant 0 : index
    %c0_63 = arith.constant 0 : index
    %207 = vector.load %arg7[%c0_62, %c0_63] : memref<1x5xf32, #tpu.memory_space<vmem>>, vector<1x5xf32>
    %208 = vector.broadcast %207 : vector<1x5xf32> to vector<16x5xf32>
    %209 = arith.addf %206, %208 : vector<16x5xf32>
    %210 = vector.extract_strided_slice %209 {offsets = [0, 0], sizes = [2, 5], strides = [1, 1]} : vector<16x5xf32> to vector<2x5xf32>
    %211 = vector.extract_strided_slice %209 {offsets = [2, 0], sizes = [2, 5], strides = [1, 1]} : vector<16x5xf32> to vector<2x5xf32>
    %212 = vector.extract_strided_slice %209 {offsets = [4, 0], sizes = [2, 5], strides = [1, 1]} : vector<16x5xf32> to vector<2x5xf32>
    %213 = vector.extract_strided_slice %209 {offsets = [6, 0], sizes = [2, 5], strides = [1, 1]} : vector<16x5xf32> to vector<2x5xf32>
    %214 = vector.extract_strided_slice %209 {offsets = [8, 0], sizes = [2, 5], strides = [1, 1]} : vector<16x5xf32> to vector<2x5xf32>
    %215 = vector.extract_strided_slice %209 {offsets = [10, 0], sizes = [2, 5], strides = [1, 1]} : vector<16x5xf32> to vector<2x5xf32>
    %216 = vector.extract_strided_slice %209 {offsets = [12, 0], sizes = [2, 5], strides = [1, 1]} : vector<16x5xf32> to vector<2x5xf32>
    %217 = vector.extract_strided_slice %209 {offsets = [14, 0], sizes = [2, 5], strides = [1, 1]} : vector<16x5xf32> to vector<2x5xf32>
    %c0_64 = arith.constant 0 : index
    %c0_65 = arith.constant 0 : index
    %218 = vector.load %arg8[%c0_64, %c0_65] : memref<5x5xf32, #tpu.memory_space<vmem>>, vector<5x5xf32>
    %219 = tpu.iota {dimensions = array<i32: 1>} : vector<2x5x5xi32>
    %220 = tpu.iota {dimensions = array<i32: 1>} : vector<2x5xi32>
    %c0_66 = arith.constant 0 : index
    %c0_67 = arith.constant 0 : index
    %221 = vector.load %arg9[%c0_66, %c0_67] : memref<1x5xf32, #tpu.memory_space<vmem>>, vector<1x5xf32>
    %222 = vector.broadcast %221 : vector<1x5xf32> to vector<2x5xf32>
    %223 = arith.addf %222, %210 : vector<2x5xf32>
    %224 = vector.shape_cast %223 : vector<2x5xf32> to vector<2x5x1xf32>
    %225 = vector.shape_cast %218 : vector<5x5xf32> to vector<1x5x5xf32>
    %226 = vector.broadcast %224 : vector<2x5x1xf32> to vector<2x5x5xf32>
    %227 = vector.broadcast %225 : vector<1x5x5xf32> to vector<2x5x5xf32>
    %228 = arith.addf %226, %227 : vector<2x5x5xf32>
    %cst_68 = arith.constant dense<0xFF800000> : vector<2x5xf32>
    %229 = vector.multi_reduction <maximumf>, %228, %cst_68 [1] : vector<2x5x5xf32> to vector<2x5xf32>
    %230 = vector.shape_cast %229 : vector<2x5xf32> to vector<2x1x5xf32>
    %231 = vector.broadcast %230 : vector<2x1x5xf32> to vector<2x5x5xf32>
    %232 = arith.cmpf oeq, %228, %231 : vector<2x5x5xf32>
    %c5_i32 = arith.constant 5 : i32
    %233 = vector.broadcast %c5_i32 : i32 to vector<2x5x5xi32>
    %234 = arith.select %232, %219, %233 : vector<2x5x5xi1>, vector<2x5x5xi32>
    %cst_69 = arith.constant dense<2147483647> : vector<2x5xi32>
    %235 = vector.multi_reduction <minsi>, %234, %cst_69 [1] : vector<2x5x5xi32> to vector<2x5xi32>
    %236 = arith.addf %229, %211 : vector<2x5xf32>
    %237 = vector.shape_cast %236 : vector<2x5xf32> to vector<2x5x1xf32>
    %238 = vector.shape_cast %218 : vector<5x5xf32> to vector<1x5x5xf32>
    %239 = vector.broadcast %237 : vector<2x5x1xf32> to vector<2x5x5xf32>
    %240 = vector.broadcast %238 : vector<1x5x5xf32> to vector<2x5x5xf32>
    %241 = arith.addf %239, %240 : vector<2x5x5xf32>
    %cst_70 = arith.constant dense<0xFF800000> : vector<2x5xf32>
    %242 = vector.multi_reduction <maximumf>, %241, %cst_70 [1] : vector<2x5x5xf32> to vector<2x5xf32>
    %243 = vector.shape_cast %242 : vector<2x5xf32> to vector<2x1x5xf32>
    %244 = vector.broadcast %243 : vector<2x1x5xf32> to vector<2x5x5xf32>
    %245 = arith.cmpf oeq, %241, %244 : vector<2x5x5xf32>
    %c5_i32_71 = arith.constant 5 : i32
    %246 = vector.broadcast %c5_i32_71 : i32 to vector<2x5x5xi32>
    %247 = arith.select %245, %219, %246 : vector<2x5x5xi1>, vector<2x5x5xi32>
    %cst_72 = arith.constant dense<2147483647> : vector<2x5xi32>
    %248 = vector.multi_reduction <minsi>, %247, %cst_72 [1] : vector<2x5x5xi32> to vector<2x5xi32>
    %249 = arith.addf %242, %212 : vector<2x5xf32>
    %250 = vector.shape_cast %249 : vector<2x5xf32> to vector<2x5x1xf32>
    %251 = vector.shape_cast %218 : vector<5x5xf32> to vector<1x5x5xf32>
    %252 = vector.broadcast %250 : vector<2x5x1xf32> to vector<2x5x5xf32>
    %253 = vector.broadcast %251 : vector<1x5x5xf32> to vector<2x5x5xf32>
    %254 = arith.addf %252, %253 : vector<2x5x5xf32>
    %cst_73 = arith.constant dense<0xFF800000> : vector<2x5xf32>
    %255 = vector.multi_reduction <maximumf>, %254, %cst_73 [1] : vector<2x5x5xf32> to vector<2x5xf32>
    %256 = vector.shape_cast %255 : vector<2x5xf32> to vector<2x1x5xf32>
    %257 = vector.broadcast %256 : vector<2x1x5xf32> to vector<2x5x5xf32>
    %258 = arith.cmpf oeq, %254, %257 : vector<2x5x5xf32>
    %c5_i32_74 = arith.constant 5 : i32
    %259 = vector.broadcast %c5_i32_74 : i32 to vector<2x5x5xi32>
    %260 = arith.select %258, %219, %259 : vector<2x5x5xi1>, vector<2x5x5xi32>
    %cst_75 = arith.constant dense<2147483647> : vector<2x5xi32>
    %261 = vector.multi_reduction <minsi>, %260, %cst_75 [1] : vector<2x5x5xi32> to vector<2x5xi32>
    %262 = arith.addf %255, %213 : vector<2x5xf32>
    %263 = vector.shape_cast %262 : vector<2x5xf32> to vector<2x5x1xf32>
    %264 = vector.shape_cast %218 : vector<5x5xf32> to vector<1x5x5xf32>
    %265 = vector.broadcast %263 : vector<2x5x1xf32> to vector<2x5x5xf32>
    %266 = vector.broadcast %264 : vector<1x5x5xf32> to vector<2x5x5xf32>
    %267 = arith.addf %265, %266 : vector<2x5x5xf32>
    %cst_76 = arith.constant dense<0xFF800000> : vector<2x5xf32>
    %268 = vector.multi_reduction <maximumf>, %267, %cst_76 [1] : vector<2x5x5xf32> to vector<2x5xf32>
    %269 = vector.shape_cast %268 : vector<2x5xf32> to vector<2x1x5xf32>
    %270 = vector.broadcast %269 : vector<2x1x5xf32> to vector<2x5x5xf32>
    %271 = arith.cmpf oeq, %267, %270 : vector<2x5x5xf32>
    %c5_i32_77 = arith.constant 5 : i32
    %272 = vector.broadcast %c5_i32_77 : i32 to vector<2x5x5xi32>
    %273 = arith.select %271, %219, %272 : vector<2x5x5xi1>, vector<2x5x5xi32>
    %cst_78 = arith.constant dense<2147483647> : vector<2x5xi32>
    %274 = vector.multi_reduction <minsi>, %273, %cst_78 [1] : vector<2x5x5xi32> to vector<2x5xi32>
    %275 = arith.addf %268, %214 : vector<2x5xf32>
    %276 = vector.shape_cast %275 : vector<2x5xf32> to vector<2x5x1xf32>
    %277 = vector.shape_cast %218 : vector<5x5xf32> to vector<1x5x5xf32>
    %278 = vector.broadcast %276 : vector<2x5x1xf32> to vector<2x5x5xf32>
    %279 = vector.broadcast %277 : vector<1x5x5xf32> to vector<2x5x5xf32>
    %280 = arith.addf %278, %279 : vector<2x5x5xf32>
    %cst_79 = arith.constant dense<0xFF800000> : vector<2x5xf32>
    %281 = vector.multi_reduction <maximumf>, %280, %cst_79 [1] : vector<2x5x5xf32> to vector<2x5xf32>
    %282 = vector.shape_cast %281 : vector<2x5xf32> to vector<2x1x5xf32>
    %283 = vector.broadcast %282 : vector<2x1x5xf32> to vector<2x5x5xf32>
    %284 = arith.cmpf oeq, %280, %283 : vector<2x5x5xf32>
    %c5_i32_80 = arith.constant 5 : i32
    %285 = vector.broadcast %c5_i32_80 : i32 to vector<2x5x5xi32>
    %286 = arith.select %284, %219, %285 : vector<2x5x5xi1>, vector<2x5x5xi32>
    %cst_81 = arith.constant dense<2147483647> : vector<2x5xi32>
    %287 = vector.multi_reduction <minsi>, %286, %cst_81 [1] : vector<2x5x5xi32> to vector<2x5xi32>
    %288 = arith.addf %281, %215 : vector<2x5xf32>
    %289 = vector.shape_cast %288 : vector<2x5xf32> to vector<2x5x1xf32>
    %290 = vector.shape_cast %218 : vector<5x5xf32> to vector<1x5x5xf32>
    %291 = vector.broadcast %289 : vector<2x5x1xf32> to vector<2x5x5xf32>
    %292 = vector.broadcast %290 : vector<1x5x5xf32> to vector<2x5x5xf32>
    %293 = arith.addf %291, %292 : vector<2x5x5xf32>
    %cst_82 = arith.constant dense<0xFF800000> : vector<2x5xf32>
    %294 = vector.multi_reduction <maximumf>, %293, %cst_82 [1] : vector<2x5x5xf32> to vector<2x5xf32>
    %295 = vector.shape_cast %294 : vector<2x5xf32> to vector<2x1x5xf32>
    %296 = vector.broadcast %295 : vector<2x1x5xf32> to vector<2x5x5xf32>
    %297 = arith.cmpf oeq, %293, %296 : vector<2x5x5xf32>
    %c5_i32_83 = arith.constant 5 : i32
    %298 = vector.broadcast %c5_i32_83 : i32 to vector<2x5x5xi32>
    %299 = arith.select %297, %219, %298 : vector<2x5x5xi1>, vector<2x5x5xi32>
    %cst_84 = arith.constant dense<2147483647> : vector<2x5xi32>
    %300 = vector.multi_reduction <minsi>, %299, %cst_84 [1] : vector<2x5x5xi32> to vector<2x5xi32>
    %301 = arith.addf %294, %216 : vector<2x5xf32>
    %302 = vector.shape_cast %301 : vector<2x5xf32> to vector<2x5x1xf32>
    %303 = vector.shape_cast %218 : vector<5x5xf32> to vector<1x5x5xf32>
    %304 = vector.broadcast %302 : vector<2x5x1xf32> to vector<2x5x5xf32>
    %305 = vector.broadcast %303 : vector<1x5x5xf32> to vector<2x5x5xf32>
    %306 = arith.addf %304, %305 : vector<2x5x5xf32>
    %cst_85 = arith.constant dense<0xFF800000> : vector<2x5xf32>
    %307 = vector.multi_reduction <maximumf>, %306, %cst_85 [1] : vector<2x5x5xf32> to vector<2x5xf32>
    %308 = vector.shape_cast %307 : vector<2x5xf32> to vector<2x1x5xf32>
    %309 = vector.broadcast %308 : vector<2x1x5xf32> to vector<2x5x5xf32>
    %310 = arith.cmpf oeq, %306, %309 : vector<2x5x5xf32>
    %c5_i32_86 = arith.constant 5 : i32
    %311 = vector.broadcast %c5_i32_86 : i32 to vector<2x5x5xi32>
    %312 = arith.select %310, %219, %311 : vector<2x5x5xi1>, vector<2x5x5xi32>
    %cst_87 = arith.constant dense<2147483647> : vector<2x5xi32>
    %313 = vector.multi_reduction <minsi>, %312, %cst_87 [1] : vector<2x5x5xi32> to vector<2x5xi32>
    %314 = arith.addf %307, %217 : vector<2x5xf32>
    %c0_88 = arith.constant 0 : index
    %c0_89 = arith.constant 0 : index
    %315 = vector.load %arg10[%c0_88, %c0_89] : memref<1x5xf32, #tpu.memory_space<vmem>>, vector<1x5xf32>
    %316 = vector.broadcast %315 : vector<1x5xf32> to vector<2x5xf32>
    %317 = arith.addf %314, %316 : vector<2x5xf32>
    %cst_90 = arith.constant dense<0xFF800000> : vector<2xf32>
    %318 = vector.multi_reduction <maximumf>, %317, %cst_90 [1] : vector<2x5xf32> to vector<2xf32>
    %319 = vector.shape_cast %318 : vector<2xf32> to vector<2x1xf32>
    %320 = vector.broadcast %319 : vector<2x1xf32> to vector<2x5xf32>
    %321 = arith.cmpf oeq, %317, %320 : vector<2x5xf32>
    %c5_i32_91 = arith.constant 5 : i32
    %322 = vector.broadcast %c5_i32_91 : i32 to vector<2x5xi32>
    %323 = arith.select %321, %220, %322 : vector<2x5xi1>, vector<2x5xi32>
    %cst_92 = arith.constant dense<2147483647> : vector<2xi32>
    %324 = vector.multi_reduction <minsi>, %323, %cst_92 [1] : vector<2x5xi32> to vector<2xi32>
    %325 = vector.shape_cast %324 : vector<2xi32> to vector<2x1xi32>
    %326 = tpu.iota {dimensions = array<i32: 1>} : vector<2x8xi32>
    %c7_i32 = arith.constant 7 : i32
    %327 = vector.broadcast %c7_i32 : i32 to vector<2x8xi32>
    %328 = arith.cmpi eq, %326, %327 : vector<2x8xi32>
    %329 = vector.shape_cast %325 : vector<2x1xi32> to vector<2x1xi32>
    %330 = vector.broadcast %329 : vector<2x1xi32> to vector<2x8xi32>
    %c0_i32 = arith.constant 0 : i32
    %331 = vector.broadcast %c0_i32 : i32 to vector<2x8xi32>
    %332 = arith.select %328, %330, %331 : vector<2x8xi1>, vector<2x8xi32>
    %333 = vector.broadcast %325 : vector<2x1xi32> to vector<2x5xi32>
    %334 = arith.cmpi eq, %220, %333 : vector<2x5xi32>
    %c0_i32_93 = arith.constant 0 : i32
    %335 = vector.broadcast %c0_i32_93 : i32 to vector<2x5xi32>
    %336 = arith.select %334, %313, %335 : vector<2x5xi1>, vector<2x5xi32>
    %cst_94 = arith.constant dense<0> : vector<2xi32>
    %337 = vector.multi_reduction <add>, %336, %cst_94 [1] : vector<2x5xi32> to vector<2xi32>
    %338 = vector.shape_cast %337 : vector<2xi32> to vector<2x1xi32>
    %c6_i32 = arith.constant 6 : i32
    %339 = vector.broadcast %c6_i32 : i32 to vector<2x8xi32>
    %340 = arith.cmpi eq, %326, %339 : vector<2x8xi32>
    %341 = vector.shape_cast %338 : vector<2x1xi32> to vector<2x1xi32>
    %342 = vector.broadcast %341 : vector<2x1xi32> to vector<2x8xi32>
    %343 = arith.select %340, %342, %332 : vector<2x8xi1>, vector<2x8xi32>
    %344 = vector.broadcast %338 : vector<2x1xi32> to vector<2x5xi32>
    %345 = arith.cmpi eq, %220, %344 : vector<2x5xi32>
    %c0_i32_95 = arith.constant 0 : i32
    %346 = vector.broadcast %c0_i32_95 : i32 to vector<2x5xi32>
    %347 = arith.select %345, %300, %346 : vector<2x5xi1>, vector<2x5xi32>
    %cst_96 = arith.constant dense<0> : vector<2xi32>
    %348 = vector.multi_reduction <add>, %347, %cst_96 [1] : vector<2x5xi32> to vector<2xi32>
    %349 = vector.shape_cast %348 : vector<2xi32> to vector<2x1xi32>
    %c5_i32_97 = arith.constant 5 : i32
    %350 = vector.broadcast %c5_i32_97 : i32 to vector<2x8xi32>
    %351 = arith.cmpi eq, %326, %350 : vector<2x8xi32>
    %352 = vector.shape_cast %349 : vector<2x1xi32> to vector<2x1xi32>
    %353 = vector.broadcast %352 : vector<2x1xi32> to vector<2x8xi32>
    %354 = arith.select %351, %353, %343 : vector<2x8xi1>, vector<2x8xi32>
    %355 = vector.broadcast %349 : vector<2x1xi32> to vector<2x5xi32>
    %356 = arith.cmpi eq, %220, %355 : vector<2x5xi32>
    %c0_i32_98 = arith.constant 0 : i32
    %357 = vector.broadcast %c0_i32_98 : i32 to vector<2x5xi32>
    %358 = arith.select %356, %287, %357 : vector<2x5xi1>, vector<2x5xi32>
    %cst_99 = arith.constant dense<0> : vector<2xi32>
    %359 = vector.multi_reduction <add>, %358, %cst_99 [1] : vector<2x5xi32> to vector<2xi32>
    %360 = vector.shape_cast %359 : vector<2xi32> to vector<2x1xi32>
    %c4_i32 = arith.constant 4 : i32
    %361 = vector.broadcast %c4_i32 : i32 to vector<2x8xi32>
    %362 = arith.cmpi eq, %326, %361 : vector<2x8xi32>
    %363 = vector.shape_cast %360 : vector<2x1xi32> to vector<2x1xi32>
    %364 = vector.broadcast %363 : vector<2x1xi32> to vector<2x8xi32>
    %365 = arith.select %362, %364, %354 : vector<2x8xi1>, vector<2x8xi32>
    %366 = vector.broadcast %360 : vector<2x1xi32> to vector<2x5xi32>
    %367 = arith.cmpi eq, %220, %366 : vector<2x5xi32>
    %c0_i32_100 = arith.constant 0 : i32
    %368 = vector.broadcast %c0_i32_100 : i32 to vector<2x5xi32>
    %369 = arith.select %367, %274, %368 : vector<2x5xi1>, vector<2x5xi32>
    %cst_101 = arith.constant dense<0> : vector<2xi32>
    %370 = vector.multi_reduction <add>, %369, %cst_101 [1] : vector<2x5xi32> to vector<2xi32>
    %371 = vector.shape_cast %370 : vector<2xi32> to vector<2x1xi32>
    %c3_i32 = arith.constant 3 : i32
    %372 = vector.broadcast %c3_i32 : i32 to vector<2x8xi32>
    %373 = arith.cmpi eq, %326, %372 : vector<2x8xi32>
    %374 = vector.shape_cast %371 : vector<2x1xi32> to vector<2x1xi32>
    %375 = vector.broadcast %374 : vector<2x1xi32> to vector<2x8xi32>
    %376 = arith.select %373, %375, %365 : vector<2x8xi1>, vector<2x8xi32>
    %377 = vector.broadcast %371 : vector<2x1xi32> to vector<2x5xi32>
    %378 = arith.cmpi eq, %220, %377 : vector<2x5xi32>
    %c0_i32_102 = arith.constant 0 : i32
    %379 = vector.broadcast %c0_i32_102 : i32 to vector<2x5xi32>
    %380 = arith.select %378, %261, %379 : vector<2x5xi1>, vector<2x5xi32>
    %cst_103 = arith.constant dense<0> : vector<2xi32>
    %381 = vector.multi_reduction <add>, %380, %cst_103 [1] : vector<2x5xi32> to vector<2xi32>
    %382 = vector.shape_cast %381 : vector<2xi32> to vector<2x1xi32>
    %c2_i32 = arith.constant 2 : i32
    %383 = vector.broadcast %c2_i32 : i32 to vector<2x8xi32>
    %384 = arith.cmpi eq, %326, %383 : vector<2x8xi32>
    %385 = vector.shape_cast %382 : vector<2x1xi32> to vector<2x1xi32>
    %386 = vector.broadcast %385 : vector<2x1xi32> to vector<2x8xi32>
    %387 = arith.select %384, %386, %376 : vector<2x8xi1>, vector<2x8xi32>
    %388 = vector.broadcast %382 : vector<2x1xi32> to vector<2x5xi32>
    %389 = arith.cmpi eq, %220, %388 : vector<2x5xi32>
    %c0_i32_104 = arith.constant 0 : i32
    %390 = vector.broadcast %c0_i32_104 : i32 to vector<2x5xi32>
    %391 = arith.select %389, %248, %390 : vector<2x5xi1>, vector<2x5xi32>
    %cst_105 = arith.constant dense<0> : vector<2xi32>
    %392 = vector.multi_reduction <add>, %391, %cst_105 [1] : vector<2x5xi32> to vector<2xi32>
    %393 = vector.shape_cast %392 : vector<2xi32> to vector<2x1xi32>
    %c1_i32 = arith.constant 1 : i32
    %394 = vector.broadcast %c1_i32 : i32 to vector<2x8xi32>
    %395 = arith.cmpi eq, %326, %394 : vector<2x8xi32>
    %396 = vector.shape_cast %393 : vector<2x1xi32> to vector<2x1xi32>
    %397 = vector.broadcast %396 : vector<2x1xi32> to vector<2x8xi32>
    %398 = arith.select %395, %397, %387 : vector<2x8xi1>, vector<2x8xi32>
    %399 = vector.broadcast %393 : vector<2x1xi32> to vector<2x5xi32>
    %400 = arith.cmpi eq, %220, %399 : vector<2x5xi32>
    %c0_i32_106 = arith.constant 0 : i32
    %401 = vector.broadcast %c0_i32_106 : i32 to vector<2x5xi32>
    %402 = arith.select %400, %235, %401 : vector<2x5xi1>, vector<2x5xi32>
    %cst_107 = arith.constant dense<0> : vector<2xi32>
    %403 = vector.multi_reduction <add>, %402, %cst_107 [1] : vector<2x5xi32> to vector<2xi32>
    %404 = vector.shape_cast %403 : vector<2xi32> to vector<2x1xi32>
    %c0_i32_108 = arith.constant 0 : i32
    %405 = vector.broadcast %c0_i32_108 : i32 to vector<2x8xi32>
    %406 = arith.cmpi eq, %326, %405 : vector<2x8xi32>
    %407 = vector.shape_cast %404 : vector<2x1xi32> to vector<2x1xi32>
    %408 = vector.broadcast %407 : vector<2x1xi32> to vector<2x8xi32>
    %409 = arith.select %406, %408, %398 : vector<2x8xi1>, vector<2x8xi32>
    %c0_109 = arith.constant 0 : index
    %c0_110 = arith.constant 0 : index
    %410 = vector.load %arg11[%c0_109, %c0_110] : memref<2x8xi32, #tpu.memory_space<vmem>>, vector<2x8xi32>
    tpu.vector_store %arg11[%c0_109, %c0_110], %409 {strides = array<i32>} : memref<2x8xi32, #tpu.memory_space<vmem>>, vector<2x8xi32>,
    return
  }
}

</mosaic_0001>

<llo_original>
// kernel: ner_forward.1
$region0: #{ner_forward.1}
  #allocation0 [shape = 'u32[]', space=smem, size = 0x4, offset = 0x4, fixed_abs, tag = 'smem constant byte address 0x4 - core index']
  #allocation1 [shape = 'u32[144,128]{1,0:T(1,128)}', space=vmem, size = 0x12000, scoped, tag = 'internal scratch']
  #allocation2 [shape = 'f32[96,1024]{1,0:T(8,128)}', space=vmem, size = 0x60000, scoped, tag = 'scratch operand']
  %s0 = inlined_call_operand.vmem [shape: f32[96,64], index: 0, kind: input, shape index: {}]
  %s1 = inlined_call_operand.vmem [shape: f32[64,1024], index: 1, kind: input, shape index: {}]
  %s2 = inlined_call_operand.hbm [shape: f32[256,1024], index: 2, kind: input, shape index: {}]
  %s3 = inlined_call_operand.vmem [shape: f32[1,1024], index: 3, kind: input, shape index: {}]
  %s4 = inlined_call_operand.hbm [shape: f32[256,768], index: 4, kind: input, shape index: {}]
  %s5 = inlined_call_operand.vmem [shape: f32[1,768], index: 5, kind: input, shape index: {}]
  %s6 = inlined_call_operand.vmem [shape: f32[256,5], index: 6, kind: input, shape index: {}]
  %s7 = inlined_call_operand.vmem [shape: f32[1,5], index: 7, kind: input, shape index: {}]
  %s8 = inlined_call_operand.vmem [shape: f32[5,5], index: 8, kind: input, shape index: {}]
  %s9 = inlined_call_operand.vmem [shape: f32[1,5], index: 9, kind: input, shape index: {}]
  %s10 = inlined_call_operand.vmem [shape: f32[1,5], index: 10, kind: input, shape index: {}]
  %s11 = inlined_call_operand.hbm [shape: s32[2,8], index: 11, kind: output, shape index: {}]
  %s12 = sld [smem:[#allocation0]]
  $region62: #{ner_forward.1} parent=0
    _
  %s14 = ssub.s32 1, %s12
  %s15 = scalar_select 0, %s14, %s12
  $region1: #{ner_forward.1} parent=0
    #allocation3 [shape = 'u8[1048576]{0}', space=vmem, size = 0x100000, scoped, tag = 'input window, operand 2, single buffered']
    #allocation4 [shape = 's32[1]{0}', space=sflag, size = 0x4, scoped, tag = 'scoped memory for ner_forward.1']
    #allocation5 [shape = 's32[1]{0}', space=sflag, size = 0x4, scoped, tag = 'scoped memory for ner_forward.1']
    #allocation6 [shape = 'u8[786432]{0}', space=vmem, size = 0xc0000, scoped, tag = 'input window, operand 4, single buffered']
    #allocation7 [shape = 's32[1]{0}', space=sflag, size = 0x4, scoped, tag = 'scoped memory for ner_forward.1']
    #allocation8 [shape = 'u8[1024]{0}', space=vmem, size = 0x400, scoped, tag = 'output window, operand 0, single buffered']
    %16 = vsyncpa [#allocation4], 0
    %17 = vsyncpa [#allocation7], 0
    %18 = vsyncpa [#allocation5], 0
    // Predicated region
    $region2: #{ner_forward.1} parent=1 // pred_check
      _
    $region3: #{ner_forward.1} parent=1 // pred_check_branch
      %20 = sbr.rel (0) target = $region5
    $region4: #{ner_forward.1} parent=1 // pred_region
      _
    $region5: #{ner_forward.1} parent=1 // pred_fallthru
      _
    // Predicated region
    $region6: #{ner_forward.1} parent=1 // pred_check
      _
    $region7: #{ner_forward.1} parent=1 // pred_check_branch
      %22 = sbr.rel (0) target = $region9
    $region8: #{ner_forward.1} parent=1 // pred_region
      _
    $region9: #{ner_forward.1} parent=1 // pred_fallthru
      _
    // Predicated region
    $region10: #{ner_forward.1} parent=1 // pred_check
      _
    $region11: #{ner_forward.1} parent=1 // pred_check_branch
      %24 = sbr.rel (0) target = $region13
    $region12: #{ner_forward.1} parent=1 // pred_region
      %s26 = ssub.s32 32768, 32768
      %27 = vsyncadd [#allocation4], %s26
      %s28 = sshll.u32 [#allocation3], 4
      %s29 = int_to_ptr.vmem [resolvable:$true] %s28
      %34 = dma.hbm_to_vmem [thread:$0]  %s2, 32768, %s29, [#allocation4], 1024, 1024, 64
    $region13: #{ner_forward.1} parent=1 // pred_fallthru
      _
    // Predicated region
    $region14: #{ner_forward.1} parent=1 // pred_check
      _
    $region15: #{ner_forward.1} parent=1 // pred_check_branch
      %36 = sbr.rel (0) target = $region17
    $region16: #{ner_forward.1} parent=1 // pred_region
      _
    $region17: #{ner_forward.1} parent=1 // pred_fallthru
      _
    // Predicated region
    $region18: #{ner_forward.1} parent=1 // pred_check
      _
    $region19: #{ner_forward.1} parent=1 // pred_check_branch
      %38 = sbr.rel (0) target = $region21
    $region20: #{ner_forward.1} parent=1 // pred_region
      %s40 = ssub.s32 24576, 24576
      %41 = vsyncadd [#allocation7], %s40
      %s42 = sshll.u32 [#allocation6], 4
      %s43 = int_to_ptr.vmem [resolvable:$true] %s42
      %48 = dma.hbm_to_vmem [thread:$0]  %s4, 24576, %s43, [#allocation7], 768, 768, 48
    $region21: #{ner_forward.1} parent=1 // pred_fallthru
      _
    // Predicated region
    $region22: #{ner_forward.1} parent=1 // pred_check
      _
    $region23: #{ner_forward.1} parent=1 // pred_check_branch
      %50 = sbr.rel (0) target = $region25
    $region24: #{ner_forward.1} parent=1 // pred_region
      _
    $region25: #{ner_forward.1} parent=1 // pred_fallthru
      _
    // Predicated region
    $region26: #{ner_forward.1} parent=1 // pred_check
      _
    $region27: #{ner_forward.1} parent=1 // pred_check_branch
      %52 = sbr.rel (0) target = $region29
    $region28: #{ner_forward.1} parent=1 // pred_region
      _
    $region29: #{ner_forward.1} parent=1 // pred_fallthru
      _
    // Predicated region
    $region30: #{ner_forward.1} parent=1 // pred_check
      _
    $region31: #{ner_forward.1} parent=1 // pred_check_branch
      %54 = sbr.rel (0) target = $region33
    $region32: #{ner_forward.1} parent=1 // pred_region
      _
    $region33: #{ner_forward.1} parent=1 // pred_fallthru
      _
    // Predicated region
    $region34: #{ner_forward.1} parent=1 // pred_check
      _
    $region35: #{ner_forward.1} parent=1 // pred_check_branch
      %56 = sbr.rel (0) target = $region37
    $region36: #{ner_forward.1} parent=1 // pred_region
      _
    $region37: #{ner_forward.1} parent=1 // pred_fallthru
      _
    // Predicated region
    $region38: #{ner_forward.1} parent=1 // pred_check
      _
    $region39: #{ner_forward.1} parent=1 // pred_check_branch
      %58 = sbr.rel (0) target = $region41
    $region40: #{ner_forward.1} parent=1 // pred_region
      _
    $region41: #{ner_forward.1} parent=1 // pred_fallthru
      _
    // Predicated region
    $region42: #{ner_forward.1} parent=1 // pred_check
      _
    $region43: #{ner_forward.1} parent=1 // pred_check_branch
      %60 = sbr.rel (0) target = $region45
    $region44: #{ner_forward.1} parent=1 // pred_region
      _
    $region45: #{ner_forward.1} parent=1 // pred_fallthru
      _
    // Predicated region
    $region46: #{ner_forward.1} parent=1 // pred_check
      _
    $region47: #{ner_forward.1} parent=1 // pred_check_branch
      %62 = sbr.rel (0) target = $region49
    $region48: #{ner_forward.1} parent=1 // pred_region
      %63 = dma.done [#allocation4], 32768
    $region49: #{ner_forward.1} parent=1 // pred_fallthru
      _
    // Predicated region
    $region50: #{ner_forward.1} parent=1 // pred_check
      _
    $region51: #{ner_forward.1} parent=1 // pred_check_branch
      %65 = sbr.rel (0) target = $region53
    $region52: #{ner_forward.1} parent=1 // pred_region
      %66 = dma.done [#allocation7], 24576
    $region53: #{ner_forward.1} parent=1 // pred_fallthru
      _
    %v67 = vld [vmem:[%s0] sm:$0xff]
    %v68 = vld [vmem:[%s0 + $0x8] sm:$0xff]
    %v69 = vld [vmem:[%s0 + $0x10] sm:$0xff]
    %v70 = vld [vmem:[%s0 + $0x18] sm:$0xff]
    %v71 = vld [vmem:[%s0 + $0x20] sm:$0xff]
    %v72 = vld [vmem:[%s0 + $0x28] sm:$0xff]
    %v73 = vld [vmem:[%s0 + $0x30] sm:$0xff]
    %v74 = vld [vmem:[%s0 + $0x38] sm:$0xff]
    %v75 = vld [vmem:[%s0 + $0x40] sm:$0xff]
    %v76 = vld [vmem:[%s0 + $0x48] sm:$0xff]
    %v77 = vld [vmem:[%s0 + $0x50] sm:$0xff]
    %v78 = vld [vmem:[%s0 + $0x58] sm:$0xff]
    %v79 = vld [vmem:[%s1] sm:$0xff]
    %v80 = vld [vmem:[%s1 + $0x8] sm:$0xff]
    %v81 = vld [vmem:[%s1 + $0x10] sm:$0xff]
    %v82 = vld [vmem:[%s1 + $0x18] sm:$0xff]
    %v83 = vld [vmem:[%s1 + $0x20] sm:$0xff]
    %v84 = vld [vmem:[%s1 + $0x28] sm:$0xff]
    %v85 = vld [vmem:[%s1 + $0x30] sm:$0xff]
    %v86 = vld [vmem:[%s1 + $0x38] sm:$0xff]
    %v87 = vld [vmem:[%s1 + $0x40] sm:$0xff]
    %v88 = vld [vmem:[%s1 + $0x48] sm:$0xff]
    %v89 = vld [vmem:[%s1 + $0x50] sm:$0xff]
    %v90 = vld [vmem:[%s1 + $0x58] sm:$0xff]
    %v91 = vld [vmem:[%s1 + $0x60] sm:$0xff]
    %v92 = vld [vmem:[%s1 + $0x68] sm:$0xff]
    %v93 = vld [vmem:[%s1 + $0x70] sm:$0xff]
    %v94 = vld [vmem:[%s1 + $0x78] sm:$0xff]
    %v95 = vld [vmem:[%s1 + $0x80] sm:$0xff]
    %v96 = vld [vmem:[%s1 + $0x88] sm:$0xff]
    %v97 = vld [vmem:[%s1 + $0x90] sm:$0xff]
    %v98 = vld [vmem:[%s1 + $0x98] sm:$0xff]
    %v99 = vld [vmem:[%s1 + $0xa0] sm:$0xff]
    %v100 = vld [vmem:[%s1 + $0xa8] sm:$0xff]
    %v101 = vld [vmem:[%s1 + $0xb0] sm:$0xff]
    %v102 = vld [vmem:[%s1 + $0xb8] sm:$0xff]
    %v103 = vld [vmem:[%s1 + $0xc0] sm:$0xff]
    %v104 = vld [vmem:[%s1 + $0xc8] sm:$0xff]
    %v105 = vld [vmem:[%s1 + $0xd0] sm:$0xff]
    %v106 = vld [vmem:[%s1 + $0xd8] sm:$0xff]
    %v107 = vld [vmem:[%s1 + $0xe0] sm:$0xff]
    %v108 = vld [vmem:[%s1 + $0xe8] sm:$0xff]
    %v109 = vld [vmem:[%s1 + $0xf0] sm:$0xff]
    %v110 = vld [vmem:[%s1 + $0xf8] sm:$0xff]
    %v111 = vld [vmem:[%s1 + $0x100] sm:$0xff]
    %v112 = vld [vmem:[%s1 + $0x108] sm:$0xff]
    %v113 = vld [vmem:[%s1 + $0x110] sm:$0xff]
    %v114 = vld [vmem:[%s1 + $0x118] sm:$0xff]
    %v115 = vld [vmem:[%s1 + $0x120] sm:$0xff]
    %v116 = vld [vmem:[%s1 + $0x128] sm:$0xff]
    %v117 = vld [vmem:[%s1 + $0x130] sm:$0xff]
    %v118 = vld [vmem:[%s1 + $0x138] sm:$0xff]
    %v119 = vld [vmem:[%s1 + $0x140] sm:$0xff]
    %v120 = vld [vmem:[%s1 + $0x148] sm:$0xff]
    %v121 = vld [vmem:[%s1 + $0x150] sm:$0xff]
    %v122 = vld [vmem:[%s1 + $0x158] sm:$0xff]
    %v123 = vld [vmem:[%s1 + $0x160] sm:$0xff]
    %v124 = vld [vmem:[%s1 + $0x168] sm:$0xff]
    %v125 = vld [vmem:[%s1 + $0x170] sm:$0xff]
    %v126 = vld [vmem:[%s1 + $0x178] sm:$0xff]
    %v127 = vld [vmem:[%s1 + $0x180] sm:$0xff]
    %v128 = vld [vmem:[%s1 + $0x188] sm:$0xff]
    %v129 = vld [vmem:[%s1 + $0x190] sm:$0xff]
    %v130 = vld [vmem:[%s1 + $0x198] sm:$0xff]
    %v131 = vld [vmem:[%s1 + $0x1a0] sm:$0xff]
    %v132 = vld [vmem:[%s1 + $0x1a8] sm:$0xff]
    %v133 = vld [vmem:[%s1 + $0x1b0] sm:$0xff]
    %v134 = vld [vmem:[%s1 + $0x1b8] sm:$0xff]
    %v135 = vld [vmem:[%s1 + $0x1c0] sm:$0xff]
    %v136 = vld [vmem:[%s1 + $0x1c8] sm:$0xff]
    %v137 = vld [vmem:[%s1 + $0x1d0] sm:$0xff]
    %v138 = vld [vmem:[%s1 + $0x1d8] sm:$0xff]
    %v139 = vld [vmem:[%s1 + $0x1e0] sm:$0xff]
    %v140 = vld [vmem:[%s1 + $0x1e8] sm:$0xff]
    %v141 = vld [vmem:[%s1 + $0x1f0] sm:$0xff]
    %v142 = vld [vmem:[%s1 + $0x1f8] sm:$0xff]
    %v143 = vld [vmem:[%s3] sm:$0xff]
    %v145 = vlaneseq
    %v146 = vshrl.u32 %v145, 7
    %v147 = vsub.s32 0, %v146
    %v148 = vrot.slane %v143, %v147
    %v149 = vlaneseq
    %v150 = vshrl.u32 %v149, 7
    %v151 = vsub.s32 1, %v150
    %v152 = vrot.slane %v143, %v151
    %v153 = vlaneseq
    %v154 = vshrl.u32 %v153, 7
    %v155 = vsub.s32 2, %v154
    %v156 = vrot.slane %v143, %v155
    %v157 = vlaneseq
    %v158 = vshrl.u32 %v157, 7
    %v159 = vsub.s32 3, %v158
    %v160 = vrot.slane %v143, %v159
    %v161 = vlaneseq
    %v162 = vshrl.u32 %v161, 7
    %v163 = vsub.s32 4, %v162
    %v164 = vrot.slane %v143, %v163
    %v165 = vlaneseq
    %v166 = vshrl.u32 %v165, 7
    %v167 = vsub.s32 5, %v166
    %v168 = vrot.slane %v143, %v167
    %v169 = vlaneseq
    %v170 = vshrl.u32 %v169, 7
    %v171 = vsub.s32 6, %v170
    %v172 = vrot.slane %v143, %v171
    %v173 = vlaneseq
    %v174 = vshrl.u32 %v173, 7
    %v175 = vsub.s32 7, %v174
    %v176 = vrot.slane %v143, %v175
    %vm185 = vcmask 523264
    %v187 = vsel %vm185, %v67, 0
    %v190 = vsel %vm185, %v68, 0
    %v193 = vsel %vm185, %v69, 0
    %v196 = vsel %vm185, %v70, 0
    %v199 = vsel %vm185, %v71, 0
    %v202 = vsel %vm185, %v72, 0
    %v205 = vsel %vm185, %v73, 0
    %v208 = vsel %vm185, %v74, 0
    %v211 = vsel %vm185, %v75, 0
    %v214 = vsel %vm185, %v76, 0
    %v217 = vsel %vm185, %v77, 0
    %v220 = vsel %vm185, %v78, 0
    %222 = vmatprep.subr.mxu0 %v80
    %223 = vmatpush1.msra.mxu0 %v79
    %224 = vmatprep.subr.mxu0 %v88
    %225 = vmatpush1.msra.mxu0 %v87
    %226 = vmatprep.subr.mxu0 %v96
    %227 = vmatpush1.msra.mxu0 %v95
    %228 = vmatprep.subr.mxu0 %v104
    %229 = vmatpush1.msra.mxu0 %v103
    %230 = vmatprep.subr.mxu0 %v112
    %231 = vmatpush1.msra.mxu0 %v111
    %232 = vmatprep.subr.mxu0 %v120
    %233 = vmatpush1.msra.mxu0 %v119
    %234 = vmatprep.subr.mxu0 %v128
    %235 = vmatpush1.msra.mxu0 %v127
    %236 = vmatprep.subr.mxu0 %v136
    %237 = vmatpush1.msra.mxu0 %v135
    %238 = vmatprep.subr.mxu0 0.0
    %239 = vmatpush1.msra.mxu0 0.0
    %240 = vmatprep.subr.mxu0 0.0
    %241 = vmatpush1.msra.mxu0 0.0
    %242 = vmatprep.subr.mxu0 0.0
    %243 = vmatpush1.msra.mxu0 0.0
    %244 = vmatprep.subr.mxu0 0.0
    %245 = vmatpush1.msra.mxu0 0.0
    %246 = vmatprep.subr.mxu0 0.0
    %247 = vmatpush1.msra.mxu0 0.0
    %248 = vmatprep.subr.mxu0 0.0
    %249 = vmatpush1.msra.mxu0 0.0
    %250 = vmatprep.subr.mxu0 0.0
    %251 = vmatpush1.msra.mxu0 0.0
    %252 = vmatprep.subr.mxu0 0.0
    %253 = vmatpush1.msra.mxu0 0.0
    %254 = vmatprep.subr.mxu0 0.0
    %255 = vmatpush1.msra.mxu0 0.0
    %256 = vmatprep.subr.mxu0 0.0
    %257 = vmatpush1.msra.mxu0 0.0
    %258 = vmatprep.subr.mxu0 0.0
    %259 = vmatpush1.msra.mxu0 0.0
    %260 = vmatprep.subr.mxu0 0.0
    %261 = vmatpush1.msra.mxu0 0.0
    %262 = vmatprep.subr.mxu0 0.0
    %263 = vmatpush1.msra.mxu0 0.0
    %264 = vmatprep.subr.mxu0 0.0
    %265 = vmatpush1.msra.mxu0 0.0
    %266 = vmatprep.subr.mxu0 0.0
    %267 = vmatpush1.msra.mxu0 0.0
    %268 = vmatprep.subr.mxu0 0.0
    %269 = vmatpush1.msra.mxu0 0.0
    %270 = vmatprep.subr.mxu0 0.0
    %271 = vmatpush1.msra.mxu0 0.0
    %272 = vmatprep.subr.mxu0 0.0
    %273 = vmatpush1.msra.mxu0 0.0
    %274 = vmatprep.subr.mxu0 0.0
    %275 = vmatpush1.msra.mxu0 0.0
    %276 = vmatprep.subr.mxu0 0.0
    %277 = vmatpush1.msra.mxu0 0.0
    %278 = vmatprep.subr.mxu0 0.0
    %279 = vmatpush1.msra.mxu0 0.0
    %280 = vmatprep.subr.mxu0 0.0
    %281 = vmatpush1.msra.mxu0 0.0
    %282 = vmatprep.subr.mxu0 0.0
    %283 = vmatpush1.msra.mxu0 0.0
    %284 = vmatprep.subr.mxu0 0.0
    %285 = vmatpush1.msra.mxu0 0.0
    %286 = vmatprep.mubr.f32.mxu0 0.0
    %287 = vmatmul.mubr.f32.gmra.mrb[0].mxu0 %v187
    %v288 = vpop.f32.mrb[0].mxu0
    %v289 = vadd.f32 %v148, %v288
    %v290 = vpop.f32.mrb[0].mxu0
    %v291 = vadd.f32 %v152, %v290
    %292 = vmatprep.mubr.f32.mxu0 0.0
    %293 = vmatmul.mubr.f32.gmra.mrb[0].mxu0 %v190
    %v294 = vpop.f32.mrb[0].mxu0
    %v295 = vadd.f32 %v148, %v294
    %v296 = vpop.f32.mrb[0].mxu0
    %v297 = vadd.f32 %v152, %v296
    %298 = vmatprep.mubr.f32.mxu0 0.0
    %299 = vmatmul.mubr.f32.gmra.mrb[0].mxu0 %v193
    %v300 = vpop.f32.mrb[0].mxu0
    %v301 = vadd.f32 %v148, %v300
    %v302 = vpop.f32.mrb[0].mxu0
    %v303 = vadd.f32 %v152, %v302
    %304 = vmatprep.mubr.f32.mxu0 0.0
    %305 = vmatmul.mubr.f32.gmra.mrb[0].mxu0 %v196
    %v306 = vpop.f32.mrb[0].mxu0
    %v307 = vadd.f32 %v148, %v306
    %v308 = vpop.f32.mrb[0].mxu0
    %v309 = vadd.f32 %v152, %v308
    %310 = vmatprep.mubr.f32.mxu0 0.0
    %311 = vmatmul.mubr.f32.gmra.mrb[0].mxu0 %v199
    %v312 = vpop.f32.mrb[0].mxu0
    %v313 = vadd.f32 %v148, %v312
    %v314 = vpop.f32.mrb[0].mxu0
    %v315 = vadd.f32 %v152, %v314
    %316 = vmatprep.mubr.f32.mxu0 0.0
    %317 = vmatmul.mubr.f32.gmra.mrb[0].mxu0 %v202
    %v318 = vpop.f32.mrb[0].mxu0
    %v319 = vadd.f32 %v148, %v318
    %v320 = vpop.f32.mrb[0].mxu0
    %v321 = vadd.f32 %v152, %v320
    %322 = vmatprep.mubr.f32.mxu0 0.0
    %323 = vmatmul.mubr.f32.gmra.mrb[0].mxu0 %v205
    %v324 = vpop.f32.mrb[0].mxu0
    %v325 = vadd.f32 %v148, %v324
    %v326 = vpop.f32.mrb[0].mxu0
    %v327 = vadd.f32 %v152, %v326
    %328 = vmatprep.mubr.f32.mxu0 0.0
    %329 = vmatmul.mubr.f32.gmra.mrb[0].mxu0 %v208
    %v330 = vpop.f32.mrb[0].mxu0
    %v331 = vadd.f32 %v148, %v330
    %v332 = vpop.f32.mrb[0].mxu0
    %v333 = vadd.f32 %v152, %v332
    %334 = vmatprep.mubr.f32.mxu0 0.0
    %335 = vmatmul.mubr.f32.gmra.mrb[0].mxu0 %v211
    %v336 = vpop.f32.mrb[0].mxu0
    %v337 = vadd.f32 %v148, %v336
    %v338 = vpop.f32.mrb[0].mxu0
    %v339 = vadd.f32 %v152, %v338
    %340 = vmatprep.mubr.f32.mxu0 0.0
    %341 = vmatmul.mubr.f32.gmra.mrb[0].mxu0 %v214
    %v342 = vpop.f32.mrb[0].mxu0
    %v343 = vadd.f32 %v148, %v342
    %v344 = vpop.f32.mrb[0].mxu0
    %v345 = vadd.f32 %v152, %v344
    %346 = vmatprep.mubr.f32.mxu0 0.0
    %347 = vmatmul.mubr.f32.gmra.mrb[0].mxu0 %v217
    %v348 = vpop.f32.mrb[0].mxu0
    %v349 = vadd.f32 %v148, %v348
    %v350 = vpop.f32.mrb[0].mxu0
    %v351 = vadd.f32 %v152, %v350
    %352 = vmatprep.mubr.f32.mxu0 0.0
    %353 = vmatmul.mubr.f32.gmra.mrb[0].mxu0 %v220
    %v354 = vpop.f32.mrb[0].mxu0
    %v355 = vadd.f32 %v148, %v354
    %v356 = vpop.f32.mrb[0].mxu0
    %v357 = vadd.f32 %v152, %v356
    %358 = vdwg.mxu0
    %359 = vmatprep.subr.mxu0 %v82
    %360 = vmatpush1.msra.mxu0 %v81
    %361 = vmatprep.subr.mxu0 %v90
    %362 = vmatpush1.msra.mxu0 %v89
    %363 = vmatprep.subr.mxu0 %v98
    %364 = vmatpush1.msra.mxu0 %v97
    %365 = vmatprep.subr.mxu0 %v106
    %366 = vmatpush1.msra.mxu0 %v105
    %367 = vmatprep.subr.mxu0 %v114
    %368 = vmatpush1.msra.mxu0 %v113
    %369 = vmatprep.subr.mxu0 %v122
    %370 = vmatpush1.msra.mxu0 %v121
    %371 = vmatprep.subr.mxu0 %v130
    %372 = vmatpush1.msra.mxu0 %v129
    %373 = vmatprep.subr.mxu0 %v138
    %374 = vmatpush1.msra.mxu0 %v137
    %375 = vmatprep.subr.mxu0 0.0
    %376 = vmatpush1.msra.mxu0 0.0
    %377 = vmatprep.subr.mxu0 0.0
    %378 = vmatpush1.msra.mxu0 0.0
    %379 = vmatprep.subr.mxu0 0.0
    %380 = vmatpush1.msra.mxu0 0.0
    %381 = vmatprep.subr.mxu0 0.0
    %382 = vmatpush1.msra.mxu0 0.0
    %383 = vmatprep.subr.mxu0 0.0
    %384 = vmatpush1.msra.mxu0 0.0
    %385 = vmatprep.subr.mxu0 0.0
    %386 = vmatpush1.msra.mxu0 0.0
    %387 = vmatprep.subr.mxu0 0.0
    %388 = vmatpush1.msra.mxu0 0.0
    %389 = vmatprep.subr.mxu0 0.0
    %390 = vmatpush1.msra.mxu0 0.0
    %391 = vmatprep.subr.mxu0 0.0
    %392 = vmatpush1.msra.mxu0 0.0
    %393 = vmatprep.subr.mxu0 0.0
    %394 = vmatpush1.msra.mxu0 0.0
    %395 = vmatprep.subr.mxu0 0.0
    %396 = vmatpush1.msra.mxu0 0.0
    %397 = vmatprep.subr.mxu0 0.0
    %398 = vmatpush1.msra.mxu0 0.0
    %399 = vmatprep.subr.mxu0 0.0
    %400 = vmatpush1.msra.mxu0 0.0
    %401 = vmatprep.subr.mxu0 0.0
    %402 = vmatpush1.msra.mxu0 0.0
    %403 = vmatprep.subr.mxu0 0.0
    %404 = vmatpush1.msra.mxu0 0.0
    %405 = vmatprep.subr.mxu0 0.0
    %406 = vmatpush1.msra.mxu0 0.0
    %407 = vmatprep.subr.mxu0 0.0
    %408 = vmatpush1.msra.mxu0 0.0
    %409 = vmatprep.subr.mxu0 0.0
    %410 = vmatpush1.msra.mxu0 0.0
    %411 = vmatprep.subr.mxu0 0.0
    %412 = vmatpush1.msra.mxu0 0.0
    %413 = vmatprep.subr.mxu0 0.0
    %414 = vmatpush1.msra.mxu0 0.0
    %415 = vmatprep.subr.mxu0 0.0
    %416 = vmatpush1.msra.mxu0 0.0
    %417 = vmatprep.subr.mxu0 0.0
    %418 = vmatpush1.msra.mxu0 0.0
    %419 = vmatprep.subr.mxu0 0.0
    %420 = vmatpush1.msra.mxu0 0.0
    %421 = vmatprep.subr.mxu0 0.0
    %422 = vmatpush1.msra.mxu0 0.0
    %423 = vmatprep.mubr.f32.mxu0 0.0
    %424 = vmatmul.mubr.f32.gmra.mrb[0].mxu0 %v187
    %v425 = vpop.f32.mrb[0].mxu0
    %v426 = vadd.f32 %v156, %v425
    %v427 = vpop.f32.mrb[0].mxu0
    %v428 = vadd.f32 %v160, %v427
    %429 = vmatprep.mubr.f32.mxu0 0.0
    %430 = vmatmul.mubr.f32.gmra.mrb[0].mxu0 %v190
    %v431 = vpop.f32.mrb[0].mxu0
    %v432 = vadd.f32 %v156, %v431
    %v433 = vpop.f32.mrb[0].mxu0
    %v434 = vadd.f32 %v160, %v433
    %435 = vmatprep.mubr.f32.mxu0 0.0
    %436 = vmatmul.mubr.f32.gmra.mrb[0].mxu0 %v193
    %v437 = vpop.f32.mrb[0].mxu0
    %v438 = vadd.f32 %v156, %v437
    %v439 = vpop.f32.mrb[0].mxu0
    %v440 = vadd.f32 %v160, %v439
    %441 = vmatprep.mubr.f32.mxu0 0.0
    %442 = vmatmul.mubr.f32.gmra.mrb[0].mxu0 %v196
    %v443 = vpop.f32.mrb[0].mxu0
    %v444 = vadd.f32 %v156, %v443
    %v445 = vpop.f32.mrb[0].mxu0
    %v446 = vadd.f32 %v160, %v445
    %447 = vmatprep.mubr.f32.mxu0 0.0
    %448 = vmatmul.mubr.f32.gmra.mrb[0].mxu0 %v199
    %v449 = vpop.f32.mrb[0].mxu0
    %v450 = vadd.f32 %v156, %v449
    %v451 = vpop.f32.mrb[0].mxu0
    %v452 = vadd.f32 %v160, %v451
    %453 = vmatprep.mubr.f32.mxu0 0.0
    %454 = vmatmul.mubr.f32.gmra.mrb[0].mxu0 %v202
    %v455 = vpop.f32.mrb[0].mxu0
    %v456 = vadd.f32 %v156, %v455
    %v457 = vpop.f32.mrb[0].mxu0
    %v458 = vadd.f32 %v160, %v457
    %459 = vmatprep.mubr.f32.mxu0 0.0
    %460 = vmatmul.mubr.f32.gmra.mrb[0].mxu0 %v205
    %v461 = vpop.f32.mrb[0].mxu0
    %v462 = vadd.f32 %v156, %v461
    %v463 = vpop.f32.mrb[0].mxu0
    %v464 = vadd.f32 %v160, %v463
    %465 = vmatprep.mubr.f32.mxu0 0.0
    %466 = vmatmul.mubr.f32.gmra.mrb[0].mxu0 %v208
    %v467 = vpop.f32.mrb[0].mxu0
    %v468 = vadd.f32 %v156, %v467
    %v469 = vpop.f32.mrb[0].mxu0
    %v470 = vadd.f32 %v160, %v469
    %471 = vmatprep.mubr.f32.mxu0 0.0
    %472 = vmatmul.mubr.f32.gmra.mrb[0].mxu0 %v211
    %v473 = vpop.f32.mrb[0].mxu0
    %v474 = vadd.f32 %v156, %v473
    %v475 = vpop.f32.mrb[0].mxu0
    %v476 = vadd.f32 %v160, %v475
    %477 = vmatprep.mubr.f32.mxu0 0.0
    %478 = vmatmul.mubr.f32.gmra.mrb[0].mxu0 %v214
    %v479 = vpop.f32.mrb[0].mxu0
    %v480 = vadd.f32 %v156, %v479
    %v481 = vpop.f32.mrb[0].mxu0
    %v482 = vadd.f32 %v160, %v481
    %483 = vmatprep.mubr.f32.mxu0 0.0
    %484 = vmatmul.mubr.f32.gmra.mrb[0].mxu0 %v217
    %v485 = vpop.f32.mrb[0].mxu0
    %v486 = vadd.f32 %v156, %v485
    %v487 = vpop.f32.mrb[0].mxu0
    %v488 = vadd.f32 %v160, %v487
    %489 = vmatprep.mubr.f32.mxu0 0.0
    %490 = vmatmul.mubr.f32.gmra.mrb[0].mxu0 %v220
    %v491 = vpop.f32.mrb[0].mxu0
    %v492 = vadd.f32 %v156, %v491
    %v493 = vpop.f32.mrb[0].mxu0
    %v494 = vadd.f32 %v160, %v493
    %495 = vdwg.mxu0
    %496 = vmatprep.subr.mxu0 %v84
    %497 = vmatpush1.msra.mxu0 %v83
    %498 = vmatprep.subr.mxu0 %v92
    %499 = vmatpush1.msra.mxu0 %v91
    %500 = vmatprep.subr.mxu0 %v100
    %501 = vmatpush1.msra.mxu0 %v99
    %502 = vmatprep.subr.mxu0 %v108
    %503 = vmatpush1.msra.mxu0 %v107
    %504 = vmatprep.subr.mxu0 %v116
    %505 = vmatpush1.msra.mxu0 %v115
    %506 = vmatprep.subr.mxu0 %v124
    %507 = vmatpush1.msra.mxu0 %v123
    %508 = vmatprep.subr.mxu0 %v132
    %509 = vmatpush1.msra.mxu0 %v131
    %510 = vmatprep.subr.mxu0 %v140
    %511 = vmatpush1.msra.mxu0 %v139
    %512 = vmatprep.subr.mxu0 0.0
    %513 = vmatpush1.msra.mxu0 0.0
    %514 = vmatprep.subr.mxu0 0.0
    %515 = vmatpush1.msra.mxu0 0.0
    %516 = vmatprep.subr.mxu0 0.0
    %517 = vmatpush1.msra.mxu0 0.0
    %518 = vmatprep.subr.mxu0 0.0
    %519 = vmatpush1.msra.mxu0 0.0
    %520 = vmatprep.subr.mxu0 0.0
    %521 = vmatpush1.msra.mxu0 0.0
    %522 = vmatprep.subr.mxu0 0.0
    %523 = vmatpush1.msra.mxu0 0.0
    %524 = vmatprep.subr.mxu0 0.0
    %525 = vmatpush1.msra.mxu0 0.0
    %526 = vmatprep.subr.mxu0 0.0
    %527 = vmatpush1.msra.mxu0 0.0
    %528 = vmatprep.subr.mxu0 0.0
    %529 = vmatpush1.msra.mxu0 0.0
    %530 = vmatprep.subr.mxu0 0.0
    %531 = vmatpush1.msra.mxu0 0.0
    %532 = vmatprep.subr.mxu0 0.0
    %533 = vmatpush1.msra.mxu0 0.0
    %534 = vmatprep.subr.mxu0 0.0
    %535 = vmatpush1.msra.mxu0 0.0
    %536 = vmatprep.subr.mxu0 0.0
    %537 = vmatpush1.msra.mxu0 0.0
    %538 = vmatprep.subr.mxu0 0.0
    %539 = vmatpush1.msra.mxu0 0.0
    %540 = vmatprep.subr.mxu0 0.0
    %541 = vmatpush1.msra.mxu0 0.0
    %542 = vmatprep.subr.mxu0 0.0
    %543 = vmatpush1.msra.mxu0 0.0
    %544 = vmatprep.subr.mxu0 0.0
    %545 = vmatpush1.msra.mxu0 0.0
    %546 = vmatprep.subr.mxu0 0.0
    %547 = vmatpush1.msra.mxu0 0.0
    %548 = vmatprep.subr.mxu0 0.0
    %549 = vmatpush1.msra.mxu0 0.0
    %550 = vmatprep.subr.mxu0 0.0
    %551 = vmatpush1.msra.mxu0 0.0
    %552 = vmatprep.subr.mxu0 0.0
    %553 = vmatpush1.msra.mxu0 0.0
    %554 = vmatprep.subr.mxu0 0.0
    %555 = vmatpush1.msra.mxu0 0.0
    %556 = vmatprep.subr.mxu0 0.0
    %557 = vmatpush1.msra.mxu0 0.0
    %558 = vmatprep.subr.mxu0 0.0
    %559 = vmatpush1.msra.mxu0 0.0
    %560 = vmatprep.mubr.f32.mxu0 0.0
    %561 = vmatmul.mubr.f32.gmra.mrb[0].mxu0 %v187
    %v562 = vpop.f32.mrb[0].mxu0
    %v563 = vadd.f32 %v164, %v562
    %v564 = vpop.f32.mrb[0].mxu0
    %v565 = vadd.f32 %v168, %v564
    %566 = vmatprep.mubr.f32.mxu0 0.0
    %567 = vmatmul.mubr.f32.gmra.mrb[0].mxu0 %v190
    %v568 = vpop.f32.mrb[0].mxu0
    %v569 = vadd.f32 %v164, %v568
    %v570 = vpop.f32.mrb[0].mxu0
    %v571 = vadd.f32 %v168, %v570
    %572 = vmatprep.mubr.f32.mxu0 0.0
    %573 = vmatmul.mubr.f32.gmra.mrb[0].mxu0 %v193
    %v574 = vpop.f32.mrb[0].mxu0
    %v575 = vadd.f32 %v164, %v574
    %v576 = vpop.f32.mrb[0].mxu0
    %v577 = vadd.f32 %v168, %v576
    %578 = vmatprep.mubr.f32.mxu0 0.0
    %579 = vmatmul.mubr.f32.gmra.mrb[0].mxu0 %v196
    %v580 = vpop.f32.mrb[0].mxu0
    %v581 = vadd.f32 %v164, %v580
    %v582 = vpop.f32.mrb[0].mxu0
    %v583 = vadd.f32 %v168, %v582
    %584 = vmatprep.mubr.f32.mxu0 0.0
    %585 = vmatmul.mubr.f32.gmra.mrb[0].mxu0 %v199
    %v586 = vpop.f32.mrb[0].mxu0
    %v587 = vadd.f32 %v164, %v586
    %v588 = vpop.f32.mrb[0].mxu0
    %v589 = vadd.f32 %v168, %v588
    %590 = vmatprep.mubr.f32.mxu0 0.0
    %591 = vmatmul.mubr.f32.gmra.mrb[0].mxu0 %v202
    %v592 = vpop.f32.mrb[0].mxu0
    %v593 = vadd.f32 %v164, %v592
    %v594 = vpop.f32.mrb[0].mxu0
    %v595 = vadd.f32 %v168, %v594
    %596 = vmatprep.mubr.f32.mxu0 0.0
    %597 = vmatmul.mubr.f32.gmra.mrb[0].mxu0 %v205
    %v598 = vpop.f32.mrb[0].mxu0
    %v599 = vadd.f32 %v164, %v598
    %v600 = vpop.f32.mrb[0].mxu0
    %v601 = vadd.f32 %v168, %v600
    %602 = vmatprep.mubr.f32.mxu0 0.0
    %603 = vmatmul.mubr.f32.gmra.mrb[0].mxu0 %v208
    %v604 = vpop.f32.mrb[0].mxu0
    %v605 = vadd.f32 %v164, %v604
    %v606 = vpop.f32.mrb[0].mxu0
    %v607 = vadd.f32 %v168, %v606
    %608 = vmatprep.mubr.f32.mxu0 0.0
    %609 = vmatmul.mubr.f32.gmra.mrb[0].mxu0 %v211
    %v610 = vpop.f32.mrb[0].mxu0
    %v611 = vadd.f32 %v164, %v610
    %v612 = vpop.f32.mrb[0].mxu0
    %v613 = vadd.f32 %v168, %v612
    %614 = vmatprep.mubr.f32.mxu0 0.0
    %615 = vmatmul.mubr.f32.gmra.mrb[0].mxu0 %v214
    %v616 = vpop.f32.mrb[0].mxu0
    %v617 = vadd.f32 %v164, %v616
    %v618 = vpop.f32.mrb[0].mxu0
    %v619 = vadd.f32 %v168, %v618
    %620 = vmatprep.mubr.f32.mxu0 0.0
    %621 = vmatmul.mubr.f32.gmra.mrb[0].mxu0 %v217
    %v622 = vpop.f32.mrb[0].mxu0
    %v623 = vadd.f32 %v164, %v622
    %v624 = vpop.f32.mrb[0].mxu0
    %v625 = vadd.f32 %v168, %v624
    %626 = vmatprep.mubr.f32.mxu0 0.0
    %627 = vmatmul.mubr.f32.gmra.mrb[0].mxu0 %v220
    %v628 = vpop.f32.mrb[0].mxu0
    %v629 = vadd.f32 %v164, %v628
    %v630 = vpop.f32.mrb[0].mxu0
    %v631 = vadd.f32 %v168, %v630
    %632 = vdwg.mxu0
    %633 = vmatprep.subr.mxu0 %v86
    %634 = vmatpush1.msra.mxu0 %v85
    %635 = vmatprep.subr.mxu0 %v94
    %636 = vmatpush1.msra.mxu0 %v93
    %637 = vmatprep.subr.mxu0 %v102
    %638 = vmatpush1.msra.mxu0 %v101
    %639 = vmatprep.subr.mxu0 %v110
    %640 = vmatpush1.msra.mxu0 %v109
    %641 = vmatprep.subr.mxu0 %v118
    %642 = vmatpush1.msra.mxu0 %v117
    %643 = vmatprep.subr.mxu0 %v126
    %644 = vmatpush1.msra.mxu0 %v125
    %645 = vmatprep.subr.mxu0 %v134
    %646 = vmatpush1.msra.mxu0 %v133
    %647 = vmatprep.subr.mxu0 %v142
    %648 = vmatpush1.msra.mxu0 %v141
    %649 = vmatprep.subr.mxu0 0.0
    %650 = vmatpush1.msra.mxu0 0.0
    %651 = vmatprep.subr.mxu0 0.0
    %652 = vmatpush1.msra.mxu0 0.0
    %653 = vmatprep.subr.mxu0 0.0
    %654 = vmatpush1.msra.mxu0 0.0
    %655 = vmatprep.subr.mxu0 0.0
    %656 = vmatpush1.msra.mxu0 0.0
    %657 = vmatprep.subr.mxu0 0.0
    %658 = vmatpush1.msra.mxu0 0.0
    %659 = vmatprep.subr.mxu0 0.0
    %660 = vmatpush1.msra.mxu0 0.0
    %661 = vmatprep.subr.mxu0 0.0
    %662 = vmatpush1.msra.mxu0 0.0
    %663 = vmatprep.subr.mxu0 0.0
    %664 = vmatpush1.msra.mxu0 0.0
    %665 = vmatprep.subr.mxu0 0.0
    %666 = vmatpush1.msra.mxu0 0.0
    %667 = vmatprep.subr.mxu0 0.0
    %668 = vmatpush1.msra.mxu0 0.0
    %669 = vmatprep.subr.mxu0 0.0
    %670 = vmatpush1.msra.mxu0 0.0
    %671 = vmatprep.subr.mxu0 0.0
    %672 = vmatpush1.msra.mxu0 0.0
    %673 = vmatprep.subr.mxu0 0.0
    %674 = vmatpush1.msra.mxu0 0.0
    %675 = vmatprep.subr.mxu0 0.0
    %676 = vmatpush1.msra.mxu0 0.0
    %677 = vmatprep.subr.mxu0 0.0
    %678 = vmatpush1.msra.mxu0 0.0
    %679 = vmatprep.subr.mxu0 0.0
    %680 = vmatpush1.msra.mxu0 0.0
    %681 = vmatprep.subr.mxu0 0.0
    %682 = vmatpush1.msra.mxu0 0.0
    %683 = vmatprep.subr.mxu0 0.0
    %684 = vmatpush1.msra.mxu0 0.0
    %685 = vmatprep.subr.mxu0 0.0
    %686 = vmatpush1.msra.mxu0 0.0
    %687 = vmatprep.subr.mxu0 0.0
    %688 = vmatpush1.msra.mxu0 0.0
    %689 = vmatprep.subr.mxu0 0.0
    %690 = vmatpush1.msra.mxu0 0.0
    %691 = vmatprep.subr.mxu0 0.0
    %692 = vmatpush1.msra.mxu0 0.0
    %693 = vmatprep.subr.mxu0 0.0
    %694 = vmatpush1.msra.mxu0 0.0
    %695 = vmatprep.subr.mxu0 0.0
    %696 = vmatpush1.msra.mxu0 0.0
    %697 = vmatprep.mubr.f32.mxu0 0.0
    %698 = vmatmul.mubr.f32.gmra.mrb[0].mxu0 %v187
    %v699 = vpop.f32.mrb[0].mxu0
    %v700 = vadd.f32 %v172, %v699
    %v701 = vpop.f32.mrb[0].mxu0
    %v702 = vadd.f32 %v176, %v701
    %703 = vmatprep.mubr.f32.mxu0 0.0
    %704 = vmatmul.mubr.f32.gmra.mrb[0].mxu0 %v190
    %v705 = vpop.f32.mrb[0].mxu0
    %v706 = vadd.f32 %v172, %v705
    %v707 = vpop.f32.mrb[0].mxu0
    %v708 = vadd.f32 %v176, %v707
    %709 = vmatprep.mubr.f32.mxu0 0.0
    %710 = vmatmul.mubr.f32.gmra.mrb[0].mxu0 %v193
    %v711 = vpop.f32.mrb[0].mxu0
    %v712 = vadd.f32 %v172, %v711
    %v713 = vpop.f32.mrb[0].mxu0
    %v714 = vadd.f32 %v176, %v713
    %715 = vmatprep.mubr.f32.mxu0 0.0
    %716 = vmatmul.mubr.f32.gmra.mrb[0].mxu0 %v196
    %v717 = vpop.f32.mrb[0].mxu0
    %v718 = vadd.f32 %v172, %v717
    %v719 = vpop.f32.mrb[0].mxu0
    %v720 = vadd.f32 %v176, %v719
    %721 = vmatprep.mubr.f32.mxu0 0.0
    %722 = vmatmul.mubr.f32.gmra.mrb[0].mxu0 %v199
    %v723 = vpop.f32.mrb[0].mxu0
    %v724 = vadd.f32 %v172, %v723
    %v725 = vpop.f32.mrb[0].mxu0
    %v726 = vadd.f32 %v176, %v725
    %727 = vmatprep.mubr.f32.mxu0 0.0
    %728 = vmatmul.mubr.f32.gmra.mrb[0].mxu0 %v202
    %v729 = vpop.f32.mrb[0].mxu0
    %v730 = vadd.f32 %v172, %v729
    %v731 = vpop.f32.mrb[0].mxu0
    %v732 = vadd.f32 %v176, %v731
    %733 = vmatprep.mubr.f32.mxu0 0.0
    %734 = vmatmul.mubr.f32.gmra.mrb[0].mxu0 %v205
    %v735 = vpop.f32.mrb[0].mxu0
    %v736 = vadd.f32 %v172, %v735
    %v737 = vpop.f32.mrb[0].mxu0
    %v738 = vadd.f32 %v176, %v737
    %739 = vmatprep.mubr.f32.mxu0 0.0
    %740 = vmatmul.mubr.f32.gmra.mrb[0].mxu0 %v208
    %v741 = vpop.f32.mrb[0].mxu0
    %v742 = vadd.f32 %v172, %v741
    %v743 = vpop.f32.mrb[0].mxu0
    %v744 = vadd.f32 %v176, %v743
    %745 = vmatprep.mubr.f32.mxu0 0.0
    %746 = vmatmul.mubr.f32.gmra.mrb[0].mxu0 %v211
    %v747 = vpop.f32.mrb[0].mxu0
    %v748 = vadd.f32 %v172, %v747
    %v749 = vpop.f32.mrb[0].mxu0
    %v750 = vadd.f32 %v176, %v749
    %751 = vmatprep.mubr.f32.mxu0 0.0
    %752 = vmatmul.mubr.f32.gmra.mrb[0].mxu0 %v214
    %v753 = vpop.f32.mrb[0].mxu0
    %v754 = vadd.f32 %v172, %v753
    %v755 = vpop.f32.mrb[0].mxu0
    %v756 = vadd.f32 %v176, %v755
    %757 = vmatprep.mubr.f32.mxu0 0.0
    %758 = vmatmul.mubr.f32.gmra.mrb[0].mxu0 %v217
    %v759 = vpop.f32.mrb[0].mxu0
    %v760 = vadd.f32 %v172, %v759
    %v761 = vpop.f32.mrb[0].mxu0
    %v762 = vadd.f32 %v176, %v761
    %763 = vmatprep.mubr.f32.mxu0 0.0
    %764 = vmatmul.mubr.f32.gmra.mrb[0].mxu0 %v220
    %v765 = vpop.f32.mrb[0].mxu0
    %v766 = vadd.f32 %v172, %v765
    %v767 = vpop.f32.mrb[0].mxu0
    %v768 = vadd.f32 %v176, %v767
    %769 = vdwg.mxu0
    %770 = vst [vmem:[#allocation2] sm:$0xff] %v289
    %771 = vst [vmem:[#allocation2 + $0x8] sm:$0xff] %v291
    %772 = vst [vmem:[#allocation2 + $0x10] sm:$0xff] %v426
    %773 = vst [vmem:[#allocation2 + $0x18] sm:$0xff] %v428
    %774 = vst [vmem:[#allocation2 + $0x20] sm:$0xff] %v563
    %775 = vst [vmem:[#allocation2 + $0x28] sm:$0xff] %v565
    %776 = vst [vmem:[#allocation2 + $0x30] sm:$0xff] %v700
    %777 = vst [vmem:[#allocation2 + $0x38] sm:$0xff] %v702
    %778 = vst [vmem:[#allocation2 + $0x40] sm:$0xff] %v295
    %779 = vst [vmem:[#allocation2 + $0x48] sm:$0xff] %v297
    %780 = vst [vmem:[#allocation2 + $0x50] sm:$0xff] %v432
    %781 = vst [vmem:[#allocation2 + $0x58] sm:$0xff] %v434
    %782 = vst [vmem:[#allocation2 + $0x60] sm:$0xff] %v569
    %783 = vst [vmem:[#allocation2 + $0x68] sm:$0xff] %v571
    %784 = vst [vmem:[#allocation2 + $0x70] sm:$0xff] %v706
    %785 = vst [vmem:[#allocation2 + $0x78] sm:$0xff] %v708
    %786 = vst [vmem:[#allocation2 + $0x80] sm:$0xff] %v301
    %787 = vst [vmem:[#allocation2 + $0x88] sm:$0xff] %v303
    %788 = vst [vmem:[#allocation2 + $0x90] sm:$0xff] %v438
    %789 = vst [vmem:[#allocation2 + $0x98] sm:$0xff] %v440
    %790 = vst [vmem:[#allocation2 + $0xa0] sm:$0xff] %v575
    %791 = vst [vmem:[#allocation2 + $0xa8] sm:$0xff] %v577
    %792 = vst [vmem:[#allocation2 + $0xb0] sm:$0xff] %v712
    %793 = vst [vmem:[#allocation2 + $0xb8] sm:$0xff] %v714
    %794 = vst [vmem:[#allocation2 + $0xc0] sm:$0xff] %v307
    %795 = vst [vmem:[#allocation2 + $0xc8] sm:$0xff] %v309
    %796 = vst [vmem:[#allocation2 + $0xd0] sm:$0xff] %v444
    %797 = vst [vmem:[#allocation2 + $0xd8] sm:$0xff] %v446
    %798 = vst [vmem:[#allocation2 + $0xe0] sm:$0xff] %v581
    %799 = vst [vmem:[#allocation2 + $0xe8] sm:$0xff] %v583
    %800 = vst [vmem:[#allocation2 + $0xf0] sm:$0xff] %v718
    %801 = vst [vmem:[#allocation2 + $0xf8] sm:$0xff] %v720
    %802 = vst [vmem:[#allocation2 + $0x100] sm:$0xff] %v313
    %803 = vst [vmem:[#allocation2 + $0x108] sm:$0xff] %v315
    %804 = vst [vmem:[#allocation2 + $0x110] sm:$0xff] %v450
    %805 = vst [vmem:[#allocation2 + $0x118] sm:$0xff] %v452
    %806 = vst [vmem:[#allocation2 + $0x120] sm:$0xff] %v587
    %807 = vst [vmem:[#allocation2 + $0x128] sm:$0xff] %v589
    %808 = vst [vmem:[#allocation2 + $0x130] sm:$0xff] %v724
    %809 = vst [vmem:[#allocation2 + $0x138] sm:$0xff] %v726
    %810 = vst [vmem:[#allocation2 + $0x140] sm:$0xff] %v319
    %811 = vst [vmem:[#allocation2 + $0x148] sm:$0xff] %v321
    %812 = vst [vmem:[#allocation2 + $0x150] sm:$0xff] %v456
    %813 = vst [vmem:[#allocation2 + $0x158] sm:$0xff] %v458
    %814 = vst [vmem:[#allocation2 + $0x160] sm:$0xff] %v593
    %815 = vst [vmem:[#allocation2 + $0x168] sm:$0xff] %v595
    %816 = vst [vmem:[#allocation2 + $0x170] sm:$0xff] %v730
    %817 = vst [vmem:[#allocation2 + $0x178] sm:$0xff] %v732
    %818 = vst [vmem:[#allocation2 + $0x180] sm:$0xff] %v325
    %819 = vst [vmem:[#allocation2 + $0x188] sm:$0xff] %v327
    %820 = vst [vmem:[#allocation2 + $0x190] sm:$0xff] %v462
    %821 = vst [vmem:[#allocation2 + $0x198] sm:$0xff] %v464
    %822 = vst [vmem:[#allocation2 + $0x1a0] sm:$0xff] %v599
    %823 = vst [vmem:[#allocation2 + $0x1a8] sm:$0xff] %v601
    %824 = vst [vmem:[#allocation2 + $0x1b0] sm:$0xff] %v736
    %825 = vst [vmem:[#allocation2 + $0x1b8] sm:$0xff] %v738
    %826 = vst [vmem:[#allocation2 + $0x1c0] sm:$0xff] %v331
    %827 = vst [vmem:[#allocation2 + $0x1c8] sm:$0xff] %v333
    %828 = vst [vmem:[#allocation2 + $0x1d0] sm:$0xff] %v468
    %829 = vst [vmem:[#allocation2 + $0x1d8] sm:$0xff] %v470
    %830 = vst [vmem:[#allocation2 + $0x1e0] sm:$0xff] %v605
    %831 = vst [vmem:[#allocation2 + $0x1e8] sm:$0xff] %v607
    %832 = vst [vmem:[#allocation2 + $0x1f0] sm:$0xff] %v742
    %833 = vst [vmem:[#allocation2 + $0x1f8] sm:$0xff] %v744
    %834 = vst [vmem:[#allocation2 + $0x200] sm:$0xff] %v337
    %835 = vst [vmem:[#allocation2 + $0x208] sm:$0xff] %v339
    %836 = vst [vmem:[#allocation2 + $0x210] sm:$0xff] %v474
    %837 = vst [vmem:[#allocation2 + $0x218] sm:$0xff] %v476
    %838 = vst [vmem:[#allocation2 + $0x220] sm:$0xff] %v611
    %839 = vst [vmem:[#allocation2 + $0x228] sm:$0xff] %v613
    %840 = vst [vmem:[#allocation2 + $0x230] sm:$0xff] %v748
    %841 = vst [vmem:[#allocation2 + $0x238] sm:$0xff] %v750
    %842 = vst [vmem:[#allocation2 + $0x240] sm:$0xff] %v343
    %843 = vst [vmem:[#allocation2 + $0x248] sm:$0xff] %v345
    %844 = vst [vmem:[#allocation2 + $0x250] sm:$0xff] %v480
    %845 = vst [vmem:[#allocation2 + $0x258] sm:$0xff] %v482
    %846 = vst [vmem:[#allocation2 + $0x260] sm:$0xff] %v617
    %847 = vst [vmem:[#allocation2 + $0x268] sm:$0xff] %v619
    %848 = vst [vmem:[#allocation2 + $0x270] sm:$0xff] %v754
    %849 = vst [vmem:[#allocation2 + $0x278] sm:$0xff] %v756
    %850 = vst [vmem:[#allocation2 + $0x280] sm:$0xff] %v349
    %851 = vst [vmem:[#allocation2 + $0x288] sm:$0xff] %v351
    %852 = vst [vmem:[#allocation2 + $0x290] sm:$0xff] %v486
    %853 = vst [vmem:[#allocation2 + $0x298] sm:$0xff] %v488
    %854 = vst [vmem:[#allocation2 + $0x2a0] sm:$0xff] %v623
    %855 = vst [vmem:[#allocation2 + $0x2a8] sm:$0xff] %v625
    %856 = vst [vmem:[#allocation2 + $0x2b0] sm:$0xff] %v760
    %857 = vst [vmem:[#allocation2 + $0x2b8] sm:$0xff] %v762
    %858 = vst [vmem:[#allocation2 + $0x2c0] sm:$0xff] %v355
    %859 = vst [vmem:[#allocation2 + $0x2c8] sm:$0xff] %v357
    %860 = vst [vmem:[#allocation2 + $0x2d0] sm:$0xff] %v492
    %861 = vst [vmem:[#allocation2 + $0x2d8] sm:$0xff] %v494
    %862 = vst [vmem:[#allocation2 + $0x2e0] sm:$0xff] %v629
    %863 = vst [vmem:[#allocation2 + $0x2e8] sm:$0xff] %v631
    %864 = vst [vmem:[#allocation2 + $0x2f0] sm:$0xff] %v766
    %865 = vst [vmem:[#allocation2 + $0x2f8] sm:$0xff] %v768
    %v866 = vld [vmem:[#allocation2] sm:$0xff]
    %v867 = vld [vmem:[#allocation2 + $0x8] sm:$0xff]
    %v868 = vld [vmem:[#allocation2 + $0x10] sm:$0xff]
    %v869 = vld [vmem:[#allocation2 + $0x18] sm:$0xff]
    %v870 = vld [vmem:[#allocation2 + $0x20] sm:$0xff]
    %v871 = vld [vmem:[#allocation2 + $0x28] sm:$0xff]
    %v872 = vld [vmem:[#allocation2 + $0x30] sm:$0xff]
    %v873 = vld [vmem:[#allocation2 + $0x38] sm:$0xff]
    %v874 = vld [vmem:[#allocation2 + $0x40] sm:$0xff]
    %v875 = vld [vmem:[#allocation2 + $0x48] sm:$0xff]
    %v876 = vld [vmem:[#allocation2 + $0x50] sm:$0xff]
    %v877 = vld [vmem:[#allocation2 + $0x58] sm:$0xff]
    %v878 = vld [vmem:[#allocation2 + $0x60] sm:$0xff]
    %v879 = vld [vmem:[#allocation2 + $0x68] sm:$0xff]
    %v880 = vld [vmem:[#allocation2 + $0x70] sm:$0xff]
    %v881 = vld [vmem:[#allocation2 + $0x78] sm:$0xff]
    %v882 = vld [vmem:[#allocation3] sm:$0xff]
    %v883 = vld [vmem:[#allocation3 + $0x8] sm:$0xff]
    %v884 = vld [vmem:[#allocation3 + $0x10] sm:$0xff]
    %v885 = vld [vmem:[#allocation3 + $0x18] sm:$0xff]
    %v886 = vld [vmem:[#allocation3 + $0x20] sm:$0xff]
    %v887 = vld [vmem:[#allocation3 + $0x28] sm:$0xff]
    %v888 = vld [vmem:[#allocation3 + $0x30] sm:$0xff]
    %v889 = vld [vmem:[#allocation3 + $0x38] sm:$0xff]
    %v890 = vld [vmem:[#allocation3 + $0x40] sm:$0xff]
    %v891 = vld [vmem:[#allocation3 + $0x48] sm:$0xff]
    %v892 = vld [vmem:[#allocation3 + $0x50] sm:$0xff]
    %v893 = vld [vmem:[#allocation3 + $0x58] sm:$0xff]
    %v894 = vld [vmem:[#allocation3 + $0x60] sm:$0xff]
    %v895 = vld [vmem:[#allocation3 + $0x68] sm:$0xff]
    %v896 = vld [vmem:[#allocation3 + $0x70] sm:$0xff]
    %v897 = vld [vmem:[#allocation3 + $0x78] sm:$0xff]
    %v898 = vld [vmem:[#allocation3 + $0x80] sm:$0xff]
    %v899 = vld [vmem:[#allocation3 + $0x88] sm:$0xff]
    %v900 = vld [vmem:[#allocation3 + $0x90] sm:$0xff]
    %v901 = vld [vmem:[#allocation3 + $0x98] sm:$0xff]
    %v902 = vld [vmem:[#allocation3 + $0xa0] sm:$0xff]
    %v903 = vld [vmem:[#allocation3 + $0xa8] sm:$0xff]
    %v904 = vld [vmem:[#allocation3 + $0xb0] sm:$0xff]
    %v905 = vld [vmem:[#allocation3 + $0xb8] sm:$0xff]
    %v906 = vld [vmem:[#allocation3 + $0xc0] sm:$0xff]
    %v907 = vld [vmem:[#allocation3 + $0xc8] sm:$0xff]
    %v908 = vld [vmem:[#allocation3 + $0xd0] sm:$0xff]
    %v909 = vld [vmem:[#allocation3 + $0xd8] sm:$0xff]
    %v910 = vld [vmem:[#allocation3 + $0xe0] sm:$0xff]
    %v911 = vld [vmem:[#allocation3 + $0xe8] sm:$0xff]
    %v912 = vld [vmem:[#allocation3 + $0xf0] sm:$0xff]
    %v913 = vld [vmem:[#allocation3 + $0xf8] sm:$0xff]
    %v914 = vld [vmem:[#allocation3 + $0x100] sm:$0xff]
    %v915 = vld [vmem:[#allocation3 + $0x108] sm:$0xff]
    %v916 = vld [vmem:[#allocation3 + $0x110] sm:$0xff]
    %v917 = vld [vmem:[#allocation3 + $0x118] sm:$0xff]
    %v918 = vld [vmem:[#allocation3 + $0x120] sm:$0xff]
    %v919 = vld [vmem:[#allocation3 + $0x128] sm:$0xff]
    %v920 = vld [vmem:[#allocation3 + $0x130] sm:$0xff]
    %v921 = vld [vmem:[#allocation3 + $0x138] sm:$0xff]
    %v922 = vld [vmem:[#allocation3 + $0x140] sm:$0xff]
    %v923 = vld [vmem:[#allocation3 + $0x148] sm:$0xff]
    %v924 = vld [vmem:[#allocation3 + $0x150] sm:$0xff]
    %v925 = vld [vmem:[#allocation3 + $0x158] sm:$0xff]
    %v926 = vld [vmem:[#allocation3 + $0x160] sm:$0xff]
    %v927 = vld [vmem:[#allocation3 + $0x168] sm:$0xff]
    %v928 = vld [vmem:[#allocation3 + $0x170] sm:$0xff]
    %v929 = vld [vmem:[#allocation3 + $0x178] sm:$0xff]
    %v930 = vld [vmem:[#allocation3 + $0x180] sm:$0xff]
    %v931 = vld [vmem:[#allocation3 + $0x188] sm:$0xff]
    %v932 = vld [vmem:[#allocation3 + $0x190] sm:$0xff]
    %v933 = vld [vmem:[#allocation3 + $0x198] sm:$0xff]
    %v934 = vld [vmem:[#allocation3 + $0x1a0] sm:$0xff]
    %v935 = vld [vmem:[#allocation3 + $0x1a8] sm:$0xff]
    %v936 = vld [vmem:[#allocation3 + $0x1b0] sm:$0xff]
    %v937 = vld [vmem:[#allocation3 + $0x1b8] sm:$0xff]
    %v938 = vld [vmem:[#allocation3 + $0x1c0] sm:$0xff]
    %v939 = vld [vmem:[#allocation3 + $0x1c8] sm:$0xff]
    %v940 = vld [vmem:[#allocation3 + $0x1d0] sm:$0xff]
    %v941 = vld [vmem:[#allocation3 + $0x1d8] sm:$0xff]
    %v942 = vld [vmem:[#allocation3 + $0x1e0] sm:$0xff]
    %v943 = vld [vmem:[#allocation3 + $0x1e8] sm:$0xff]
    %v944 = vld [vmem:[#allocation3 + $0x1f0] sm:$0xff]
    %v945 = vld [vmem:[#allocation3 + $0x1f8] sm:$0xff]
    %v946 = vld [vmem:[#allocation3 + $0x200] sm:$0xff]
    %v947 = vld [vmem:[#allocation3 + $0x208] sm:$0xff]
    %v948 = vld [vmem:[#allocation3 + $0x210] sm:$0xff]
    %v949 = vld [vmem:[#allocation3 + $0x218] sm:$0xff]
    %v950 = vld [vmem:[#allocation3 + $0x220] sm:$0xff]
    %v951 = vld [vmem:[#allocation3 + $0x228] sm:$0xff]
    %v952 = vld [vmem:[#allocation3 + $0x230] sm:$0xff]
    %v953 = vld [vmem:[#allocation3 + $0x238] sm:$0xff]
    %v954 = vld [vmem:[#allocation3 + $0x240] sm:$0xff]
    %v955 = vld [vmem:[#allocation3 + $0x248] sm:$0xff]
    %v956 = vld [vmem:[#allocation3 + $0x250] sm:$0xff]
    %v957 = vld [vmem:[#allocation3 + $0x258] sm:$0xff]
    %v958 = vld [vmem:[#allocation3 + $0x260] sm:$0xff]
    %v959 = vld [vmem:[#allocation3 + $0x268] sm:$0xff]
    %v960 = vld [vmem:[#allocation3 + $0x270] sm:$0xff]
    %v961 = vld [vmem:[#allocation3 + $0x278] sm:$0xff]
    %v962 = vld [vmem:[#allocation3 + $0x280] sm:$0xff]
    %v963 = vld [vmem:[#allocation3 + $0x288] sm:$0xff]
    %v964 = vld [vmem:[#allocation3 + $0x290] sm:$0xff]
    %v965 = vld [vmem:[#allocation3 + $0x298] sm:$0xff]
    %v966 = vld [vmem:[#allocation3 + $0x2a0] sm:$0xff]
    %v967 = vld [vmem:[#allocation3 + $0x2a8] sm:$0xff]
    %v968 = vld [vmem:[#allocation3 + $0x2b0] sm:$0xff]
    %v969 = vld [vmem:[#allocation3 + $0x2b8] sm:$0xff]
    %v970 = vld [vmem:[#allocation3 + $0x2c0] sm:$0xff]
    %v971 = vld [vmem:[#allocation3 + $0x2c8] sm:$0xff]
    %v972 = vld [vmem:[#allocation3 + $0x2d0] sm:$0xff]
    %v973 = vld [vmem:[#allocation3 + $0x2d8] sm:$0xff]
    %v974 = vld [vmem:[#allocation3 + $0x2e0] sm:$0xff]
    %v975 = vld [vmem:[#allocation3 + $0x2e8] sm:$0xff]
    %v976 = vld [vmem:[#allocation3 + $0x2f0] sm:$0xff]
    %v977 = vld [vmem:[#allocation3 + $0x2f8] sm:$0xff]
    %v978 = vld [vmem:[#allocation3 + $0x300] sm:$0xff]
    %v979 = vld [vmem:[#allocation3 + $0x308] sm:$0xff]
    %v980 = vld [vmem:[#allocation3 + $0x310] sm:$0xff]
    %v981 = vld [vmem:[#allocation3 + $0x318] sm:$0xff]
    %v982 = vld [vmem:[#allocation3 + $0x320] sm:$0xff]
    %v983 = vld [vmem:[#allocation3 + $0x328] sm:$0xff]
    %v984 = vld [vmem:[#allocation3 + $0x330] sm:$0xff]
    %v985 = vld [vmem:[#allocation3 + $0x338] sm:$0xff]
    %v986 = vld [vmem:[#allocation3 + $0x340] sm:$0xff]
    %v987 = vld [vmem:[#allocation3 + $0x348] sm:$0xff]
    %v988 = vld [vmem:[#allocation3 + $0x350] sm:$0xff]
    %v989 = vld [vmem:[#allocation3 + $0x358] sm:$0xff]
    %v990 = vld [vmem:[#allocation3 + $0x360] sm:$0xff]
    %v991 = vld [vmem:[#allocation3 + $0x368] sm:$0xff]
    %v992 = vld [vmem:[#allocation3 + $0x370] sm:$0xff]
    %v993 = vld [vmem:[#allocation3 + $0x378] sm:$0xff]
    %v994 = vld [vmem:[#allocation3 + $0x380] sm:$0xff]
    %v995 = vld [vmem:[#allocation3 + $0x388] sm:$0xff]
    %v996 = vld [vmem:[#allocation3 + $0x390] sm:$0xff]
    %v997 = vld [vmem:[#allocation3 + $0x398] sm:$0xff]
    %v998 = vld [vmem:[#allocation3 + $0x3a0] sm:$0xff]
    %v999 = vld [vmem:[#allocation3 + $0x3a8] sm:$0xff]
    %v1000 = vld [vmem:[#allocation3 + $0x3b0] sm:$0xff]
    %v1001 = vld [vmem:[#allocation3 + $0x3b8] sm:$0xff]
    %v1002 = vld [vmem:[#allocation3 + $0x3c0] sm:$0xff]
    %v1003 = vld [vmem:[#allocation3 + $0x3c8] sm:$0xff]
    %v1004 = vld [vmem:[#allocation3 + $0x3d0] sm:$0xff]
    %v1005 = vld [vmem:[#allocation3 + $0x3d8] sm:$0xff]
    %v1006 = vld [vmem:[#allocation3 + $0x3e0] sm:$0xff]
    %v1007 = vld [vmem:[#allocation3 + $0x3e8] sm:$0xff]
    %v1008 = vld [vmem:[#allocation3 + $0x3f0] sm:$0xff]
    %v1009 = vld [vmem:[#allocation3 + $0x3f8] sm:$0xff]
    %v1010 = vld [vmem:[#allocation3 + $0x400] sm:$0xff]
    %v1011 = vld [vmem:[#allocation3 + $0x408] sm:$0xff]
    %v1012 = vld [vmem:[#allocation3 + $0x410] sm:$0xff]
    %v1013 = vld [vmem:[#allocation3 + $0x418] sm:$0xff]
    %v1014 = vld [vmem:[#allocation3 + $0x420] sm:$0xff]
    %v1015 = vld [vmem:[#allocation3 + $0x428] sm:$0xff]
    %v1016 = vld [vmem:[#allocation3 + $0x430] sm:$0xff]
    %v1017 = vld [vmem:[#allocation3 + $0x438] sm:$0xff]
    %v1018 = vld [vmem:[#allocation3 + $0x440] sm:$0xff]
    %v1019 = vld [vmem:[#allocation3 + $0x448] sm:$0xff]
    %v1020 = vld [vmem:[#allocation3 + $0x450] sm:$0xff]
    %v1021 = vld [vmem:[#allocation3 + $0x458] sm:$0xff]
    %v1022 = vld [vmem:[#allocation3 + $0x460] sm:$0xff]
    %v1023 = vld [vmem:[#allocation3 + $0x468] sm:$0xff]
    %v1024 = vld [vmem:[#allocation3 + $0x470] sm:$0xff]
    %v1025 = vld [vmem:[#allocation3 + $0x478] sm:$0xff]
    %v1026 = vld [vmem:[#allocation3 + $0x480] sm:$0xff]
    %v1027 = vld [vmem:[#allocation3 + $0x488] sm:$0xff]
    %v1028 = vld [vmem:[#allocation3 + $0x490] sm:$0xff]
    %v1029 = vld [vmem:[#allocation3 + $0x498] sm:$0xff]
    %v1030 = vld [vmem:[#allocation3 + $0x4a0] sm:$0xff]
    %v1031 = vld [vmem:[#allocation3 + $0x4a8] sm:$0xff]
    %v1032 = vld [vmem:[#allocation3 + $0x4b0] sm:$0xff]
    %v1033 = vld [vmem:[#allocation3 + $0x4b8] sm:$0xff]
    %v1034 = vld [vmem:[#allocation3 + $0x4c0] sm:$0xff]
    %v1035 = vld [vmem:[#allocation3 + $0x4c8] sm:$0xff]
    %v1036 = vld [vmem:[#allocation3 + $0x4d0] sm:$0xff]
    %v1037 = vld [vmem:[#allocation3 + $0x4d8] sm:$0xff]
    %v1038 = vld [vmem:[#allocation3 + $0x4e0] sm:$0xff]
    %v1039 = vld [vmem:[#allocation3 + $0x4e8] sm:$0xff]
    %v1040 = vld [vmem:[#allocation3 + $0x4f0] sm:$0xff]
    %v1041 = vld [vmem:[#allocation3 + $0x4f8] sm:$0xff]
    %v1042 = vld [vmem:[#allocation3 + $0x500] sm:$0xff]
    %v1043 = vld [vmem:[#allocation3 + $0x508] sm:$0xff]
    %v1044 = vld [vmem:[#allocation3 + $0x510] sm:$0xff]
    %v1045 = vld [vmem:[#allocation3 + $0x518] sm:$0xff]
    %v1046 = vld [vmem:[#allocation3 + $0x520] sm:$0xff]
    %v1047 = vld [vmem:[#allocation3 + $0x528] sm:$0xff]
    %v1048 = vld [vmem:[#allocation3 + $0x530] sm:$0xff]
    %v1049 = vld [vmem:[#allocation3 + $0x538] sm:$0xff]
    %v1050 = vld [vmem:[#allocation3 + $0x540] sm:$0xff]
    %v1051 = vld [vmem:[#allocation3 + $0x548] sm:$0xff]
    %v1052 = vld [vmem:[#allocation3 + $0x550] sm:$0xff]
    %v1053 = vld [vmem:[#allocation3 + $0x558] sm:$0xff]
    %v1054 = vld [vmem:[#allocation3 + $0x560] sm:$0xff]
    %v1055 = vld [vmem:[#allocation3 + $0x568] sm:$0xff]
    %v1056 = vld [vmem:[#allocation3 + $0x570] sm:$0xff]
    %v1057 = vld [vmem:[#allocation3 + $0x578] sm:$0xff]
    %v1058 = vld [vmem:[#allocation3 + $0x580] sm:$0xff]
    %v1059 = vld [vmem:[#allocation3 + $0x588] sm:$0xff]
    %v1060 = vld [vmem:[#allocation3 + $0x590] sm:$0xff]
    %v1061 = vld [vmem:[#allocation3 + $0x598] sm:$0xff]
    %v1062 = vld [vmem:[#allocation3 + $0x5a0] sm:$0xff]
    %v1063 = vld [vmem:[#allocation3 + $0x5a8] sm:$0xff]
    %v1064 = vld [vmem:[#allocation3 + $0x5b0] sm:$0xff]
    %v1065 = vld [vmem:[#allocation3 + $0x5b8] sm:$0xff]
    %v1066 = vld [vmem:[#allocation3 + $0x5c0] sm:$0xff]
    %v1067 = vld [vmem:[#allocation3 + $0x5c8] sm:$0xff]
    %v1068 = vld [vmem:[#allocation3 + $0x5d0] sm:$0xff]
    %v1069 = vld [vmem:[#allocation3 + $0x5d8] sm:$0xff]
    %v1070 = vld [vmem:[#allocation3 + $0x5e0] sm:$0xff]
    %v1071 = vld [vmem:[#allocation3 + $0x5e8] sm:$0xff]
    %v1072 = vld [vmem:[#allocation3 + $0x5f0] sm:$0xff]
    %v1073 = vld [vmem:[#allocation3 + $0x5f8] sm:$0xff]
    %v1074 = vld [vmem:[#allocation3 + $0x600] sm:$0xff]
    %v1075 = vld [vmem:[#allocation3 + $0x608] sm:$0xff]
    %v1076 = vld [vmem:[#allocation3 + $0x610] sm:$0xff]
    %v1077 = vld [vmem:[#allocation3 + $0x618] sm:$0xff]
    %v1078 = vld [vmem:[#allocation3 + $0x620] sm:$0xff]
    %v1079 = vld [vmem:[#allocation3 + $0x628] sm:$0xff]
    %v1080 = vld [vmem:[#allocation3 + $0x630] sm:$0xff]
    %v1081 = vld [vmem:[#allocation3 + $0x638] sm:$0xff]
    %v1082 = vld [vmem:[#allocation3 + $0x640] sm:$0xff]
    %v1083 = vld [vmem:[#allocation3 + $0x648] sm:$0xff]
    %v1084 = vld [vmem:[#allocation3 + $0x650] sm:$0xff]
    %v1085 = vld [vmem:[#allocation3 + $0x658] sm:$0xff]
    %v1086 = vld [vmem:[#allocation3 + $0x660] sm:$0xff]
    %v1087 = vld [vmem:[#allocation3 + $0x668] sm:$0xff]
    %v1088 = vld [vmem:[#allocation3 + $0x670] sm:$0xff]
    %v1089 = vld [vmem:[#allocation3 + $0x678] sm:$0xff]
    %v1090 = vld [vmem:[#allocation3 + $0x680] sm:$0xff]
    %v1091 = vld [vmem:[#allocation3 + $0x688] sm:$0xff]
    %v1092 = vld [vmem:[#allocation3 + $0x690] sm:$0xff]
    %v1093 = vld [vmem:[#allocation3 + $0x698] sm:$0xff]
    %v1094 = vld [vmem:[#allocation3 + $0x6a0] sm:$0xff]
    %v1095 = vld [vmem:[#allocation3 + $0x6a8] sm:$0xff]
    %v1096 = vld [vmem:[#allocation3 + $0x6b0] sm:$0xff]
    %v1097 = vld [vmem:[#allocation3 + $0x6b8] sm:$0xff]
    %v1098 = vld [vmem:[#allocation3 + $0x6c0] sm:$0xff]
    %v1099 = vld [vmem:[#allocation3 + $0x6c8] sm:$0xff]
    %v1100 = vld [vmem:[#allocation3 + $0x6d0] sm:$0xff]
    %v1101 = vld [vmem:[#allocation3 + $0x6d8] sm:$0xff]
    %v1102 = vld [vmem:[#allocation3 + $0x6e0] sm:$0xff]
    %v1103 = vld [vmem:[#allocation3 + $0x6e8] sm:$0xff]
    %v1104 = vld [vmem:[#allocation3 + $0x6f0] sm:$0xff]
    %v1105 = vld [vmem:[#allocation3 + $0x6f8] sm:$0xff]
    %v1106 = vld [vmem:[#allocation3 + $0x700] sm:$0xff]
    %v1107 = vld [vmem:[#allocation3 + $0x708] sm:$0xff]
    %v1108 = vld [vmem:[#allocation3 + $0x710] sm:$0xff]
    %v1109 = vld [vmem:[#allocation3 + $0x718] sm:$0xff]
    %v1110 = vld [vmem:[#allocation3 + $0x720] sm:$0xff]
    %v1111 = vld [vmem:[#allocation3 + $0x728] sm:$0xff]
    %v1112 = vld [vmem:[#allocation3 + $0x730] sm:$0xff]
    %v1113 = vld [vmem:[#allocation3 + $0x738] sm:$0xff]
    %v1114 = vld [vmem:[#allocation3 + $0x740] sm:$0xff]
    %v1115 = vld [vmem:[#allocation3 + $0x748] sm:$0xff]
    %v1116 = vld [vmem:[#allocation3 + $0x750] sm:$0xff]
    %v1117 = vld [vmem:[#allocation3 + $0x758] sm:$0xff]
    %v1118 = vld [vmem:[#allocation3 + $0x760] sm:$0xff]
    %v1119 = vld [vmem:[#allocation3 + $0x768] sm:$0xff]
    %v1120 = vld [vmem:[#allocation3 + $0x770] sm:$0xff]
    %v1121 = vld [vmem:[#allocation3 + $0x778] sm:$0xff]
    %v1122 = vld [vmem:[#allocation3 + $0x780] sm:$0xff]
    %v1123 = vld [vmem:[#allocation3 + $0x788] sm:$0xff]
    %v1124 = vld [vmem:[#allocation3 + $0x790] sm:$0xff]
    %v1125 = vld [vmem:[#allocation3 + $0x798] sm:$0xff]
    %v1126 = vld [vmem:[#allocation3 + $0x7a0] sm:$0xff]
    %v1127 = vld [vmem:[#allocation3 + $0x7a8] sm:$0xff]
    %v1128 = vld [vmem:[#allocation3 + $0x7b0] sm:$0xff]
    %v1129 = vld [vmem:[#allocation3 + $0x7b8] sm:$0xff]
    %v1130 = vld [vmem:[#allocation3 + $0x7c0] sm:$0xff]
    %v1131 = vld [vmem:[#allocation3 + $0x7c8] sm:$0xff]
    %v1132 = vld [vmem:[#allocation3 + $0x7d0] sm:$0xff]
    %v1133 = vld [vmem:[#allocation3 + $0x7d8] sm:$0xff]
    %v1134 = vld [vmem:[#allocation3 + $0x7e0] sm:$0xff]
    %v1135 = vld [vmem:[#allocation3 + $0x7e8] sm:$0xff]
    %v1136 = vld [vmem:[#allocation3 + $0x7f0] sm:$0xff]
    %v1137 = vld [vmem:[#allocation3 + $0x7f8] sm:$0xff]
    %1138 = vmatprep.subr.mxu0 %v883
    %1139 = vmatpush1.msra.mxu0 %v882
    %1140 = vmatprep.subr.mxu0 %v891
    %1141 = vmatpush1.msra.mxu0 %v890
    %1142 = vmatprep.subr.mxu0 %v899
    %1143 = vmatpush1.msra.mxu0 %v898
    %1144 = vmatprep.subr.mxu0 %v907
    %1145 = vmatpush1.msra.mxu0 %v906
    %1146 = vmatprep.subr.mxu0 %v915
    %1147 = vmatpush1.msra.mxu0 %v914
    %1148 = vmatprep.subr.mxu0 %v923
    %1149 = vmatpush1.msra.mxu0 %v922
    %1150 = vmatprep.subr.mxu0 %v931
    %1151 = vmatpush1.msra.mxu0 %v930
    %1152 = vmatprep.subr.mxu0 %v939
    %1153 = vmatpush1.msra.mxu0 %v938
    %1154 = vmatprep.subr.mxu0 %v947
    %1155 = vmatpush1.msra.mxu0 %v946
    %1156 = vmatprep.subr.mxu0 %v955
    %1157 = vmatpush1.msra.mxu0 %v954
    %1158 = vmatprep.subr.mxu0 %v963
    %1159 = vmatpush1.msra.mxu0 %v962
    %1160 = vmatprep.subr.mxu0 %v971
    %1161 = vmatpush1.msra.mxu0 %v970
    %1162 = vmatprep.subr.mxu0 %v979
    %1163 = vmatpush1.msra.mxu0 %v978
    %1164 = vmatprep.subr.mxu0 %v987
    %1165 = vmatpush1.msra.mxu0 %v986
    %1166 = vmatprep.subr.mxu0 %v995
    %1167 = vmatpush1.msra.mxu0 %v994
    %1168 = vmatprep.subr.mxu0 %v1003
    %1169 = vmatpush1.msra.mxu0 %v1002
    %1170 = vmatprep.subr.mxu0 %v1011
    %1171 = vmatpush1.msra.mxu0 %v1010
    %1172 = vmatprep.subr.mxu0 %v1019
    %1173 = vmatpush1.msra.mxu0 %v1018
    %1174 = vmatprep.subr.mxu0 %v1027
    %1175 = vmatpush1.msra.mxu0 %v1026
    %1176 = vmatprep.subr.mxu0 %v1035
    %1177 = vmatpush1.msra.mxu0 %v1034
    %1178 = vmatprep.subr.mxu0 %v1043
    %1179 = vmatpush1.msra.mxu0 %v1042
    %1180 = vmatprep.subr.mxu0 %v1051
    %1181 = vmatpush1.msra.mxu0 %v1050
    %1182 = vmatprep.subr.mxu0 %v1059
    %1183 = vmatpush1.msra.mxu0 %v1058
    %1184 = vmatprep.subr.mxu0 %v1067
    %1185 = vmatpush1.msra.mxu0 %v1066
    %1186 = vmatprep.subr.mxu0 %v1075
    %1187 = vmatpush1.msra.mxu0 %v1074
    %1188 = vmatprep.subr.mxu0 %v1083
    %1189 = vmatpush1.msra.mxu0 %v1082
    %1190 = vmatprep.subr.mxu0 %v1091
    %1191 = vmatpush1.msra.mxu0 %v1090
    %1192 = vmatprep.subr.mxu0 %v1099
    %1193 = vmatpush1.msra.mxu0 %v1098
    %1194 = vmatprep.subr.mxu0 %v1107
    %1195 = vmatpush1.msra.mxu0 %v1106
    %1196 = vmatprep.subr.mxu0 %v1115
    %1197 = vmatpush1.msra.mxu0 %v1114
    %1198 = vmatprep.subr.mxu0 %v1123
    %1199 = vmatpush1.msra.mxu0 %v1122
    %1200 = vmatprep.subr.mxu0 %v1131
    %1201 = vmatpush1.msra.mxu0 %v1130
    %1202 = vmatprep.mubr.f32.mxu0 0.0
    %1203 = vmatmul.mubr.f32.gmra.mrb[0].mxu0 0.0
    %v1204 = vpop.f32.mrb[0].mxu0
    %v1205 = vadd.f32 0.0, %v1204
    %v1206 = vpop.f32.mrb[0].mxu0
    %v1207 = vadd.f32 0.0, %v1206
    %1208 = vmatprep.mubr.f32.mxu0 0.0
    %1209 = vmatmul.mubr.f32.gmra.mrb[0].mxu0 0.0
    %v1210 = vpop.f32.mrb[0].mxu0
    %v1211 = vadd.f32 0.0, %v1210
    %v1212 = vpop.f32.mrb[0].mxu0
    %v1213 = vadd.f32 0.0, %v1212
    %1214 = vdwg.mxu0
    %1215 = vmatprep.subr.mxu0 %v885
    %1216 = vmatpush1.msra.mxu0 %v884
    %1217 = vmatprep.subr.mxu0 %v893
    %1218 = vmatpush1.msra.mxu0 %v892
    %1219 = vmatprep.subr.mxu0 %v901
    %1220 = vmatpush1.msra.mxu0 %v900
    %1221 = vmatprep.subr.mxu0 %v909
    %1222 = vmatpush1.msra.mxu0 %v908
    %1223 = vmatprep.subr.mxu0 %v917
    %1224 = vmatpush1.msra.mxu0 %v916
    %1225 = vmatprep.subr.mxu0 %v925
    %1226 = vmatpush1.msra.mxu0 %v924
    %1227 = vmatprep.subr.mxu0 %v933
    %1228 = vmatpush1.msra.mxu0 %v932
    %1229 = vmatprep.subr.mxu0 %v941
    %1230 = vmatpush1.msra.mxu0 %v940
    %1231 = vmatprep.subr.mxu0 %v949
    %1232 = vmatpush1.msra.mxu0 %v948
    %1233 = vmatprep.subr.mxu0 %v957
    %1234 = vmatpush1.msra.mxu0 %v956
    %1235 = vmatprep.subr.mxu0 %v965
    %1236 = vmatpush1.msra.mxu0 %v964
    %1237 = vmatprep.subr.mxu0 %v973
    %1238 = vmatpush1.msra.mxu0 %v972
    %1239 = vmatprep.subr.mxu0 %v981
    %1240 = vmatpush1.msra.mxu0 %v980
    %1241 = vmatprep.subr.mxu0 %v989
    %1242 = vmatpush1.msra.mxu0 %v988
    %1243 = vmatprep.subr.mxu0 %v997
    %1244 = vmatpush1.msra.mxu0 %v996
    %1245 = vmatprep.subr.mxu0 %v1005
    %1246 = vmatpush1.msra.mxu0 %v1004
    %1247 = vmatprep.subr.mxu0 %v1013
    %1248 = vmatpush1.msra.mxu0 %v1012
    %1249 = vmatprep.subr.mxu0 %v1021
    %1250 = vmatpush1.msra.mxu0 %v1020
    %1251 = vmatprep.subr.mxu0 %v1029
    %1252 = vmatpush1.msra.mxu0 %v1028
    %1253 = vmatprep.subr.mxu0 %v1037
    %1254 = vmatpush1.msra.mxu0 %v1036
    %1255 = vmatprep.subr.mxu0 %v1045
    %1256 = vmatpush1.msra.mxu0 %v1044
    %1257 = vmatprep.subr.mxu0 %v1053
    %1258 = vmatpush1.msra.mxu0 %v1052
    %1259 = vmatprep.subr.mxu0 %v1061
    %1260 = vmatpush1.msra.mxu0 %v1060
    %1261 = vmatprep.subr.mxu0 %v1069
    %1262 = vmatpush1.msra.mxu0 %v1068
    %1263 = vmatprep.subr.mxu0 %v1077
    %1264 = vmatpush1.msra.mxu0 %v1076
    %1265 = vmatprep.subr.mxu0 %v1085
    %1266 = vmatpush1.msra.mxu0 %v1084
    %1267 = vmatprep.subr.mxu0 %v1093
    %1268 = vmatpush1.msra.mxu0 %v1092
    %1269 = vmatprep.subr.mxu0 %v1101
    %1270 = vmatpush1.msra.mxu0 %v1100
    %1271 = vmatprep.subr.mxu0 %v1109
    %1272 = vmatpush1.msra.mxu0 %v1108
    %1273 = vmatprep.subr.mxu0 %v1117
    %1274 = vmatpush1.msra.mxu0 %v1116
    %1275 = vmatprep.subr.mxu0 %v1125
    %1276 = vmatpush1.msra.mxu0 %v1124
    %1277 = vmatprep.subr.mxu0 %v1133
    %1278 = vmatpush1.msra.mxu0 %v1132
    %1279 = vmatprep.mubr.f32.mxu0 0.0
    %1280 = vmatmul.mubr.f32.gmra.mrb[0].mxu0 0.0
    %v1281 = vpop.f32.mrb[0].mxu0
    %v1282 = vadd.f32 0.0, %v1281
    %v1283 = vpop.f32.mrb[0].mxu0
    %v1284 = vadd.f32 0.0, %v1283
    %1285 = vmatprep.mubr.f32.mxu0 0.0
    %1286 = vmatmul.mubr.f32.gmra.mrb[0].mxu0 0.0
    %v1287 = vpop.f32.mrb[0].mxu0
    %v1288 = vadd.f32 0.0, %v1287
    %v1289 = vpop.f32.mrb[0].mxu0
    %v1290 = vadd.f32 0.0, %v1289
    %1291 = vdwg.mxu0
    %1292 = vmatprep.subr.mxu0 %v887
    %1293 = vmatpush1.msra.mxu0 %v886
    %1294 = vmatprep.subr.mxu0 %v895
    %1295 = vmatpush1.msra.mxu0 %v894
    %1296 = vmatprep.subr.mxu0 %v903
    %1297 = vmatpush1.msra.mxu0 %v902
    %1298 = vmatprep.subr.mxu0 %v911
    %1299 = vmatpush1.msra.mxu0 %v910
    %1300 = vmatprep.subr.mxu0 %v919
    %1301 = vmatpush1.msra.mxu0 %v918
    %1302 = vmatprep.subr.mxu0 %v927
    %1303 = vmatpush1.msra.mxu0 %v926
    %1304 = vmatprep.subr.mxu0 %v935
    %1305 = vmatpush1.msra.mxu0 %v934
    %1306 = vmatprep.subr.mxu0 %v943
    %1307 = vmatpush1.msra.mxu0 %v942
    %1308 = vmatprep.subr.mxu0 %v951
    %1309 = vmatpush1.msra.mxu0 %v950
    %1310 = vmatprep.subr.mxu0 %v959
    %1311 = vmatpush1.msra.mxu0 %v958
    %1312 = vmatprep.subr.mxu0 %v967
    %1313 = vmatpush1.msra.mxu0 %v966
    %1314 = vmatprep.subr.mxu0 %v975
    %1315 = vmatpush1.msra.mxu0 %v974
    %1316 = vmatprep.subr.mxu0 %v983
    %1317 = vmatpush1.msra.mxu0 %v982
    %1318 = vmatprep.subr.mxu0 %v991
    %1319 = vmatpush1.msra.mxu0 %v990
    %1320 = vmatprep.subr.mxu0 %v999
    %1321 = vmatpush1.msra.mxu0 %v998
    %1322 = vmatprep.subr.mxu0 %v1007
    %1323 = vmatpush1.msra.mxu0 %v1006
    %1324 = vmatprep.subr.mxu0 %v1015
    %1325 = vmatpush1.msra.mxu0 %v1014
    %1326 = vmatprep.subr.mxu0 %v1023
    %1327 = vmatpush1.msra.mxu0 %v1022
    %1328 = vmatprep.subr.mxu0 %v1031
    %1329 = vmatpush1.msra.mxu0 %v1030
    %1330 = vmatprep.subr.mxu0 %v1039
    %1331 = vmatpush1.msra.mxu0 %v1038
    %1332 = vmatprep.subr.mxu0 %v1047
    %1333 = vmatpush1.msra.mxu0 %v1046
    %1334 = vmatprep.subr.mxu0 %v1055
    %1335 = vmatpush1.msra.mxu0 %v1054
    %1336 = vmatprep.subr.mxu0 %v1063
    %1337 = vmatpush1.msra.mxu0 %v1062
    %1338 = vmatprep.subr.mxu0 %v1071
    %1339 = vmatpush1.msra.mxu0 %v1070
    %1340 = vmatprep.subr.mxu0 %v1079
    %1341 = vmatpush1.msra.mxu0 %v1078
    %1342 = vmatprep.subr.mxu0 %v1087
    %1343 = vmatpush1.msra.mxu0 %v1086
    %1344 = vmatprep.subr.mxu0 %v1095
    %1345 = vmatpush1.msra.mxu0 %v1094
    %1346 = vmatprep.subr.mxu0 %v1103
    %1347 = vmatpush1.msra.mxu0 %v1102
    %1348 = vmatprep.subr.mxu0 %v1111
    %1349 = vmatpush1.msra.mxu0 %v1110
    %1350 = vmatprep.subr.mxu0 %v1119
    %1351 = vmatpush1.msra.mxu0 %v1118
    %1352 = vmatprep.subr.mxu0 %v1127
    %1353 = vmatpush1.msra.mxu0 %v1126
    %1354 = vmatprep.subr.mxu0 %v1135
    %1355 = vmatpush1.msra.mxu0 %v1134
    %1356 = vmatprep.mubr.f32.mxu0 0.0
    %1357 = vmatmul.mubr.f32.gmra.mrb[0].mxu0 0.0
    %v1358 = vpop.f32.mrb[0].mxu0
    %v1359 = vadd.f32 0.0, %v1358
    %v1360 = vpop.f32.mrb[0].mxu0
    %v1361 = vadd.f32 0.0, %v1360
    %1362 = vmatprep.mubr.f32.mxu0 0.0
    %1363 = vmatmul.mubr.f32.gmra.mrb[0].mxu0 0.0
    %v1364 = vpop.f32.mrb[0].mxu0
    %v1365 = vadd.f32 0.0, %v1364
    %v1366 = vpop.f32.mrb[0].mxu0
    %v1367 = vadd.f32 0.0, %v1366
    %1368 = vdwg.mxu0
    %1369 = vmatprep.subr.mxu0 %v889
    %1370 = vmatpush1.msra.mxu0 %v888
    %1371 = vmatprep.subr.mxu0 %v897
    %1372 = vmatpush1.msra.mxu0 %v896
    %1373 = vmatprep.subr.mxu0 %v905
    %1374 = vmatpush1.msra.mxu0 %v904
    %1375 = vmatprep.subr.mxu0 %v913
    %1376 = vmatpush1.msra.mxu0 %v912
    %1377 = vmatprep.subr.mxu0 %v921
    %1378 = vmatpush1.msra.mxu0 %v920
    %1379 = vmatprep.subr.mxu0 %v929
    %1380 = vmatpush1.msra.mxu0 %v928
    %1381 = vmatprep.subr.mxu0 %v937
    %1382 = vmatpush1.msra.mxu0 %v936
    %1383 = vmatprep.subr.mxu0 %v945
    %1384 = vmatpush1.msra.mxu0 %v944
    %1385 = vmatprep.subr.mxu0 %v953
    %1386 = vmatpush1.msra.mxu0 %v952
    %1387 = vmatprep.subr.mxu0 %v961
    %1388 = vmatpush1.msra.mxu0 %v960
    %1389 = vmatprep.subr.mxu0 %v969
    %1390 = vmatpush1.msra.mxu0 %v968
    %1391 = vmatprep.subr.mxu0 %v977
    %1392 = vmatpush1.msra.mxu0 %v976
    %1393 = vmatprep.subr.mxu0 %v985
    %1394 = vmatpush1.msra.mxu0 %v984
    %1395 = vmatprep.subr.mxu0 %v993
    %1396 = vmatpush1.msra.mxu0 %v992
    %1397 = vmatprep.subr.mxu0 %v1001
    %1398 = vmatpush1.msra.mxu0 %v1000
    %1399 = vmatprep.subr.mxu0 %v1009
    %1400 = vmatpush1.msra.mxu0 %v1008
    %1401 = vmatprep.subr.mxu0 %v1017
    %1402 = vmatpush1.msra.mxu0 %v1016
    %1403 = vmatprep.subr.mxu0 %v1025
    %1404 = vmatpush1.msra.mxu0 %v1024
    %1405 = vmatprep.subr.mxu0 %v1033
    %1406 = vmatpush1.msra.mxu0 %v1032
    %1407 = vmatprep.subr.mxu0 %v1041
    %1408 = vmatpush1.msra.mxu0 %v1040
    %1409 = vmatprep.subr.mxu0 %v1049
    %1410 = vmatpush1.msra.mxu0 %v1048
    %1411 = vmatprep.subr.mxu0 %v1057
    %1412 = vmatpush1.msra.mxu0 %v1056
    %1413 = vmatprep.subr.mxu0 %v1065
    %1414 = vmatpush1.msra.mxu0 %v1064
    %1415 = vmatprep.subr.mxu0 %v1073
    %1416 = vmatpush1.msra.mxu0 %v1072
    %1417 = vmatprep.subr.mxu0 %v1081
    %1418 = vmatpush1.msra.mxu0 %v1080
    %1419 = vmatprep.subr.mxu0 %v1089
    %1420 = vmatpush1.msra.mxu0 %v1088
    %1421 = vmatprep.subr.mxu0 %v1097
    %1422 = vmatpush1.msra.mxu0 %v1096
    %1423 = vmatprep.subr.mxu0 %v1105
    %1424 = vmatpush1.msra.mxu0 %v1104
    %1425 = vmatprep.subr.mxu0 %v1113
    %1426 = vmatpush1.msra.mxu0 %v1112
    %1427 = vmatprep.subr.mxu0 %v1121
    %1428 = vmatpush1.msra.mxu0 %v1120
    %1429 = vmatprep.subr.mxu0 %v1129
    %1430 = vmatpush1.msra.mxu0 %v1128
    %1431 = vmatprep.subr.mxu0 %v1137
    %1432 = vmatpush1.msra.mxu0 %v1136
    %1433 = vmatprep.mubr.f32.mxu0 0.0
    %1434 = vmatmul.mubr.f32.gmra.mrb[0].mxu0 0.0
    %v1435 = vpop.f32.mrb[0].mxu0
    %v1436 = vadd.f32 0.0, %v1435
    %v1437 = vpop.f32.mrb[0].mxu0
    %v1438 = vadd.f32 0.0, %v1437
    %1439 = vmatprep.mubr.f32.mxu0 0.0
    %1440 = vmatmul.mubr.f32.gmra.mrb[0].mxu0 0.0
    %v1441 = vpop.f32.mrb[0].mxu0
    %v1442 = vadd.f32 0.0, %v1441
    %v1443 = vpop.f32.mrb[0].mxu0
    %v1444 = vadd.f32 0.0, %v1443
    %1445 = vdwg.mxu0
    %v1446 = vadd.f32 %v866, %v1205
    %v1447 = vadd.f32 %v867, %v1207
    %v1448 = vadd.f32 %v868, %v1282
    %v1449 = vadd.f32 %v869, %v1284
    %v1450 = vadd.f32 %v870, %v1359
    %v1451 = vadd.f32 %v871, %v1361
    %v1452 = vadd.f32 %v872, %v1436
    %v1453 = vadd.f32 %v873, %v1438
    %v1454 = vadd.f32 %v874, %v1211
    %v1455 = vadd.f32 %v875, %v1213
    %v1456 = vadd.f32 %v876, %v1288
    %v1457 = vadd.f32 %v877, %v1290
    %v1458 = vadd.f32 %v878, %v1365
    %v1459 = vadd.f32 %v879, %v1367
    %v1460 = vadd.f32 %v880, %v1442
    %v1461 = vadd.f32 %v881, %v1444
    %v1462 = vxor.u32 %v1446, 2147483648
    %v1463 = vxor.u32 %v1447, 2147483648
    %v1464 = vxor.u32 %v1454, 2147483648
    %v1465 = vxor.u32 %v1455, 2147483648
    %v1466 = vmul.f32 %v1462, 1.442695
    %v1467 = vpow.pop %v1466
    %v1468 = vmul.f32 %v1463, 1.442695
    %v1469 = vpow.pop %v1468
    %v1470 = vmul.f32 %v1464, 1.442695
    %v1471 = vpow.pop %v1470
    %v1472 = vmul.f32 %v1465, 1.442695
    %v1473 = vpow.pop %v1472
    %v1474 = vadd.f32 %v1467, 1.0
    %v1475 = vadd.f32 %v1469, 1.0
    %v1476 = vadd.f32 %v1471, 1.0
    %v1477 = vadd.f32 %v1473, 1.0
    %v1478 = vrcp.pop %v1474
    %v1479 = vmul.f32 1.0, %v1478
    %v1480 = vrcp.pop %v1475
    %v1481 = vmul.f32 1.0, %v1480
    %v1482 = vrcp.pop %v1476
    %v1483 = vmul.f32 1.0, %v1482
    %v1484 = vrcp.pop %v1477
    %v1485 = vmul.f32 1.0, %v1484
    %v1486 = vxor.u32 %v1448, 2147483648
    %v1487 = vxor.u32 %v1449, 2147483648
    %v1488 = vxor.u32 %v1456, 2147483648
    %v1489 = vxor.u32 %v1457, 2147483648
    %v1490 = vmul.f32 %v1486, 1.442695
    %v1491 = vpow.pop %v1490
    %v1492 = vmul.f32 %v1487, 1.442695
    %v1493 = vpow.pop %v1492
    %v1494 = vmul.f32 %v1488, 1.442695
    %v1495 = vpow.pop %v1494
    %v1496 = vmul.f32 %v1489, 1.442695
    %v1497 = vpow.pop %v1496
    %v1498 = vadd.f32 %v1491, 1.0
    %v1499 = vadd.f32 %v1493, 1.0
    %v1500 = vadd.f32 %v1495, 1.0
    %v1501 = vadd.f32 %v1497, 1.0
    %v1502 = vrcp.pop %v1498
    %v1503 = vmul.f32 1.0, %v1502
    %v1504 = vrcp.pop %v1499
    %v1505 = vmul.f32 1.0, %v1504
    %v1506 = vrcp.pop %v1500
    %v1507 = vmul.f32 1.0, %v1506
    %v1508 = vrcp.pop %v1501
    %v1509 = vmul.f32 1.0, %v1508
    %v1510 = vtanh.pop %v1450
    %v1511 = vtanh.pop %v1451
    %v1512 = vtanh.pop %v1458
    %v1513 = vtanh.pop %v1459
    %v1514 = vxor.u32 %v1452, 2147483648
    %v1515 = vxor.u32 %v1453, 2147483648
    %v1516 = vxor.u32 %v1460, 2147483648
    %v1517 = vxor.u32 %v1461, 2147483648
    %v1518 = vmul.f32 %v1514, 1.442695
    %v1519 = vpow.pop %v1518
    %v1520 = vmul.f32 %v1515, 1.442695
    %v1521 = vpow.pop %v1520
    %v1522 = vmul.f32 %v1516, 1.442695
    %v1523 = vpow.pop %v1522
    %v1524 = vmul.f32 %v1517, 1.442695
    %v1525 = vpow.pop %v1524
    %v1526 = vadd.f32 %v1519, 1.0
    %v1527 = vadd.f32 %v1521, 1.0
    %v1528 = vadd.f32 %v1523, 1.0
    %v1529 = vadd.f32 %v1525, 1.0
    %v1530 = vrcp.pop %v1526
    %v1531 = vmul.f32 1.0, %v1530
    %v1532 = vrcp.pop %v1527
    %v1533 = vmul.f32 1.0, %v1532
    %v1534 = vrcp.pop %v1528
    %v1535 = vmul.f32 1.0, %v1534
    %v1536 = vrcp.pop %v1529
    %v1537 = vmul.f32 1.0, %v1536
    %v1538 = vmul.f32 %v1503, 0.0
    %v1539 = vmul.f32 %v1505, 0.0
    %v1540 = vmul.f32 %v1507, 0.0
    %v1541 = vmul.f32 %v1509, 0.0
    %v1542 = vmul.f32 %v1479, %v1510
    %v1543 = vmul.f32 %v1481, %v1511
    %v1544 = vmul.f32 %v1483, %v1512
    %v1545 = vmul.f32 %v1485, %v1513
    %v1546 = vadd.f32 %v1538, %v1542
    %v1547 = vadd.f32 %v1539, %v1543
    %v1548 = vadd.f32 %v1540, %v1544
    %v1549 = vadd.f32 %v1541, %v1545
    %v1550 = vtanh.pop %v1546
    %v1551 = vtanh.pop %v1547
    %v1552 = vtanh.pop %v1548
    %v1553 = vtanh.pop %v1549
    %v1554 = vmul.f32 %v1531, %v1550
    %v1555 = vmul.f32 %v1533, %v1551
    %v1556 = vmul.f32 %v1535, %v1552
    %v1557 = vmul.f32 %v1537, %v1553
    %v1558 = vld [vmem:[#allocation2 + $0x80] sm:$0xff]
    %v1559 = vld [vmem:[#allocation2 + $0x88] sm:$0xff]
    %v1560 = vld [vmem:[#allocation2 + $0x90] sm:$0xff]
    %v1561 = vld [vmem:[#allocation2 + $0x98] sm:$0xff]
    %v1562 = vld [vmem:[#allocation2 + $0xa0] sm:$0xff]
    %v1563 = vld [vmem:[#allocation2 + $0xa8] sm:$0xff]
    %v1564 = vld [vmem:[#allocation2 + $0xb0] sm:$0xff]
    %v1565 = vld [vmem:[#allocation2 + $0xb8] sm:$0xff]
    %v1566 = vld [vmem:[#allocation2 + $0xc0] sm:$0xff]
    %v1567 = vld [vmem:[#allocation2 + $0xc8] sm:$0xff]
    %v1568 = vld [vmem:[#allocation2 + $0xd0] sm:$0xff]
    %v1569 = vld [vmem:[#allocation2 + $0xd8] sm:$0xff]
    %v1570 = vld [vmem:[#allocation2 + $0xe0] sm:$0xff]
    %v1571 = vld [vmem:[#allocation2 + $0xe8] sm:$0xff]
    %v1572 = vld [vmem:[#allocation2 + $0xf0] sm:$0xff]
    %v1573 = vld [vmem:[#allocation2 + $0xf8] sm:$0xff]
    %1574 = vmatprep.subr.mxu0 %v883
    %1575 = vmatpush1.msra.mxu0 %v882
    %1576 = vmatprep.subr.mxu0 %v891
    %1577 = vmatpush1.msra.mxu0 %v890
    %1578 = vmatprep.subr.mxu0 %v899
    %1579 = vmatpush1.msra.mxu0 %v898
    %1580 = vmatprep.subr.mxu0 %v907
    %1581 = vmatpush1.msra.mxu0 %v906
    %1582 = vmatprep.subr.mxu0 %v915
    %1583 = vmatpush1.msra.mxu0 %v914
    %1584 = vmatprep.subr.mxu0 %v923
    %1585 = vmatpush1.msra.mxu0 %v922
    %1586 = vmatprep.subr.mxu0 %v931
    %1587 = vmatpush1.msra.mxu0 %v930
    %1588 = vmatprep.subr.mxu0 %v939
    %1589 = vmatpush1.msra.mxu0 %v938
    %1590 = vmatprep.subr.mxu0 %v947
    %1591 = vmatpush1.msra.mxu0 %v946
    %1592 = vmatprep.subr.mxu0 %v955
    %1593 = vmatpush1.msra.mxu0 %v954
    %1594 = vmatprep.subr.mxu0 %v963
    %1595 = vmatpush1.msra.mxu0 %v962
    %1596 = vmatprep.subr.mxu0 %v971
    %1597 = vmatpush1.msra.mxu0 %v970
    %1598 = vmatprep.subr.mxu0 %v979
    %1599 = vmatpush1.msra.mxu0 %v978
    %1600 = vmatprep.subr.mxu0 %v987
    %1601 = vmatpush1.msra.mxu0 %v986
    %1602 = vmatprep.subr.mxu0 %v995
    %1603 = vmatpush1.msra.mxu0 %v994
    %1604 = vmatprep.subr.mxu0 %v1003
    %1605 = vmatpush1.msra.mxu0 %v1002
    %1606 = vmatprep.subr.mxu0 %v1011
    %1607 = vmatpush1.msra.mxu0 %v1010
    %1608 = vmatprep.subr.mxu0 %v1019
    %1609 = vmatpush1.msra.mxu0 %v1018
    %1610 = vmatprep.subr.mxu0 %v1027
    %1611 = vmatpush1.msra.mxu0 %v1026
    %1612 = vmatprep.subr.mxu0 %v1035
    %1613 = vmatpush1.msra.mxu0 %v1034
    %1614 = vmatprep.subr.mxu0 %v1043
    %1615 = vmatpush1.msra.mxu0 %v1042
    %1616 = vmatprep.subr.mxu0 %v1051
    %1617 = vmatpush1.msra.mxu0 %v1050
    %1618 = vmatprep.subr.mxu0 %v1059
    %1619 = vmatpush1.msra.mxu0 %v1058
    %1620 = vmatprep.subr.mxu0 %v1067
    %1621 = vmatpush1.msra.mxu0 %v1066
    %1622 = vmatprep.subr.mxu0 %v1075
    %1623 = vmatpush1.msra.mxu0 %v1074
    %1624 = vmatprep.subr.mxu0 %v1083
    %1625 = vmatpush1.msra.mxu0 %v1082
    %1626 = vmatprep.subr.mxu0 %v1091
    %1627 = vmatpush1.msra.mxu0 %v1090
    %1628 = vmatprep.subr.mxu0 %v1099
    %1629 = vmatpush1.msra.mxu0 %v1098
    %1630 = vmatprep.subr.mxu0 %v1107
    %1631 = vmatpush1.msra.mxu0 %v1106
    %1632 = vmatprep.subr.mxu0 %v1115
    %1633 = vmatpush1.msra.mxu0 %v1114
    %1634 = vmatprep.subr.mxu0 %v1123
    %1635 = vmatpush1.msra.mxu0 %v1122
    %1636 = vmatprep.subr.mxu0 %v1131
    %1637 = vmatpush1.msra.mxu0 %v1130
    %1638 = vmatprep.mubr.f32.mxu0 %v1555
    %1639 = vmatmul.mubr.f32.gmra.mrb[0].mxu0 %v1554
    %v1640 = vpop.f32.mrb[0].mxu0
    %v1641 = vadd.f32 0.0, %v1640
    %v1642 = vpop.f32.mrb[0].mxu0
    %v1643 = vadd.f32 0.0, %v1642
    %1644 = vmatprep.mubr.f32.mxu0 %v1557
    %1645 = vmatmul.mubr.f32.gmra.mrb[0].mxu0 %v1556
    %v1646 = vpop.f32.mrb[0].mxu0
    %v1647 = vadd.f32 0.0, %v1646
    %v1648 = vpop.f32.mrb[0].mxu0
    %v1649 = vadd.f32 0.0, %v1648
    %1650 = vdwg.mxu0
    %1651 = vmatprep.subr.mxu0 %v885
    %1652 = vmatpush1.msra.mxu0 %v884
    %1653 = vmatprep.subr.mxu0 %v893
    %1654 = vmatpush1.msra.mxu0 %v892
    %1655 = vmatprep.subr.mxu0 %v901
    %1656 = vmatpush1.msra.mxu0 %v900
    %1657 = vmatprep.subr.mxu0 %v909
    %1658 = vmatpush1.msra.mxu0 %v908
    %1659 = vmatprep.subr.mxu0 %v917
    %1660 = vmatpush1.msra.mxu0 %v916
    %1661 = vmatprep.subr.mxu0 %v925
    %1662 = vmatpush1.msra.mxu0 %v924
    %1663 = vmatprep.subr.mxu0 %v933
    %1664 = vmatpush1.msra.mxu0 %v932
    %1665 = vmatprep.subr.mxu0 %v941
    %1666 = vmatpush1.msra.mxu0 %v940
    %1667 = vmatprep.subr.mxu0 %v949
    %1668 = vmatpush1.msra.mxu0 %v948
    %1669 = vmatprep.subr.mxu0 %v957
    %1670 = vmatpush1.msra.mxu0 %v956
    %1671 = vmatprep.subr.mxu0 %v965
    %1672 = vmatpush1.msra.mxu0 %v964
    %1673 = vmatprep.subr.mxu0 %v973
    %1674 = vmatpush1.msra.mxu0 %v972
    %1675 = vmatprep.subr.mxu0 %v981
    %1676 = vmatpush1.msra.mxu0 %v980
    %1677 = vmatprep.subr.mxu0 %v989
    %1678 = vmatpush1.msra.mxu0 %v988
    %1679 = vmatprep.subr.mxu0 %v997
    %1680 = vmatpush1.msra.mxu0 %v996
    %1681 = vmatprep.subr.mxu0 %v1005
    %1682 = vmatpush1.msra.mxu0 %v1004
    %1683 = vmatprep.subr.mxu0 %v1013
    %1684 = vmatpush1.msra.mxu0 %v1012
    %1685 = vmatprep.subr.mxu0 %v1021
    %1686 = vmatpush1.msra.mxu0 %v1020
    %1687 = vmatprep.subr.mxu0 %v1029
    %1688 = vmatpush1.msra.mxu0 %v1028
    %1689 = vmatprep.subr.mxu0 %v1037
    %1690 = vmatpush1.msra.mxu0 %v1036
    %1691 = vmatprep.subr.mxu0 %v1045
    %1692 = vmatpush1.msra.mxu0 %v1044
    %1693 = vmatprep.subr.mxu0 %v1053
    %1694 = vmatpush1.msra.mxu0 %v1052
    %1695 = vmatprep.subr.mxu0 %v1061
    %1696 = vmatpush1.msra.mxu0 %v1060
    %1697 = vmatprep.subr.mxu0 %v1069
    %1698 = vmatpush1.msra.mxu0 %v1068
    %1699 = vmatprep.subr.mxu0 %v1077
    %1700 = vmatpush1.msra.mxu0 %v1076
    %1701 = vmatprep.subr.mxu0 %v1085
    %1702 = vmatpush1.msra.mxu0 %v1084
    %1703 = vmatprep.subr.mxu0 %v1093
    %1704 = vmatpush1.msra.mxu0 %v1092
    %1705 = vmatprep.subr.mxu0 %v1101
    %1706 = vmatpush1.msra.mxu0 %v1100
    %1707 = vmatprep.subr.mxu0 %v1109
    %1708 = vmatpush1.msra.mxu0 %v1108
    %1709 = vmatprep.subr.mxu0 %v1117
    %1710 = vmatpush1.msra.mxu0 %v1116
    %1711 = vmatprep.subr.mxu0 %v1125
    %1712 = vmatpush1.msra.mxu0 %v1124
    %1713 = vmatprep.subr.mxu0 %v1133
    %1714 = vmatpush1.msra.mxu0 %v1132
    %1715 = vmatprep.mubr.f32.mxu0 %v1555
    %1716 = vmatmul.mubr.f32.gmra.mrb[0].mxu0 %v1554
    %v1717 = vpop.f32.mrb[0].mxu0
    %v1718 = vadd.f32 0.0, %v1717
    %v1719 = vpop.f32.mrb[0].mxu0
    %v1720 = vadd.f32 0.0, %v1719
    %1721 = vmatprep.mubr.f32.mxu0 %v1557
    %1722 = vmatmul.mubr.f32.gmra.mrb[0].mxu0 %v1556
    %v1723 = vpop.f32.mrb[0].mxu0
    %v1724 = vadd.f32 0.0, %v1723
    %v1725 = vpop.f32.mrb[0].mxu0
    %v1726 = vadd.f32 0.0, %v1725
    %1727 = vdwg.mxu0
    %1728 = vmatprep.subr.mxu0 %v887
    %1729 = vmatpush1.msra.mxu0 %v886
    %1730 = vmatprep.subr.mxu0 %v895
    %1731 = vmatpush1.msra.mxu0 %v894
    %1732 = vmatprep.subr.mxu0 %v903
    %1733 = vmatpush1.msra.mxu0 %v902
    %1734 = vmatprep.subr.mxu0 %v911
    %1735 = vmatpush1.msra.mxu0 %v910
    %1736 = vmatprep.subr.mxu0 %v919
    %1737 = vmatpush1.msra.mxu0 %v918
    %1738 = vmatprep.subr.mxu0 %v927
    %1739 = vmatpush1.msra.mxu0 %v926
    %1740 = vmatprep.subr.mxu0 %v935
    %1741 = vmatpush1.msra.mxu0 %v934
    %1742 = vmatprep.subr.mxu0 %v943
    %1743 = vmatpush1.msra.mxu0 %v942
    %1744 = vmatprep.subr.mxu0 %v951
    %1745 = vmatpush1.msra.mxu0 %v950
    %1746 = vmatprep.subr.mxu0 %v959
    %1747 = vmatpush1.msra.mxu0 %v958
    %1748 = vmatprep.subr.mxu0 %v967
    %1749 = vmatpush1.msra.mxu0 %v966
    %1750 = vmatprep.subr.mxu0 %v975
    %1751 = vmatpush1.msra.mxu0 %v974
    %1752 = vmatprep.subr.mxu0 %v983
    %1753 = vmatpush1.msra.mxu0 %v982
    %1754 = vmatprep.subr.mxu0 %v991
    %1755 = vmatpush1.msra.mxu0 %v990
    %1756 = vmatprep.subr.mxu0 %v999
    %1757 = vmatpush1.msra.mxu0 %v998
    %1758 = vmatprep.subr.mxu0 %v1007
    %1759 = vmatpush1.msra.mxu0 %v1006
    %1760 = vmatprep.subr.mxu0 %v1015
    %1761 = vmatpush1.msra.mxu0 %v1014
    %1762 = vmatprep.subr.mxu0 %v1023
    %1763 = vmatpush1.msra.mxu0 %v1022
    %1764 = vmatprep.subr.mxu0 %v1031
    %1765 = vmatpush1.msra.mxu0 %v1030
    %1766 = vmatprep.subr.mxu0 %v1039
    %1767 = vmatpush1.msra.mxu0 %v1038
    %1768 = vmatprep.subr.mxu0 %v1047
    %1769 = vmatpush1.msra.mxu0 %v1046
    %1770 = vmatprep.subr.mxu0 %v1055
    %1771 = vmatpush1.msra.mxu0 %v1054
    %1772 = vmatprep.subr.mxu0 %v1063
    %1773 = vmatpush1.msra.mxu0 %v1062
    %1774 = vmatprep.subr.mxu0 %v1071
    %1775 = vmatpush1.msra.mxu0 %v1070
    %1776 = vmatprep.subr.mxu0 %v1079
    %1777 = vmatpush1.msra.mxu0 %v1078
    %1778 = vmatprep.subr.mxu0 %v1087
    %1779 = vmatpush1.msra.mxu0 %v1086
    %1780 = vmatprep.subr.mxu0 %v1095
    %1781 = vmatpush1.msra.mxu0 %v1094
    %1782 = vmatprep.subr.mxu0 %v1103
    %1783 = vmatpush1.msra.mxu0 %v1102
    %1784 = vmatprep.subr.mxu0 %v1111
    %1785 = vmatpush1.msra.mxu0 %v1110
    %1786 = vmatprep.subr.mxu0 %v1119
    %1787 = vmatpush1.msra.mxu0 %v1118
    %1788 = vmatprep.subr.mxu0 %v1127
    %1789 = vmatpush1.msra.mxu0 %v1126
    %1790 = vmatprep.subr.mxu0 %v1135
    %1791 = vmatpush1.msra.mxu0 %v1134
    %1792 = vmatprep.mubr.f32.mxu0 %v1555
    %1793 = vmatmul.mubr.f32.gmra.mrb[0].mxu0 %v1554
    %v1794 = vpop.f32.mrb[0].mxu0
    %v1795 = vadd.f32 0.0, %v1794
    %v1796 = vpop.f32.mrb[0].mxu0
    %v1797 = vadd.f32 0.0, %v1796
    %1798 = vmatprep.mubr.f32.mxu0 %v1557
    %1799 = vmatmul.mubr.f32.gmra.mrb[0].mxu0 %v1556
    %v1800 = vpop.f32.mrb[0].mxu0
    %v1801 = vadd.f32 0.0, %v1800
    %v1802 = vpop.f32.mrb[0].mxu0
    %v1803 = vadd.f32 0.0, %v1802
    %1804 = vdwg.mxu0
    %1805 = vmatprep.subr.mxu0 %v889
    %1806 = vmatpush1.msra.mxu0 %v888
    %1807 = vmatprep.subr.mxu0 %v897
    %1808 = vmatpush1.msra.mxu0 %v896
    %1809 = vmatprep.subr.mxu0 %v905
    %1810 = vmatpush1.msra.mxu0 %v904
    %1811 = vmatprep.subr.mxu0 %v913
    %1812 = vmatpush1.msra.mxu0 %v912
    %1813 = vmatprep.subr.mxu0 %v921
    %1814 = vmatpush1.msra.mxu0 %v920
    %1815 = vmatprep.subr.mxu0 %v929
    %1816 = vmatpush1.msra.mxu0 %v928
    %1817 = vmatprep.subr.mxu0 %v937
    %1818 = vmatpush1.msra.mxu0 %v936
    %1819 = vmatprep.subr.mxu0 %v945
    %1820 = vmatpush1.msra.mxu0 %v944
    %1821 = vmatprep.subr.mxu0 %v953
    %1822 = vmatpush1.msra.mxu0 %v952
    %1823 = vmatprep.subr.mxu0 %v961
    %1824 = vmatpush1.msra.mxu0 %v960
    %1825 = vmatprep.subr.mxu0 %v969
    %1826 = vmatpush1.msra.mxu0 %v968
    %1827 = vmatprep.subr.mxu0 %v977
    %1828 = vmatpush1.msra.mxu0 %v976
    %1829 = vmatprep.subr.mxu0 %v985
    %1830 = vmatpush1.msra.mxu0 %v984
    %1831 = vmatprep.subr.mxu0 %v993
    %1832 = vmatpush1.msra.mxu0 %v992
    %1833 = vmatprep.subr.mxu0 %v1001
    %1834 = vmatpush1.msra.mxu0 %v1000
    %1835 = vmatprep.subr.mxu0 %v1009
    %1836 = vmatpush1.msra.mxu0 %v1008
    %1837 = vmatprep.subr.mxu0 %v1017
    %1838 = vmatpush1.msra.mxu0 %v1016
    %1839 = vmatprep.subr.mxu0 %v1025
    %1840 = vmatpush1.msra.mxu0 %v1024
    %1841 = vmatprep.subr.mxu0 %v1033
    %1842 = vmatpush1.msra.mxu0 %v1032
    %1843 = vmatprep.subr.mxu0 %v1041
    %1844 = vmatpush1.msra.mxu0 %v1040
    %1845 = vmatprep.subr.mxu0 %v1049
    %1846 = vmatpush1.msra.mxu0 %v1048
    %1847 = vmatprep.subr.mxu0 %v1057
    %1848 = vmatpush1.msra.mxu0 %v1056
    %1849 = vmatprep.subr.mxu0 %v1065
    %1850 = vmatpush1.msra.mxu0 %v1064
    %1851 = vmatprep.subr.mxu0 %v1073
    %1852 = vmatpush1.msra.mxu0 %v1072
    %1853 = vmatprep.subr.mxu0 %v1081
    %1854 = vmatpush1.msra.mxu0 %v1080
    %1855 = vmatprep.subr.mxu0 %v1089
    %1856 = vmatpush1.msra.mxu0 %v1088
    %1857 = vmatprep.subr.mxu0 %v1097
    %1858 = vmatpush1.msra.mxu0 %v1096
    %1859 = vmatprep.subr.mxu0 %v1105
    %1860 = vmatpush1.msra.mxu0 %v1104
    %1861 = vmatprep.subr.mxu0 %v1113
    %1862 = vmatpush1.msra.mxu0 %v1112
    %1863 = vmatprep.subr.mxu0 %v1121
    %1864 = vmatpush1.msra.mxu0 %v1120
    %1865 = vmatprep.subr.mxu0 %v1129
    %1866 = vmatpush1.msra.mxu0 %v1128
    %1867 = vmatprep.subr.mxu0 %v1137
    %1868 = vmatpush1.msra.mxu0 %v1136
    %1869 = vmatprep.mubr.f32.mxu0 %v1555
    %1870 = vmatmul.mubr.f32.gmra.mrb[0].mxu0 %v1554
    %v1871 = vpop.f32.mrb[0].mxu0
    %v1872 = vadd.f32 0.0, %v1871
    %v1873 = vpop.f32.mrb[0].mxu0
    %v1874 = vadd.f32 0.0, %v1873
    %1875 = vmatprep.mubr.f32.mxu0 %v1557
    %1876 = vmatmul.mubr.f32.gmra.mrb[0].mxu0 %v1556
    %v1877 = vpop.f32.mrb[0].mxu0
    %v1878 = vadd.f32 0.0, %v1877
    %v1879 = vpop.f32.mrb[0].mxu0
    %v1880 = vadd.f32 0.0, %v1879
    %1881 = vdwg.mxu0
    %v1882 = vadd.f32 %v1558, %v1641
    %v1883 = vadd.f32 %v1559, %v1643
    %v1884 = vadd.f32 %v1560, %v1718
    %v1885 = vadd.f32 %v1561, %v1720
    %v1886 = vadd.f32 %v1562, %v1795
    %v1887 = vadd.f32 %v1563, %v1797
    %v1888 = vadd.f32 %v1564, %v1872
    %v1889 = vadd.f32 %v1565, %v1874
    %v1890 = vadd.f32 %v1566, %v1647
    %v1891 = vadd.f32 %v1567, %v1649
    %v1892 = vadd.f32 %v1568, %v1724
    %v1893 = vadd.f32 %v1569, %v1726
    %v1894 = vadd.f32 %v1570, %v1801
    %v1895 = vadd.f32 %v1571, %v1803
    %v1896 = vadd.f32 %v1572, %v1878
    %v1897 = vadd.f32 %v1573, %v1880
    %v1898 = vxor.u32 %v1882, 2147483648
    %v1899 = vxor.u32 %v1883, 2147483648
    %v1900 = vxor.u32 %v1890, 2147483648
    %v1901 = vxor.u32 %v1891, 2147483648
    %v1902 = vmul.f32 %v1898, 1.442695
    %v1903 = vpow.pop %v1902
    %v1904 = vmul.f32 %v1899, 1.442695
    %v1905 = vpow.pop %v1904
    %v1906 = vmul.f32 %v1900, 1.442695
    %v1907 = vpow.pop %v1906
    %v1908 = vmul.f32 %v1901, 1.442695
    %v1909 = vpow.pop %v1908
    %v1910 = vadd.f32 %v1903, 1.0
    %v1911 = vadd.f32 %v1905, 1.0
    %v1912 = vadd.f32 %v1907, 1.0
    %v1913 = vadd.f32 %v1909, 1.0
    %v1914 = vrcp.pop %v1910
    %v1915 = vmul.f32 1.0, %v1914
    %v1916 = vrcp.pop %v1911
    %v1917 = vmul.f32 1.0, %v1916
    %v1918 = vrcp.pop %v1912
    %v1919 = vmul.f32 1.0, %v1918
    %v1920 = vrcp.pop %v1913
    %v1921 = vmul.f32 1.0, %v1920
    %v1922 = vxor.u32 %v1884, 2147483648
    %v1923 = vxor.u32 %v1885, 2147483648
    %v1924 = vxor.u32 %v1892, 2147483648
    %v1925 = vxor.u32 %v1893, 2147483648
    %v1926 = vmul.f32 %v1922, 1.442695
    %v1927 = vpow.pop %v1926
    %v1928 = vmul.f32 %v1923, 1.442695
    %v1929 = vpow.pop %v1928
    %v1930 = vmul.f32 %v1924, 1.442695
    %v1931 = vpow.pop %v1930
    %v1932 = vmul.f32 %v1925, 1.442695
    %v1933 = vpow.pop %v1932
    %v1934 = vadd.f32 %v1927, 1.0
    %v1935 = vadd.f32 %v1929, 1.0
    %v1936 = vadd.f32 %v1931, 1.0
    %v1937 = vadd.f32 %v1933, 1.0
    %v1938 = vrcp.pop %v1934
    %v1939 = vmul.f32 1.0, %v1938
    %v1940 = vrcp.pop %v1935
    %v1941 = vmul.f32 1.0, %v1940
    %v1942 = vrcp.pop %v1936
    %v1943 = vmul.f32 1.0, %v1942
    %v1944 = vrcp.pop %v1937
    %v1945 = vmul.f32 1.0, %v1944
    %v1946 = vtanh.pop %v1886
    %v1947 = vtanh.pop %v1887
    %v1948 = vtanh.pop %v1894
    %v1949 = vtanh.pop %v1895
    %v1950 = vxor.u32 %v1888, 2147483648
    %v1951 = vxor.u32 %v1889, 2147483648
    %v1952 = vxor.u32 %v1896, 2147483648
    %v1953 = vxor.u32 %v1897, 2147483648
    %v1954 = vmul.f32 %v1950, 1.442695
    %v1955 = vpow.pop %v1954
    %v1956 = vmul.f32 %v1951, 1.442695
    %v1957 = vpow.pop %v1956
    %v1958 = vmul.f32 %v1952, 1.442695
    %v1959 = vpow.pop %v1958
    %v1960 = vmul.f32 %v1953, 1.442695
    %v1961 = vpow.pop %v1960
    %v1962 = vadd.f32 %v1955, 1.0
    %v1963 = vadd.f32 %v1957, 1.0
    %v1964 = vadd.f32 %v1959, 1.0
    %v1965 = vadd.f32 %v1961, 1.0
    %v1966 = vrcp.pop %v1962
    %v1967 = vmul.f32 1.0, %v1966
    %v1968 = vrcp.pop %v1963
    %v1969 = vmul.f32 1.0, %v1968
    %v1970 = vrcp.pop %v1964
    %v1971 = vmul.f32 1.0, %v1970
    %v1972 = vrcp.pop %v1965
    %v1973 = vmul.f32 1.0, %v1972
    %v1974 = vmul.f32 %v1939, %v1546
    %v1975 = vmul.f32 %v1941, %v1547
    %v1976 = vmul.f32 %v1943, %v1548
    %v1977 = vmul.f32 %v1945, %v1549
    %v1978 = vmul.f32 %v1915, %v1946
    %v1979 = vmul.f32 %v1917, %v1947
    %v1980 = vmul.f32 %v1919, %v1948
    %v1981 = vmul.f32 %v1921, %v1949
    %v1982 = vadd.f32 %v1974, %v1978
    %v1983 = vadd.f32 %v1975, %v1979
    %v1984 = vadd.f32 %v1976, %v1980
    %v1985 = vadd.f32 %v1977, %v1981
    %v1986 = vtanh.pop %v1982
    %v1987 = vtanh.pop %v1983
    %v1988 = vtanh.pop %v1984
    %v1989 = vtanh.pop %v1985
    %v1990 = vmul.f32 %v1967, %v1986
    %v1991 = vmul.f32 %v1969, %v1987
    %v1992 = vmul.f32 %v1971, %v1988
    %v1993 = vmul.f32 %v1973, %v1989
    %v1994 = vld [vmem:[#allocation2 + $0x100] sm:$0xff]
    %v1995 = vld [vmem:[#allocation2 + $0x108] sm:$0xff]
    %v1996 = vld [vmem:[#allocation2 + $0x110] sm:$0xff]
    %v1997 = vld [vmem:[#allocation2 + $0x118] sm:$0xff]
    %v1998 = vld [vmem:[#allocation2 + $0x120] sm:$0xff]
    %v1999 = vld [vmem:[#allocation2 + $0x128] sm:$0xff]
    %v2000 = vld [vmem:[#allocation2 + $0x130] sm:$0xff]
    %v2001 = vld [vmem:[#allocation2 + $0x138] sm:$0xff]
    %v2002 = vld [vmem:[#allocation2 + $0x140] sm:$0xff]
    %v2003 = vld [vmem:[#allocation2 + $0x148] sm:$0xff]
    %v2004 = vld [vmem:[#allocation2 + $0x150] sm:$0xff]
    %v2005 = vld [vmem:[#allocation2 + $0x158] sm:$0xff]
    %v2006 = vld [vmem:[#allocation2 + $0x160] sm:$0xff]
    %v2007 = vld [vmem:[#allocation2 + $0x168] sm:$0xff]
    %v2008 = vld [vmem:[#allocation2 + $0x170] sm:$0xff]
    %v2009 = vld [vmem:[#allocation2 + $0x178] sm:$0xff]
    %2010 = vmatprep.subr.mxu0 %v883
    %2011 = vmatpush1.msra.mxu0 %v882
    %2012 = vmatprep.subr.mxu0 %v891
    %2013 = vmatpush1.msra.mxu0 %v890
    %2014 = vmatprep.subr.mxu0 %v899
    %2015 = vmatpush1.msra.mxu0 %v898
    %2016 = vmatprep.subr.mxu0 %v907
    %2017 = vmatpush1.msra.mxu0 %v906
    %2018 = vmatprep.subr.mxu0 %v915
    %2019 = vmatpush1.msra.mxu0 %v914
    %2020 = vmatprep.subr.mxu0 %v923
    %2021 = vmatpush1.msra.mxu0 %v922
    %2022 = vmatprep.subr.mxu0 %v931
    %2023 = vmatpush1.msra.mxu0 %v930
    %2024 = vmatprep.subr.mxu0 %v939
    %2025 = vmatpush1.msra.mxu0 %v938
    %2026 = vmatprep.subr.mxu0 %v947
    %2027 = vmatpush1.msra.mxu0 %v946
    %2028 = vmatprep.subr.mxu0 %v955
    %2029 = vmatpush1.msra.mxu0 %v954
    %2030 = vmatprep.subr.mxu0 %v963
    %2031 = vmatpush1.msra.mxu0 %v962
    %2032 = vmatprep.subr.mxu0 %v971
    %2033 = vmatpush1.msra.mxu0 %v970
    %2034 = vmatprep.subr.mxu0 %v979
    %2035 = vmatpush1.msra.mxu0 %v978
    %2036 = vmatprep.subr.mxu0 %v987
    %2037 = vmatpush1.msra.mxu0 %v986
    %2038 = vmatprep.subr.mxu0 %v995
    %2039 = vmatpush1.msra.mxu0 %v994
    %2040 = vmatprep.subr.mxu0 %v1003
    %2041 = vmatpush1.msra.mxu0 %v1002
    %2042 = vmatprep.subr.mxu0 %v1011
    %2043 = vmatpush1.msra.mxu0 %v1010
    %2044 = vmatprep.subr.mxu0 %v1019
    %2045 = vmatpush1.msra.mxu0 %v1018
    %2046 = vmatprep.subr.mxu0 %v1027
    %2047 = vmatpush1.msra.mxu0 %v1026
    %2048 = vmatprep.subr.mxu0 %v1035
    %2049 = vmatpush1.msra.mxu0 %v1034
    %2050 = vmatprep.subr.mxu0 %v1043
    %2051 = vmatpush1.msra.mxu0 %v1042
    %2052 = vmatprep.subr.mxu0 %v1051
    %2053 = vmatpush1.msra.mxu0 %v1050
    %2054 = vmatprep.subr.mxu0 %v1059
    %2055 = vmatpush1.msra.mxu0 %v1058
    %2056 = vmatprep.subr.mxu0 %v1067
    %2057 = vmatpush1.msra.mxu0 %v1066
    %2058 = vmatprep.subr.mxu0 %v1075
    %2059 = vmatpush1.msra.mxu0 %v1074
    %2060 = vmatprep.subr.mxu0 %v1083
    %2061 = vmatpush1.msra.mxu0 %v1082
    %2062 = vmatprep.subr.mxu0 %v1091
    %2063 = vmatpush1.msra.mxu0 %v1090
    %2064 = vmatprep.subr.mxu0 %v1099
    %2065 = vmatpush1.msra.mxu0 %v1098
    %2066 = vmatprep.subr.mxu0 %v1107
    %2067 = vmatpush1.msra.mxu0 %v1106
    %2068 = vmatprep.subr.mxu0 %v1115
    %2069 = vmatpush1.msra.mxu0 %v1114
    %2070 = vmatprep.subr.mxu0 %v1123
    %2071 = vmatpush1.msra.mxu0 %v1122
    %2072 = vmatprep.subr.mxu0 %v1131
    %2073 = vmatpush1.msra.mxu0 %v1130
    %2074 = vmatprep.mubr.f32.mxu0 %v1991
    %2075 = vmatmul.mubr.f32.gmra.mrb[0].mxu0 %v1990
    %v2076 = vpop.f32.mrb[0].mxu0
    %v2077 = vadd.f32 0.0, %v2076
    %v2078 = vpop.f32.mrb[0].mxu0
    %v2079 = vadd.f32 0.0, %v2078
    %2080 = vmatprep.mubr.f32.mxu0 %v1993
    %2081 = vmatmul.mubr.f32.gmra.mrb[0].mxu0 %v1992
    %v2082 = vpop.f32.mrb[0].mxu0
    %v2083 = vadd.f32 0.0, %v2082
    %v2084 = vpop.f32.mrb[0].mxu0
    %v2085 = vadd.f32 0.0, %v2084
    %2086 = vdwg.mxu0
    %2087 = vmatprep.subr.mxu0 %v885
    %2088 = vmatpush1.msra.mxu0 %v884
    %2089 = vmatprep.subr.mxu0 %v893
    %2090 = vmatpush1.msra.mxu0 %v892
    %2091 = vmatprep.subr.mxu0 %v901
    %2092 = vmatpush1.msra.mxu0 %v900
    %2093 = vmatprep.subr.mxu0 %v909
    %2094 = vmatpush1.msra.mxu0 %v908
    %2095 = vmatprep.subr.mxu0 %v917
    %2096 = vmatpush1.msra.mxu0 %v916
    %2097 = vmatprep.subr.mxu0 %v925
    %2098 = vmatpush1.msra.mxu0 %v924
    %2099 = vmatprep.subr.mxu0 %v933
    %2100 = vmatpush1.msra.mxu0 %v932
    %2101 = vmatprep.subr.mxu0 %v941
    %2102 = vmatpush1.msra.mxu0 %v940
    %2103 = vmatprep.subr.mxu0 %v949
    %2104 = vmatpush1.msra.mxu0 %v948
    %2105 = vmatprep.subr.mxu0 %v957
    %2106 = vmatpush1.msra.mxu0 %v956
    %2107 = vmatprep.subr.mxu0 %v965
    %2108 = vmatpush1.msra.mxu0 %v964
    %2109 = vmatprep.subr.mxu0 %v973
    %2110 = vmatpush1.msra.mxu0 %v972
    %2111 = vmatprep.subr.mxu0 %v981
    %2112 = vmatpush1.msra.mxu0 %v980
    %2113 = vmatprep.subr.mxu0 %v989
    %2114 = vmatpush1.msra.mxu0 %v988
    %2115 = vmatprep.subr.mxu0 %v997
    %2116 = vmatpush1.msra.mxu0 %v996
    %2117 = vmatprep.subr.mxu0 %v1005
    %2118 = vmatpush1.msra.mxu0 %v1004
    %2119 = vmatprep.subr.mxu0 %v1013
    %2120 = vmatpush1.msra.mxu0 %v1012
    %2121 = vmatprep.subr.mxu0 %v1021
    %2122 = vmatpush1.msra.mxu0 %v1020
    %2123 = vmatprep.subr.mxu0 %v1029
    %2124 = vmatpush1.msra.mxu0 %v1028
    %2125 = vmatprep.subr.mxu0 %v1037
    %2126 = vmatpush1.msra.mxu0 %v1036
    %2127 = vmatprep.subr.mxu0 %v1045
    %2128 = vmatpush1.msra.mxu0 %v1044
    %2129 = vmatprep.subr.mxu0 %v1053
    %2130 = vmatpush1.msra.mxu0 %v1052
    %2131 = vmatprep.subr.mxu0 %v1061
    %2132 = vmatpush1.msra.mxu0 %v1060
    %2133 = vmatprep.subr.mxu0 %v1069
    %2134 = vmatpush1.msra.mxu0 %v1068
    %2135 = vmatprep.subr.mxu0 %v1077
    %2136 = vmatpush1.msra.mxu0 %v1076
    %2137 = vmatprep.subr.mxu0 %v1085
    %2138 = vmatpush1.msra.mxu0 %v1084
    %2139 = vmatprep.subr.mxu0 %v1093
    %2140 = vmatpush1.msra.mxu0 %v1092
    %2141 = vmatprep.subr.mxu0 %v1101
    %2142 = vmatpush1.msra.mxu0 %v1100
    %2143 = vmatprep.subr.mxu0 %v1109
    %2144 = vmatpush1.msra.mxu0 %v1108
    %2145 = vmatprep.subr.mxu0 %v1117
    %2146 = vmatpush1.msra.mxu0 %v1116
    %2147 = vmatprep.subr.mxu0 %v1125
    %2148 = vmatpush1.msra.mxu0 %v1124
    %2149 = vmatprep.subr.mxu0 %v1133
    %2150 = vmatpush1.msra.mxu0 %v1132
    %2151 = vmatprep.mubr.f32.mxu0 %v1991
    %2152 = vmatmul.mubr.f32.gmra.mrb[0].mxu0 %v1990
    %v2153 = vpop.f32.mrb[0].mxu0
    %v2154 = vadd.f32 0.0, %v2153
    %v2155 = vpop.f32.mrb[0].mxu0
    %v2156 = vadd.f32 0.0, %v2155
    %2157 = vmatprep.mubr.f32.mxu0 %v1993
    %2158 = vmatmul.mubr.f32.gmra.mrb[0].mxu0 %v1992
    %v2159 = vpop.f32.mrb[0].mxu0
    %v2160 = vadd.f32 0.0, %v2159
    %v2161 = vpop.f32.mrb[0].mxu0
    %v2162 = vadd.f32 0.0, %v2161
    %2163 = vdwg.mxu0
    %2164 = vmatprep.subr.mxu0 %v887
    %2165 = vmatpush1.msra.mxu0 %v886
    %2166 = vmatprep.subr.mxu0 %v895
    %2167 = vmatpush1.msra.mxu0 %v894
    %2168 = vmatprep.subr.mxu0 %v903
    %2169 = vmatpush1.msra.mxu0 %v902
    %2170 = vmatprep.subr.mxu0 %v911
    %2171 = vmatpush1.msra.mxu0 %v910
    %2172 = vmatprep.subr.mxu0 %v919
    %2173 = vmatpush1.msra.mxu0 %v918
    %2174 = vmatprep.subr.mxu0 %v927
    %2175 = vmatpush1.msra.mxu0 %v926
    %2176 = vmatprep.subr.mxu0 %v935
    %2177 = vmatpush1.msra.mxu0 %v934
    %2178 = vmatprep.subr.mxu0 %v943
    %2179 = vmatpush1.msra.mxu0 %v942
    %2180 = vmatprep.subr.mxu0 %v951
    %2181 = vmatpush1.msra.mxu0 %v950
    %2182 = vmatprep.subr.mxu0 %v959
    %2183 = vmatpush1.msra.mxu0 %v958
    %2184 = vmatprep.subr.mxu0 %v967
    %2185 = vmatpush1.msra.mxu0 %v966
    %2186 = vmatprep.subr.mxu0 %v975
    %2187 = vmatpush1.msra.mxu0 %v974
    %2188 = vmatprep.subr.mxu0 %v983
    %2189 = vmatpush1.msra.mxu0 %v982
    %2190 = vmatprep.subr.mxu0 %v991
    %2191 = vmatpush1.msra.mxu0 %v990
    %2192 = vmatprep.subr.mxu0 %v999
    %2193 = vmatpush1.msra.mxu0 %v998
    %2194 = vmatprep.subr.mxu0 %v1007
    %2195 = vmatpush1.msra.mxu0 %v1006
    %2196 = vmatprep.subr.mxu0 %v1015
    %2197 = vmatpush1.msra.mxu0 %v1014
    %2198 = vmatprep.subr.mxu0 %v1023
    %2199 = vmatpush1.msra.mxu0 %v1022
    %2200 = vmatprep.subr.mxu0 %v1031
    %2201 = vmatpush1.msra.mxu0 %v1030
    %2202 = vmatprep.subr.mxu0 %v1039
    %2203 = vmatpush1.msra.mxu0 %v1038
    %2204 = vmatprep.subr.mxu0 %v1047
    %2205 = vmatpush1.msra.mxu0 %v1046
    %2206 = vmatprep.subr.mxu0 %v1055
    %2207 = vmatpush1.msra.mxu0 %v1054
    %2208 = vmatprep.subr.mxu0 %v1063
    %2209 = vmatpush1.msra.mxu0 %v1062
    %2210 = vmatprep.subr.mxu0 %v1071
    %2211 = vmatpush1.msra.mxu0 %v1070
    %2212 = vmatprep.subr.mxu0 %v1079
    %2213 = vmatpush1.msra.mxu0 %v1078
    %2214 = vmatprep.subr.mxu0 %v1087
    %2215 = vmatpush1.msra.mxu0 %v1086
    %2216 = vmatprep.subr.mxu0 %v1095
    %2217 = vmatpush1.msra.mxu0 %v1094
    %2218 = vmatprep.subr.mxu0 %v1103
    %2219 = vmatpush1.msra.mxu0 %v1102
    %2220 = vmatprep.subr.mxu0 %v1111
    %2221 = vmatpush1.msra.mxu0 %v1110
    %2222 = vmatprep.subr.mxu0 %v1119
    %2223 = vmatpush1.msra.mxu0 %v1118
    %2224 = vmatprep.subr.mxu0 %v1127
    %2225 = vmatpush1.msra.mxu0 %v1126
    %2226 = vmatprep.subr.mxu0 %v1135
    %2227 = vmatpush1.msra.mxu0 %v1134
    %2228 = vmatprep.mubr.f32.mxu0 %v1991
    %2229 = vmatmul.mubr.f32.gmra.mrb[0].mxu0 %v1990
    %v2230 = vpop.f32.mrb[0].mxu0
    %v2231 = vadd.f32 0.0, %v2230
    %v2232 = vpop.f32.mrb[0].mxu0
    %v2233 = vadd.f32 0.0, %v2232
    %2234 = vmatprep.mubr.f32.mxu0 %v1993
    %2235 = vmatmul.mubr.f32.gmra.mrb[0].mxu0 %v1992
    %v2236 = vpop.f32.mrb[0].mxu0
    %v2237 = vadd.f32 0.0, %v2236
    %v2238 = vpop.f32.mrb[0].mxu0
    %v2239 = vadd.f32 0.0, %v2238
    %2240 = vdwg.mxu0
    %2241 = vmatprep.subr.mxu0 %v889
    %2242 = vmatpush1.msra.mxu0 %v888
    %2243 = vmatprep.subr.mxu0 %v897
    %2244 = vmatpush1.msra.mxu0 %v896
    %2245 = vmatprep.subr.mxu0 %v905
    %2246 = vmatpush1.msra.mxu0 %v904
    %2247 = vmatprep.subr.mxu0 %v913
    %2248 = vmatpush1.msra.mxu0 %v912
    %2249 = vmatprep.subr.mxu0 %v921
    %2250 = vmatpush1.msra.mxu0 %v920
    %2251 = vmatprep.subr.mxu0 %v929
    %2252 = vmatpush1.msra.mxu0 %v928
    %2253 = vmatprep.subr.mxu0 %v937
    %2254 = vmatpush1.msra.mxu0 %v936
    %2255 = vmatprep.subr.mxu0 %v945
    %2256 = vmatpush1.msra.mxu0 %v944
    %2257 = vmatprep.subr.mxu0 %v953
    %2258 = vmatpush1.msra.mxu0 %v952
    %2259 = vmatprep.subr.mxu0 %v961
    %2260 = vmatpush1.msra.mxu0 %v960
    %2261 = vmatprep.subr.mxu0 %v969
    %2262 = vmatpush1.msra.mxu0 %v968
    %2263 = vmatprep.subr.mxu0 %v977
    %2264 = vmatpush1.msra.mxu0 %v976
    %2265 = vmatprep.subr.mxu0 %v985
    %2266 = vmatpush1.msra.mxu0 %v984
    %2267 = vmatprep.subr.mxu0 %v993
    %2268 = vmatpush1.msra.mxu0 %v992
    %2269 = vmatprep.subr.mxu0 %v1001
    %2270 = vmatpush1.msra.mxu0 %v1000
    %2271 = vmatprep.subr.mxu0 %v1009
    %2272 = vmatpush1.msra.mxu0 %v1008
    %2273 = vmatprep.subr.mxu0 %v1017
    %2274 = vmatpush1.msra.mxu0 %v1016
    %2275 = vmatprep.subr.mxu0 %v1025
    %2276 = vmatpush1.msra.mxu0 %v1024
    %2277 = vmatprep.subr.mxu0 %v1033
    %2278 = vmatpush1.msra.mxu0 %v1032
    %2279 = vmatprep.subr.mxu0 %v1041
    %2280 = vmatpush1.msra.mxu0 %v1040
    %2281 = vmatprep.subr.mxu0 %v1049
    %2282 = vmatpush1.msra.mxu0 %v1048
    %2283 = vmatprep.subr.mxu0 %v1057
    %2284 = vmatpush1.msra.mxu0 %v1056
    %2285 = vmatprep.subr.mxu0 %v1065
    %2286 = vmatpush1.msra.mxu0 %v1064
    %2287 = vmatprep.subr.mxu0 %v1073
    %2288 = vmatpush1.msra.mxu0 %v1072
    %2289 = vmatprep.subr.mxu0 %v1081
    %2290 = vmatpush1.msra.mxu0 %v1080
    %2291 = vmatprep.subr.mxu0 %v1089
    %2292 = vmatpush1.msra.mxu0 %v1088
    %2293 = vmatprep.subr.mxu0 %v1097
    %2294 = vmatpush1.msra.mxu0 %v1096
    %2295 = vmatprep.subr.mxu0 %v1105
    %2296 = vmatpush1.msra.mxu0 %v1104
    %2297 = vmatprep.subr.mxu0 %v1113
    %2298 = vmatpush1.msra.mxu0 %v1112
    %2299 = vmatprep.subr.mxu0 %v1121
    %2300 = vmatpush1.msra.mxu0 %v1120
    %2301 = vmatprep.subr.mxu0 %v1129
    %2302 = vmatpush1.msra.mxu0 %v1128
    %2303 = vmatprep.subr.mxu0 %v1137
    %2304 = vmatpush1.msra.mxu0 %v1136
    %2305 = vmatprep.mubr.f32.mxu0 %v1991
    %2306 = vmatmul.mubr.f32.gmra.mrb[0].mxu0 %v1990
    %v2307 = vpop.f32.mrb[0].mxu0
    %v2308 = vadd.f32 0.0, %v2307
    %v2309 = vpop.f32.mrb[0].mxu0
    %v2310 = vadd.f32 0.0, %v2309
    %2311 = vmatprep.mubr.f32.mxu0 %v1993
    %2312 = vmatmul.mubr.f32.gmra.mrb[0].mxu0 %v1992
    %v2313 = vpop.f32.mrb[0].mxu0
    %v2314 = vadd.f32 0.0, %v2313
    %v2315 = vpop.f32.mrb[0].mxu0
    %v2316 = vadd.f32 0.0, %v2315
    %2317 = vdwg.mxu0
    %v2318 = vadd.f32 %v1994, %v2077
    %v2319 = vadd.f32 %v1995, %v2079
    %v2320 = vadd.f32 %v1996, %v2154
    %v2321 = vadd.f32 %v1997, %v2156
    %v2322 = vadd.f32 %v1998, %v2231
    %v2323 = vadd.f32 %v1999, %v2233
    %v2324 = vadd.f32 %v2000, %v2308
    %v2325 = vadd.f32 %v2001, %v2310
    %v2326 = vadd.f32 %v2002, %v2083
    %v2327 = vadd.f32 %v2003, %v2085
    %v2328 = vadd.f32 %v2004, %v2160
    %v2329 = vadd.f32 %v2005, %v2162
    %v2330 = vadd.f32 %v2006, %v2237
    %v2331 = vadd.f32 %v2007, %v2239
    %v2332 = vadd.f32 %v2008, %v2314
    %v2333 = vadd.f32 %v2009, %v2316
    %v2334 = vxor.u32 %v2318, 2147483648
    %v2335 = vxor.u32 %v2319, 2147483648
    %v2336 = vxor.u32 %v2326, 2147483648
    %v2337 = vxor.u32 %v2327, 2147483648
    %v2338 = vmul.f32 %v2334, 1.442695
    %v2339 = vpow.pop %v2338
    %v2340 = vmul.f32 %v2335, 1.442695
    %v2341 = vpow.pop %v2340
    %v2342 = vmul.f32 %v2336, 1.442695
    %v2343 = vpow.pop %v2342
    %v2344 = vmul.f32 %v2337, 1.442695
    %v2345 = vpow.pop %v2344
    %v2346 = vadd.f32 %v2339, 1.0
    %v2347 = vadd.f32 %v2341, 1.0
    %v2348 = vadd.f32 %v2343, 1.0
    %v2349 = vadd.f32 %v2345, 1.0
    %v2350 = vrcp.pop %v2346
    %v2351 = vmul.f32 1.0, %v2350
    %v2352 = vrcp.pop %v2347
    %v2353 = vmul.f32 1.0, %v2352
    %v2354 = vrcp.pop %v2348
    %v2355 = vmul.f32 1.0, %v2354
    %v2356 = vrcp.pop %v2349
    %v2357 = vmul.f32 1.0, %v2356
    %v2358 = vxor.u32 %v2320, 2147483648
    %v2359 = vxor.u32 %v2321, 2147483648
    %v2360 = vxor.u32 %v2328, 2147483648
    %v2361 = vxor.u32 %v2329, 2147483648
    %v2362 = vmul.f32 %v2358, 1.442695
    %v2363 = vpow.pop %v2362
    %v2364 = vmul.f32 %v2359, 1.442695
    %v2365 = vpow.pop %v2364
    %v2366 = vmul.f32 %v2360, 1.442695
    %v2367 = vpow.pop %v2366
    %v2368 = vmul.f32 %v2361, 1.442695
    %v2369 = vpow.pop %v2368
    %v2370 = vadd.f32 %v2363, 1.0
    %v2371 = vadd.f32 %v2365, 1.0
    %v2372 = vadd.f32 %v2367, 1.0
    %v2373 = vadd.f32 %v2369, 1.0
    %v2374 = vrcp.pop %v2370
    %v2375 = vmul.f32 1.0, %v2374
    %v2376 = vrcp.pop %v2371
    %v2377 = vmul.f32 1.0, %v2376
    %v2378 = vrcp.pop %v2372
    %v2379 = vmul.f32 1.0, %v2378
    %v2380 = vrcp.pop %v2373
    %v2381 = vmul.f32 1.0, %v2380
    %v2382 = vtanh.pop %v2322
    %v2383 = vtanh.pop %v2323
    %v2384 = vtanh.pop %v2330
    %v2385 = vtanh.pop %v2331
    %v2386 = vxor.u32 %v2324, 2147483648
    %v2387 = vxor.u32 %v2325, 2147483648
    %v2388 = vxor.u32 %v2332, 2147483648
    %v2389 = vxor.u32 %v2333, 2147483648
    %v2390 = vmul.f32 %v2386, 1.442695
    %v2391 = vpow.pop %v2390
    %v2392 = vmul.f32 %v2387, 1.442695
    %v2393 = vpow.pop %v2392
    %v2394 = vmul.f32 %v2388, 1.442695
    %v2395 = vpow.pop %v2394
    %v2396 = vmul.f32 %v2389, 1.442695
    %v2397 = vpow.pop %v2396
    %v2398 = vadd.f32 %v2391, 1.0
    %v2399 = vadd.f32 %v2393, 1.0
    %v2400 = vadd.f32 %v2395, 1.0
    %v2401 = vadd.f32 %v2397, 1.0
    %v2402 = vrcp.pop %v2398
    %v2403 = vmul.f32 1.0, %v2402
    %v2404 = vrcp.pop %v2399
    %v2405 = vmul.f32 1.0, %v2404
    %v2406 = vrcp.pop %v2400
    %v2407 = vmul.f32 1.0, %v2406
    %v2408 = vrcp.pop %v2401
    %v2409 = vmul.f32 1.0, %v2408
    %v2410 = vmul.f32 %v2375, %v1982
    %v2411 = vmul.f32 %v2377, %v1983
    %v2412 = vmul.f32 %v2379, %v1984
    %v2413 = vmul.f32 %v2381, %v1985
    %v2414 = vmul.f32 %v2351, %v2382
    %v2415 = vmul.f32 %v2353, %v2383
    %v2416 = vmul.f32 %v2355, %v2384
    %v2417 = vmul.f32 %v2357, %v2385
    %v2418 = vadd.f32 %v2410, %v2414
    %v2419 = vadd.f32 %v2411, %v2415
    %v2420 = vadd.f32 %v2412, %v2416
    %v2421 = vadd.f32 %v2413, %v2417
    %v2422 = vtanh.pop %v2418
    %v2423 = vtanh.pop %v2419
    %v2424 = vtanh.pop %v2420
    %v2425 = vtanh.pop %v2421
    %v2426 = vmul.f32 %v2403, %v2422
    %v2427 = vmul.f32 %v2405, %v2423
    %v2428 = vmul.f32 %v2407, %v2424
    %v2429 = vmul.f32 %v2409, %v2425
    %v2430 = vld [vmem:[#allocation2 + $0x180] sm:$0xff]
    %v2431 = vld [vmem:[#allocation2 + $0x188] sm:$0xff]
    %v2432 = vld [vmem:[#allocation2 + $0x190] sm:$0xff]
    %v2433 = vld [vmem:[#allocation2 + $0x198] sm:$0xff]
    %v2434 = vld [vmem:[#allocation2 + $0x1a0] sm:$0xff]
    %v2435 = vld [vmem:[#allocation2 + $0x1a8] sm:$0xff]
    %v2436 = vld [vmem:[#allocation2 + $0x1b0] sm:$0xff]
    %v2437 = vld [vmem:[#allocation2 + $0x1b8] sm:$0xff]
    %v2438 = vld [vmem:[#allocation2 + $0x1c0] sm:$0xff]
    %v2439 = vld [vmem:[#allocation2 + $0x1c8] sm:$0xff]
    %v2440 = vld [vmem:[#allocation2 + $0x1d0] sm:$0xff]
    %v2441 = vld [vmem:[#allocation2 + $0x1d8] sm:$0xff]
    %v2442 = vld [vmem:[#allocation2 + $0x1e0] sm:$0xff]
    %v2443 = vld [vmem:[#allocation2 + $0x1e8] sm:$0xff]
    %v2444 = vld [vmem:[#allocation2 + $0x1f0] sm:$0xff]
    %v2445 = vld [vmem:[#allocation2 + $0x1f8] sm:$0xff]
    %2446 = vmatprep.subr.mxu0 %v883
    %2447 = vmatpush1.msra.mxu0 %v882
    %2448 = vmatprep.subr.mxu0 %v891
    %2449 = vmatpush1.msra.mxu0 %v890
    %2450 = vmatprep.subr.mxu0 %v899
    %2451 = vmatpush1.msra.mxu0 %v898
    %2452 = vmatprep.subr.mxu0 %v907
    %2453 = vmatpush1.msra.mxu0 %v906
    %2454 = vmatprep.subr.mxu0 %v915
    %2455 = vmatpush1.msra.mxu0 %v914
    %2456 = vmatprep.subr.mxu0 %v923
    %2457 = vmatpush1.msra.mxu0 %v922
    %2458 = vmatprep.subr.mxu0 %v931
    %2459 = vmatpush1.msra.mxu0 %v930
    %2460 = vmatprep.subr.mxu0 %v939
    %2461 = vmatpush1.msra.mxu0 %v938
    %2462 = vmatprep.subr.mxu0 %v947
    %2463 = vmatpush1.msra.mxu0 %v946
    %2464 = vmatprep.subr.mxu0 %v955
    %2465 = vmatpush1.msra.mxu0 %v954
    %2466 = vmatprep.subr.mxu0 %v963
    %2467 = vmatpush1.msra.mxu0 %v962
    %2468 = vmatprep.subr.mxu0 %v971
    %2469 = vmatpush1.msra.mxu0 %v970
    %2470 = vmatprep.subr.mxu0 %v979
    %2471 = vmatpush1.msra.mxu0 %v978
    %2472 = vmatprep.subr.mxu0 %v987
    %2473 = vmatpush1.msra.mxu0 %v986
    %2474 = vmatprep.subr.mxu0 %v995
    %2475 = vmatpush1.msra.mxu0 %v994
    %2476 = vmatprep.subr.mxu0 %v1003
    %2477 = vmatpush1.msra.mxu0 %v1002
    %2478 = vmatprep.subr.mxu0 %v1011
    %2479 = vmatpush1.msra.mxu0 %v1010
    %2480 = vmatprep.subr.mxu0 %v1019
    %2481 = vmatpush1.msra.mxu0 %v1018
    %2482 = vmatprep.subr.mxu0 %v1027
    %2483 = vmatpush1.msra.mxu0 %v1026
    %2484 = vmatprep.subr.mxu0 %v1035
    %2485 = vmatpush1.msra.mxu0 %v1034
    %2486 = vmatprep.subr.mxu0 %v1043
    %2487 = vmatpush1.msra.mxu0 %v1042
    %2488 = vmatprep.subr.mxu0 %v1051
    %2489 = vmatpush1.msra.mxu0 %v1050
    %2490 = vmatprep.subr.mxu0 %v1059
    %2491 = vmatpush1.msra.mxu0 %v1058
    %2492 = vmatprep.subr.mxu0 %v1067
    %2493 = vmatpush1.msra.mxu0 %v1066
    %2494 = vmatprep.subr.mxu0 %v1075
    %2495 = vmatpush1.msra.mxu0 %v1074
    %2496 = vmatprep.subr.mxu0 %v1083
    %2497 = vmatpush1.msra.mxu0 %v1082
    %2498 = vmatprep.subr.mxu0 %v1091
    %2499 = vmatpush1.msra.mxu0 %v1090
    %2500 = vmatprep.subr.mxu0 %v1099
    %2501 = vmatpush1.msra.mxu0 %v1098
    %2502 = vmatprep.subr.mxu0 %v1107
    %2503 = vmatpush1.msra.mxu0 %v1106
    %2504 = vmatprep.subr.mxu0 %v1115
    %2505 = vmatpush1.msra.mxu0 %v1114
    %2506 = vmatprep.subr.mxu0 %v1123
    %2507 = vmatpush1.msra.mxu0 %v1122
    %2508 = vmatprep.subr.mxu0 %v1131
    %2509 = vmatpush1.msra.mxu0 %v1130
    %2510 = vmatprep.mubr.f32.mxu0 %v2427
    %2511 = vmatmul.mubr.f32.gmra.mrb[0].mxu0 %v2426
    %v2512 = vpop.f32.mrb[0].mxu0
    %v2513 = vadd.f32 0.0, %v2512
    %v2514 = vpop.f32.mrb[0].mxu0
    %v2515 = vadd.f32 0.0, %v2514
    %2516 = vmatprep.mubr.f32.mxu0 %v2429
    %2517 = vmatmul.mubr.f32.gmra.mrb[0].mxu0 %v2428
    %v2518 = vpop.f32.mrb[0].mxu0
    %v2519 = vadd.f32 0.0, %v2518
    %v2520 = vpop.f32.mrb[0].mxu0
    %v2521 = vadd.f32 0.0, %v2520
    %2522 = vdwg.mxu0
    %2523 = vmatprep.subr.mxu0 %v885
    %2524 = vmatpush1.msra.mxu0 %v884
    %2525 = vmatprep.subr.mxu0 %v893
    %2526 = vmatpush1.msra.mxu0 %v892
    %2527 = vmatprep.subr.mxu0 %v901
    %2528 = vmatpush1.msra.mxu0 %v900
    %2529 = vmatprep.subr.mxu0 %v909
    %2530 = vmatpush1.msra.mxu0 %v908
    %2531 = vmatprep.subr.mxu0 %v917
    %2532 = vmatpush1.msra.mxu0 %v916
    %2533 = vmatprep.subr.mxu0 %v925
    %2534 = vmatpush1.msra.mxu0 %v924
    %2535 = vmatprep.subr.mxu0 %v933
    %2536 = vmatpush1.msra.mxu0 %v932
    %2537 = vmatprep.subr.mxu0 %v941
    %2538 = vmatpush1.msra.mxu0 %v940
    %2539 = vmatprep.subr.mxu0 %v949
    %2540 = vmatpush1.msra.mxu0 %v948
    %2541 = vmatprep.subr.mxu0 %v957
    %2542 = vmatpush1.msra.mxu0 %v956
    %2543 = vmatprep.subr.mxu0 %v965
    %2544 = vmatpush1.msra.mxu0 %v964
    %2545 = vmatprep.subr.mxu0 %v973
    %2546 = vmatpush1.msra.mxu0 %v972
    %2547 = vmatprep.subr.mxu0 %v981
    %2548 = vmatpush1.msra.mxu0 %v980
    %2549 = vmatprep.subr.mxu0 %v989
    %2550 = vmatpush1.msra.mxu0 %v988
    %2551 = vmatprep.subr.mxu0 %v997
    %2552 = vmatpush1.msra.mxu0 %v996
    %2553 = vmatprep.subr.mxu0 %v1005
    %2554 = vmatpush1.msra.mxu0 %v1004
    %2555 = vmatprep.subr.mxu0 %v1013
    %2556 = vmatpush1.msra.mxu0 %v1012
    %2557 = vmatprep.subr.mxu0 %v1021
    %2558 = vmatpush1.msra.mxu0 %v1020
    %2559 = vmatprep.subr.mxu0 %v1029
    %2560 = vmatpush1.msra.mxu0 %v1028
    %2561 = vmatprep.subr.mxu0 %v1037
    %2562 = vmatpush1.msra.mxu0 %v1036
    %2563 = vmatprep.subr.mxu0 %v1045
    %2564 = vmatpush1.msra.mxu0 %v1044
    %2565 = vmatprep.subr.mxu0 %v1053
    %2566 = vmatpush1.msra.mxu0 %v1052
    %2567 = vmatprep.subr.mxu0 %v1061
    %2568 = vmatpush1.msra.mxu0 %v1060
    %2569 = vmatprep.subr.mxu0 %v1069
    %2570 = vmatpush1.msra.mxu0 %v1068
    %2571 = vmatprep.subr.mxu0 %v1077
    %2572 = vmatpush1.msra.mxu0 %v1076
    %2573 = vmatprep.subr.mxu0 %v1085
    %2574 = vmatpush1.msra.mxu0 %v1084
    %2575 = vmatprep.subr.mxu0 %v1093
    %2576 = vmatpush1.msra.mxu0 %v1092
    %2577 = vmatprep.subr.mxu0 %v1101
    %2578 = vmatpush1.msra.mxu0 %v1100
    %2579 = vmatprep.subr.mxu0 %v1109
    %2580 = vmatpush1.msra.mxu0 %v1108
    %2581 = vmatprep.subr.mxu0 %v1117
    %2582 = vmatpush1.msra.mxu0 %v1116
    %2583 = vmatprep.subr.mxu0 %v1125
    %2584 = vmatpush1.msra.mxu0 %v1124
    %2585 = vmatprep.subr.mxu0 %v1133
    %2586 = vmatpush1.msra.mxu0 %v1132
    %2587 = vmatprep.mubr.f32.mxu0 %v2427
    %2588 = vmatmul.mubr.f32.gmra.mrb[0].mxu0 %v2426
    %v2589 = vpop.f32.mrb[0].mxu0
    %v2590 = vadd.f32 0.0, %v2589
    %v2591 = vpop.f32.mrb[0].mxu0
    %v2592 = vadd.f32 0.0, %v2591
    %2593 = vmatprep.mubr.f32.mxu0 %v2429
    %2594 = vmatmul.mubr.f32.gmra.mrb[0].mxu0 %v2428
    %v2595 = vpop.f32.mrb[0].mxu0
    %v2596 = vadd.f32 0.0, %v2595
    %v2597 = vpop.f32.mrb[0].mxu0
    %v2598 = vadd.f32 0.0, %v2597
    %2599 = vdwg.mxu0
    %2600 = vmatprep.subr.mxu0 %v887
    %2601 = vmatpush1.msra.mxu0 %v886
    %2602 = vmatprep.subr.mxu0 %v895
    %2603 = vmatpush1.msra.mxu0 %v894
    %2604 = vmatprep.subr.mxu0 %v903
    %2605 = vmatpush1.msra.mxu0 %v902
    %2606 = vmatprep.subr.mxu0 %v911
    %2607 = vmatpush1.msra.mxu0 %v910
    %2608 = vmatprep.subr.mxu0 %v919
    %2609 = vmatpush1.msra.mxu0 %v918
    %2610 = vmatprep.subr.mxu0 %v927
    %2611 = vmatpush1.msra.mxu0 %v926
    %2612 = vmatprep.subr.mxu0 %v935
    %2613 = vmatpush1.msra.mxu0 %v934
    %2614 = vmatprep.subr.mxu0 %v943
    %2615 = vmatpush1.msra.mxu0 %v942
    %2616 = vmatprep.subr.mxu0 %v951
    %2617 = vmatpush1.msra.mxu0 %v950
    %2618 = vmatprep.subr.mxu0 %v959
    %2619 = vmatpush1.msra.mxu0 %v958
    %2620 = vmatprep.subr.mxu0 %v967
    %2621 = vmatpush1.msra.mxu0 %v966
    %2622 = vmatprep.subr.mxu0 %v975
    %2623 = vmatpush1.msra.mxu0 %v974
    %2624 = vmatprep.subr.mxu0 %v983
    %2625 = vmatpush1.msra.mxu0 %v982
    %2626 = vmatprep.subr.mxu0 %v991
    %2627 = vmatpush1.msra.mxu0 %v990
    %2628 = vmatprep.subr.mxu0 %v999
    %2629 = vmatpush1.msra.mxu0 %v998
    %2630 = vmatprep.subr.mxu0 %v1007
    %2631 = vmatpush1.msra.mxu0 %v1006
    %2632 = vmatprep.subr.mxu0 %v1015
    %2633 = vmatpush1.msra.mxu0 %v1014
    %2634 = vmatprep.subr.mxu0 %v1023
    %2635 = vmatpush1.msra.mxu0 %v1022
    %2636 = vmatprep.subr.mxu0 %v1031
    %2637 = vmatpush1.msra.mxu0 %v1030
    %2638 = vmatprep.subr.mxu0 %v1039
    %2639 = vmatpush1.msra.mxu0 %v1038
    %2640 = vmatprep.subr.mxu0 %v1047
    %2641 = vmatpush1.msra.mxu0 %v1046
    %2642 = vmatprep.subr.mxu0 %v1055
    %2643 = vmatpush1.msra.mxu0 %v1054
    %2644 = vmatprep.subr.mxu0 %v1063
    %2645 = vmatpush1.msra.mxu0 %v1062
    %2646 = vmatprep.subr.mxu0 %v1071
    %2647 = vmatpush1.msra.mxu0 %v1070
    %2648 = vmatprep.subr.mxu0 %v1079
    %2649 = vmatpush1.msra.mxu0 %v1078
    %2650 = vmatprep.subr.mxu0 %v1087
    %2651 = vmatpush1.msra.mxu0 %v1086
    %2652 = vmatprep.subr.mxu0 %v1095
    %2653 = vmatpush1.msra.mxu0 %v1094
    %2654 = vmatprep.subr.mxu0 %v1103
    %2655 = vmatpush1.msra.mxu0 %v1102
    %2656 = vmatprep.subr.mxu0 %v1111
    %2657 = vmatpush1.msra.mxu0 %v1110
    %2658 = vmatprep.subr.mxu0 %v1119
    %2659 = vmatpush1.msra.mxu0 %v1118
    %2660 = vmatprep.subr.mxu0 %v1127
    %2661 = vmatpush1.msra.mxu0 %v1126
    %2662 = vmatprep.subr.mxu0 %v1135
    %2663 = vmatpush1.msra.mxu0 %v1134
    %2664 = vmatprep.mubr.f32.mxu0 %v2427
    %2665 = vmatmul.mubr.f32.gmra.mrb[0].mxu0 %v2426
    %v2666 = vpop.f32.mrb[0].mxu0
    %v2667 = vadd.f32 0.0, %v2666
    %v2668 = vpop.f32.mrb[0].mxu0
    %v2669 = vadd.f32 0.0, %v2668
    %2670 = vmatprep.mubr.f32.mxu0 %v2429
    %2671 = vmatmul.mubr.f32.gmra.mrb[0].mxu0 %v2428
    %v2672 = vpop.f32.mrb[0].mxu0
    %v2673 = vadd.f32 0.0, %v2672
    %v2674 = vpop.f32.mrb[0].mxu0
    %v2675 = vadd.f32 0.0, %v2674
    %2676 = vdwg.mxu0
    %2677 = vmatprep.subr.mxu0 %v889
    %2678 = vmatpush1.msra.mxu0 %v888
    %2679 = vmatprep.subr.mxu0 %v897
    %2680 = vmatpush1.msra.mxu0 %v896
    %2681 = vmatprep.subr.mxu0 %v905
    %2682 = vmatpush1.msra.mxu0 %v904
    %2683 = vmatprep.subr.mxu0 %v913
    %2684 = vmatpush1.msra.mxu0 %v912
    %2685 = vmatprep.subr.mxu0 %v921
    %2686 = vmatpush1.msra.mxu0 %v920
    %2687 = vmatprep.subr.mxu0 %v929
    %2688 = vmatpush1.msra.mxu0 %v928
    %2689 = vmatprep.subr.mxu0 %v937
    %2690 = vmatpush1.msra.mxu0 %v936
    %2691 = vmatprep.subr.mxu0 %v945
    %2692 = vmatpush1.msra.mxu0 %v944
    %2693 = vmatprep.subr.mxu0 %v953
    %2694 = vmatpush1.msra.mxu0 %v952
    %2695 = vmatprep.subr.mxu0 %v961
    %2696 = vmatpush1.msra.mxu0 %v960
    %2697 = vmatprep.subr.mxu0 %v969
    %2698 = vmatpush1.msra.mxu0 %v968
    %2699 = vmatprep.subr.mxu0 %v977
    %2700 = vmatpush1.msra.mxu0 %v976
    %2701 = vmatprep.subr.mxu0 %v985
    %2702 = vmatpush1.msra.mxu0 %v984
    %2703 = vmatprep.subr.mxu0 %v993
    %2704 = vmatpush1.msra.mxu0 %v992
    %2705 = vmatprep.subr.mxu0 %v1001
    %2706 = vmatpush1.msra.mxu0 %v1000
    %2707 = vmatprep.subr.mxu0 %v1009
    %2708 = vmatpush1.msra.mxu0 %v1008
    %2709 = vmatprep.subr.mxu0 %v1017
    %2710 = vmatpush1.msra.mxu0 %v1016
    %2711 = vmatprep.subr.mxu0 %v1025
    %2712 = vmatpush1.msra.mxu0 %v1024
    %2713 = vmatprep.subr.mxu0 %v1033
    %2714 = vmatpush1.msra.mxu0 %v1032
    %2715 = vmatprep.subr.mxu0 %v1041
    %2716 = vmatpush1.msra.mxu0 %v1040
    %2717 = vmatprep.subr.mxu0 %v1049
    %2718 = vmatpush1.msra.mxu0 %v1048
    %2719 = vmatprep.subr.mxu0 %v1057
    %2720 = vmatpush1.msra.mxu0 %v1056
    %2721 = vmatprep.subr.mxu0 %v1065
    %2722 = vmatpush1.msra.mxu0 %v1064
    %2723 = vmatprep.subr.mxu0 %v1073
    %2724 = vmatpush1.msra.mxu0 %v1072
    %2725 = vmatprep.subr.mxu0 %v1081
    %2726 = vmatpush1.msra.mxu0 %v1080
    %2727 = vmatprep.subr.mxu0 %v1089
    %2728 = vmatpush1.msra.mxu0 %v1088
    %2729 = vmatprep.subr.mxu0 %v1097
    %2730 = vmatpush1.msra.mxu0 %v1096
    %2731 = vmatprep.subr.mxu0 %v1105
    %2732 = vmatpush1.msra.mxu0 %v1104
    %2733 = vmatprep.subr.mxu0 %v1113
    %2734 = vmatpush1.msra.mxu0 %v1112
    %2735 = vmatprep.subr.mxu0 %v1121
    %2736 = vmatpush1.msra.mxu0 %v1120
    %2737 = vmatprep.subr.mxu0 %v1129
    %2738 = vmatpush1.msra.mxu0 %v1128
    %2739 = vmatprep.subr.mxu0 %v1137
    %2740 = vmatpush1.msra.mxu0 %v1136
    %2741 = vmatprep.mubr.f32.mxu0 %v2427
    %2742 = vmatmul.mubr.f32.gmra.mrb[0].mxu0 %v2426
    %v2743 = vpop.f32.mrb[0].mxu0
    %v2744 = vadd.f32 0.0, %v2743
    %v2745 = vpop.f32.mrb[0].mxu0
    %v2746 = vadd.f32 0.0, %v2745
    %2747 = vmatprep.mubr.f32.mxu0 %v2429
    %2748 = vmatmul.mubr.f32.gmra.mrb[0].mxu0 %v2428
    %v2749 = vpop.f32.mrb[0].mxu0
    %v2750 = vadd.f32 0.0, %v2749
    %v2751 = vpop.f32.mrb[0].mxu0
    %v2752 = vadd.f32 0.0, %v2751
    %2753 = vdwg.mxu0
    %v2754 = vadd.f32 %v2430, %v2513
    %v2755 = vadd.f32 %v2431, %v2515
    %v2756 = vadd.f32 %v2432, %v2590
    %v2757 = vadd.f32 %v2433, %v2592
    %v2758 = vadd.f32 %v2434, %v2667
    %v2759 = vadd.f32 %v2435, %v2669
    %v2760 = vadd.f32 %v2436, %v2744
    %v2761 = vadd.f32 %v2437, %v2746
    %v2762 = vadd.f32 %v2438, %v2519
    %v2763 = vadd.f32 %v2439, %v2521
    %v2764 = vadd.f32 %v2440, %v2596
    %v2765 = vadd.f32 %v2441, %v2598
    %v2766 = vadd.f32 %v2442, %v2673
    %v2767 = vadd.f32 %v2443, %v2675
    %v2768 = vadd.f32 %v2444, %v2750
    %v2769 = vadd.f32 %v2445, %v2752
    %v2770 = vxor.u32 %v2754, 2147483648
    %v2771 = vxor.u32 %v2755, 2147483648
    %v2772 = vxor.u32 %v2762, 2147483648
    %v2773 = vxor.u32 %v2763, 2147483648
    %v2774 = vmul.f32 %v2770, 1.442695
    %v2775 = vpow.pop %v2774
    %v2776 = vmul.f32 %v2771, 1.442695
    %v2777 = vpow.pop %v2776
    %v2778 = vmul.f32 %v2772, 1.442695
    %v2779 = vpow.pop %v2778
    %v2780 = vmul.f32 %v2773, 1.442695
    %v2781 = vpow.pop %v2780
    %v2782 = vadd.f32 %v2775, 1.0
    %v2783 = vadd.f32 %v2777, 1.0
    %v2784 = vadd.f32 %v2779, 1.0
    %v2785 = vadd.f32 %v2781, 1.0
    %v2786 = vrcp.pop %v2782
    %v2787 = vmul.f32 1.0, %v2786
    %v2788 = vrcp.pop %v2783
    %v2789 = vmul.f32 1.0, %v2788
    %v2790 = vrcp.pop %v2784
    %v2791 = vmul.f32 1.0, %v2790
    %v2792 = vrcp.pop %v2785
    %v2793 = vmul.f32 1.0, %v2792
    %v2794 = vxor.u32 %v2756, 2147483648
    %v2795 = vxor.u32 %v2757, 2147483648
    %v2796 = vxor.u32 %v2764, 2147483648
    %v2797 = vxor.u32 %v2765, 2147483648
    %v2798 = vmul.f32 %v2794, 1.442695
    %v2799 = vpow.pop %v2798
    %v2800 = vmul.f32 %v2795, 1.442695
    %v2801 = vpow.pop %v2800
    %v2802 = vmul.f32 %v2796, 1.442695
    %v2803 = vpow.pop %v2802
    %v2804 = vmul.f32 %v2797, 1.442695
    %v2805 = vpow.pop %v2804
    %v2806 = vadd.f32 %v2799, 1.0
    %v2807 = vadd.f32 %v2801, 1.0
    %v2808 = vadd.f32 %v2803, 1.0
    %v2809 = vadd.f32 %v2805, 1.0
    %v2810 = vrcp.pop %v2806
    %v2811 = vmul.f32 1.0, %v2810
    %v2812 = vrcp.pop %v2807
    %v2813 = vmul.f32 1.0, %v2812
    %v2814 = vrcp.pop %v2808
    %v2815 = vmul.f32 1.0, %v2814
    %v2816 = vrcp.pop %v2809
    %v2817 = vmul.f32 1.0, %v2816
    %v2818 = vtanh.pop %v2758
    %v2819 = vtanh.pop %v2759
    %v2820 = vtanh.pop %v2766
    %v2821 = vtanh.pop %v2767
    %v2822 = vxor.u32 %v2760, 2147483648
    %v2823 = vxor.u32 %v2761, 2147483648
    %v2824 = vxor.u32 %v2768, 2147483648
    %v2825 = vxor.u32 %v2769, 2147483648
    %v2826 = vmul.f32 %v2822, 1.442695
    %v2827 = vpow.pop %v2826
    %v2828 = vmul.f32 %v2823, 1.442695
    %v2829 = vpow.pop %v2828
    %v2830 = vmul.f32 %v2824, 1.442695
    %v2831 = vpow.pop %v2830
    %v2832 = vmul.f32 %v2825, 1.442695
    %v2833 = vpow.pop %v2832
    %v2834 = vadd.f32 %v2827, 1.0
    %v2835 = vadd.f32 %v2829, 1.0
    %v2836 = vadd.f32 %v2831, 1.0
    %v2837 = vadd.f32 %v2833, 1.0
    %v2838 = vrcp.pop %v2834
    %v2839 = vmul.f32 1.0, %v2838
    %v2840 = vrcp.pop %v2835
    %v2841 = vmul.f32 1.0, %v2840
    %v2842 = vrcp.pop %v2836
    %v2843 = vmul.f32 1.0, %v2842
    %v2844 = vrcp.pop %v2837
    %v2845 = vmul.f32 1.0, %v2844
    %v2846 = vmul.f32 %v2811, %v2418
    %v2847 = vmul.f32 %v2813, %v2419
    %v2848 = vmul.f32 %v2815, %v2420
    %v2849 = vmul.f32 %v2817, %v2421
    %v2850 = vmul.f32 %v2787, %v2818
    %v2851 = vmul.f32 %v2789, %v2819
    %v2852 = vmul.f32 %v2791, %v2820
    %v2853 = vmul.f32 %v2793, %v2821
    %v2854 = vadd.f32 %v2846, %v2850
    %v2855 = vadd.f32 %v2847, %v2851
    %v2856 = vadd.f32 %v2848, %v2852
    %v2857 = vadd.f32 %v2849, %v2853
    %v2858 = vtanh.pop %v2854
    %v2859 = vtanh.pop %v2855
    %v2860 = vtanh.pop %v2856
    %v2861 = vtanh.pop %v2857
    %v2862 = vmul.f32 %v2839, %v2858
    %v2863 = vmul.f32 %v2841, %v2859
    %v2864 = vmul.f32 %v2843, %v2860
    %v2865 = vmul.f32 %v2845, %v2861
    %v2866 = vld [vmem:[#allocation2 + $0x200] sm:$0xff]
    %v2867 = vld [vmem:[#allocation2 + $0x208] sm:$0xff]
    %v2868 = vld [vmem:[#allocation2 + $0x210] sm:$0xff]
    %v2869 = vld [vmem:[#allocation2 + $0x218] sm:$0xff]
    %v2870 = vld [vmem:[#allocation2 + $0x220] sm:$0xff]
    %v2871 = vld [vmem:[#allocation2 + $0x228] sm:$0xff]
    %v2872 = vld [vmem:[#allocation2 + $0x230] sm:$0xff]
    %v2873 = vld [vmem:[#allocation2 + $0x238] sm:$0xff]
    %v2874 = vld [vmem:[#allocation2 + $0x240] sm:$0xff]
    %v2875 = vld [vmem:[#allocation2 + $0x248] sm:$0xff]
    %v2876 = vld [vmem:[#allocation2 + $0x250] sm:$0xff]
    %v2877 = vld [vmem:[#allocation2 + $0x258] sm:$0xff]
    %v2878 = vld [vmem:[#allocation2 + $0x260] sm:$0xff]
    %v2879 = vld [vmem:[#allocation2 + $0x268] sm:$0xff]
    %v2880 = vld [vmem:[#allocation2 + $0x270] sm:$0xff]
    %v2881 = vld [vmem:[#allocation2 + $0x278] sm:$0xff]
    %2882 = vmatprep.subr.mxu0 %v883
    %2883 = vmatpush1.msra.mxu0 %v882
    %2884 = vmatprep.subr.mxu0 %v891
    %2885 = vmatpush1.msra.mxu0 %v890
    %2886 = vmatprep.subr.mxu0 %v899
    %2887 = vmatpush1.msra.mxu0 %v898
    %2888 = vmatprep.subr.mxu0 %v907
    %2889 = vmatpush1.msra.mxu0 %v906
    %2890 = vmatprep.subr.mxu0 %v915
    %2891 = vmatpush1.msra.mxu0 %v914
    %2892 = vmatprep.subr.mxu0 %v923
    %2893 = vmatpush1.msra.mxu0 %v922
    %2894 = vmatprep.subr.mxu0 %v931
    %2895 = vmatpush1.msra.mxu0 %v930
    %2896 = vmatprep.subr.mxu0 %v939
    %2897 = vmatpush1.msra.mxu0 %v938
    %2898 = vmatprep.subr.mxu0 %v947
    %2899 = vmatpush1.msra.mxu0 %v946
    %2900 = vmatprep.subr.mxu0 %v955
    %2901 = vmatpush1.msra.mxu0 %v954
    %2902 = vmatprep.subr.mxu0 %v963
    %2903 = vmatpush1.msra.mxu0 %v962
    %2904 = vmatprep.subr.mxu0 %v971
    %2905 = vmatpush1.msra.mxu0 %v970
    %2906 = vmatprep.subr.mxu0 %v979
    %2907 = vmatpush1.msra.mxu0 %v978
    %2908 = vmatprep.subr.mxu0 %v987
    %2909 = vmatpush1.msra.mxu0 %v986
    %2910 = vmatprep.subr.mxu0 %v995
    %2911 = vmatpush1.msra.mxu0 %v994
    %2912 = vmatprep.subr.mxu0 %v1003
    %2913 = vmatpush1.msra.mxu0 %v1002
    %2914 = vmatprep.subr.mxu0 %v1011
    %2915 = vmatpush1.msra.mxu0 %v1010
    %2916 = vmatprep.subr.mxu0 %v1019
    %2917 = vmatpush1.msra.mxu0 %v1018
    %2918 = vmatprep.subr.mxu0 %v1027
    %2919 = vmatpush1.msra.mxu0 %v1026
    %2920 = vmatprep.subr.mxu0 %v1035
    %2921 = vmatpush1.msra.mxu0 %v1034
    %2922 = vmatprep.subr.mxu0 %v1043
    %2923 = vmatpush1.msra.mxu0 %v1042
    %2924 = vmatprep.subr.mxu0 %v1051
    %2925 = vmatpush1.msra.mxu0 %v1050
    %2926 = vmatprep.subr.mxu0 %v1059
    %2927 = vmatpush1.msra.mxu0 %v1058
    %2928 = vmatprep.subr.mxu0 %v1067
    %2929 = vmatpush1.msra.mxu0 %v1066
    %2930 = vmatprep.subr.mxu0 %v1075
    %2931 = vmatpush1.msra.mxu0 %v1074
    %2932 = vmatprep.subr.mxu0 %v1083
    %2933 = vmatpush1.msra.mxu0 %v1082
    %2934 = vmatprep.subr.mxu0 %v1091
    %2935 = vmatpush1.msra.mxu0 %v1090
    %2936 = vmatprep.subr.mxu0 %v1099
    %2937 = vmatpush1.msra.mxu0 %v1098
    %2938 = vmatprep.subr.mxu0 %v1107
    %2939 = vmatpush1.msra.mxu0 %v1106
    %2940 = vmatprep.subr.mxu0 %v1115
    %2941 = vmatpush1.msra.mxu0 %v1114
    %2942 = vmatprep.subr.mxu0 %v1123
    %2943 = vmatpush1.msra.mxu0 %v1122
    %2944 = vmatprep.subr.mxu0 %v1131
    %2945 = vmatpush1.msra.mxu0 %v1130
    %2946 = vmatprep.mubr.f32.mxu0 %v2863
    %2947 = vmatmul.mubr.f32.gmra.mrb[0].mxu0 %v2862
    %v2948 = vpop.f32.mrb[0].mxu0
    %v2949 = vadd.f32 0.0, %v2948
    %v2950 = vpop.f32.mrb[0].mxu0
    %v2951 = vadd.f32 0.0, %v2950
    %2952 = vmatprep.mubr.f32.mxu0 %v2865
    %2953 = vmatmul.mubr.f32.gmra.mrb[0].mxu0 %v2864
    %v2954 = vpop.f32.mrb[0].mxu0
    %v2955 = vadd.f32 0.0, %v2954
    %v2956 = vpop.f32.mrb[0].mxu0
    %v2957 = vadd.f32 0.0, %v2956
    %2958 = vdwg.mxu0
    %2959 = vmatprep.subr.mxu0 %v885
    %2960 = vmatpush1.msra.mxu0 %v884
    %2961 = vmatprep.subr.mxu0 %v893
    %2962 = vmatpush1.msra.mxu0 %v892
    %2963 = vmatprep.subr.mxu0 %v901
    %2964 = vmatpush1.msra.mxu0 %v900
    %2965 = vmatprep.subr.mxu0 %v909
    %2966 = vmatpush1.msra.mxu0 %v908
    %2967 = vmatprep.subr.mxu0 %v917
    %2968 = vmatpush1.msra.mxu0 %v916
    %2969 = vmatprep.subr.mxu0 %v925
    %2970 = vmatpush1.msra.mxu0 %v924
    %2971 = vmatprep.subr.mxu0 %v933
    %2972 = vmatpush1.msra.mxu0 %v932
    %2973 = vmatprep.subr.mxu0 %v941
    %2974 = vmatpush1.msra.mxu0 %v940
    %2975 = vmatprep.subr.mxu0 %v949
    %2976 = vmatpush1.msra.mxu0 %v948
    %2977 = vmatprep.subr.mxu0 %v957
    %2978 = vmatpush1.msra.mxu0 %v956
    %2979 = vmatprep.subr.mxu0 %v965
    %2980 = vmatpush1.msra.mxu0 %v964
    %2981 = vmatprep.subr.mxu0 %v973
    %2982 = vmatpush1.msra.mxu0 %v972
    %2983 = vmatprep.subr.mxu0 %v981
    %2984 = vmatpush1.msra.mxu0 %v980
    %2985 = vmatprep.subr.mxu0 %v989
    %2986 = vmatpush1.msra.mxu0 %v988
    %2987 = vmatprep.subr.mxu0 %v997
    %2988 = vmatpush1.msra.mxu0 %v996
    %2989 = vmatprep.subr.mxu0 %v1005
    %2990 = vmatpush1.msra.mxu0 %v1004
    %2991 = vmatprep.subr.mxu0 %v1013
    %2992 = vmatpush1.msra.mxu0 %v1012
    %2993 = vmatprep.subr.mxu0 %v1021
    %2994 = vmatpush1.msra.mxu0 %v1020
    %2995 = vmatprep.subr.mxu0 %v1029
    %2996 = vmatpush1.msra.mxu0 %v1028
    %2997 = vmatprep.subr.mxu0 %v1037
    %2998 = vmatpush1.msra.mxu0 %v1036
    %2999 = vmatprep.subr.mxu0 %v1045
    %3000 = vmatpush1.msra.mxu0 %v1044
    %3001 = vmatprep.subr.mxu0 %v1053
    %3002 = vmatpush1.msra.mxu0 %v1052
    %3003 = vmatprep.subr.mxu0 %v1061
    %3004 = vmatpush1.msra.mxu0 %v1060
    %3005 = vmatprep.subr.mxu0 %v1069
    %3006 = vmatpush1.msra.mxu0 %v1068
    %3007 = vmatprep.subr.mxu0 %v1077
    %3008 = vmatpush1.msra.mxu0 %v1076
    %3009 = vmatprep.subr.mxu0 %v1085
    %3010 = vmatpush1.msra.mxu0 %v1084
    %3011 = vmatprep.subr.mxu0 %v1093
    %3012 = vmatpush1.msra.mxu0 %v1092
    %3013 = vmatprep.subr.mxu0 %v1101
    %3014 = vmatpush1.msra.mxu0 %v1100
    %3015 = vmatprep.subr.mxu0 %v1109
    %3016 = vmatpush1.msra.mxu0 %v1108
    %3017 = vmatprep.subr.mxu0 %v1117
    %3018 = vmatpush1.msra.mxu0 %v1116
    %3019 = vmatprep.subr.mxu0 %v1125
    %3020 = vmatpush1.msra.mxu0 %v1124
    %3021 = vmatprep.subr.mxu0 %v1133
    %3022 = vmatpush1.msra.mxu0 %v1132
    %3023 = vmatprep.mubr.f32.mxu0 %v2863
    %3024 = vmatmul.mubr.f32.gmra.mrb[0].mxu0 %v2862
    %v3025 = vpop.f32.mrb[0].mxu0
    %v3026 = vadd.f32 0.0, %v3025
    %v3027 = vpop.f32.mrb[0].mxu0
    %v3028 = vadd.f32 0.0, %v3027
    %3029 = vmatprep.mubr.f32.mxu0 %v2865
    %3030 = vmatmul.mubr.f32.gmra.mrb[0].mxu0 %v2864
    %v3031 = vpop.f32.mrb[0].mxu0
    %v3032 = vadd.f32 0.0, %v3031
    %v3033 = vpop.f32.mrb[0].mxu0
    %v3034 = vadd.f32 0.0, %v3033
    %3035 = vdwg.mxu0
    %3036 = vmatprep.subr.mxu0 %v887
    %3037 = vmatpush1.msra.mxu0 %v886
    %3038 = vmatprep.subr.mxu0 %v895
    %3039 = vmatpush1.msra.mxu0 %v894
    %3040 = vmatprep.subr.mxu0 %v903
    %3041 = vmatpush1.msra.mxu0 %v902
    %3042 = vmatprep.subr.mxu0 %v911
    %3043 = vmatpush1.msra.mxu0 %v910
    %3044 = vmatprep.subr.mxu0 %v919
    %3045 = vmatpush1.msra.mxu0 %v918
    %3046 = vmatprep.subr.mxu0 %v927
    %3047 = vmatpush1.msra.mxu0 %v926
    %3048 = vmatprep.subr.mxu0 %v935
    %3049 = vmatpush1.msra.mxu0 %v934
    %3050 = vmatprep.subr.mxu0 %v943
    %3051 = vmatpush1.msra.mxu0 %v942
    %3052 = vmatprep.subr.mxu0 %v951
    %3053 = vmatpush1.msra.mxu0 %v950
    %3054 = vmatprep.subr.mxu0 %v959
    %3055 = vmatpush1.msra.mxu0 %v958
    %3056 = vmatprep.subr.mxu0 %v967
    %3057 = vmatpush1.msra.mxu0 %v966
    %3058 = vmatprep.subr.mxu0 %v975
    %3059 = vmatpush1.msra.mxu0 %v974
    %3060 = vmatprep.subr.mxu0 %v983
    %3061 = vmatpush1.msra.mxu0 %v982
    %3062 = vmatprep.subr.mxu0 %v991
    %3063 = vmatpush1.msra.mxu0 %v990
    %3064 = vmatprep.subr.mxu0 %v999
    %3065 = vmatpush1.msra.mxu0 %v998
    %3066 = vmatprep.subr.mxu0 %v1007
    %3067 = vmatpush1.msra.mxu0 %v1006
    %3068 = vmatprep.subr.mxu0 %v1015
    %3069 = vmatpush1.msra.mxu0 %v1014
    %3070 = vmatprep.subr.mxu0 %v1023
    %3071 = vmatpush1.msra.mxu0 %v1022
    %3072 = vmatprep.subr.mxu0 %v1031
    %3073 = vmatpush1.msra.mxu0 %v1030
    %3074 = vmatprep.subr.mxu0 %v1039
    %3075 = vmatpush1.msra.mxu0 %v1038
    %3076 = vmatprep.subr.mxu0 %v1047
    %3077 = vmatpush1.msra.mxu0 %v1046
    %3078 = vmatprep.subr.mxu0 %v1055
    %3079 = vmatpush1.msra.mxu0 %v1054
    %3080 = vmatprep.subr.mxu0 %v1063
    %3081 = vmatpush1.msra.mxu0 %v1062
    %3082 = vmatprep.subr.mxu0 %v1071
    %3083 = vmatpush1.msra.mxu0 %v1070
    %3084 = vmatprep.subr.mxu0 %v1079
    %3085 = vmatpush1.msra.mxu0 %v1078
    %3086 = vmatprep.subr.mxu0 %v1087
    %3087 = vmatpush1.msra.mxu0 %v1086
    %3088 = vmatprep.subr.mxu0 %v1095
    %3089 = vmatpush1.msra.mxu0 %v1094
    %3090 = vmatprep.subr.mxu0 %v1103
    %3091 = vmatpush1.msra.mxu0 %v1102
    %3092 = vmatprep.subr.mxu0 %v1111
    %3093 = vmatpush1.msra.mxu0 %v1110
    %3094 = vmatprep.subr.mxu0 %v1119
    %3095 = vmatpush1.msra.mxu0 %v1118
    %3096 = vmatprep.subr.mxu0 %v1127
    %3097 = vmatpush1.msra.mxu0 %v1126
    %3098 = vmatprep.subr.mxu0 %v1135
    %3099 = vmatpush1.msra.mxu0 %v1134
    %3100 = vmatprep.mubr.f32.mxu0 %v2863
    %3101 = vmatmul.mubr.f32.gmra.mrb[0].mxu0 %v2862
    %v3102 = vpop.f32.mrb[0].mxu0
    %v3103 = vadd.f32 0.0, %v3102
    %v3104 = vpop.f32.mrb[0].mxu0
    %v3105 = vadd.f32 0.0, %v3104
    %3106 = vmatprep.mubr.f32.mxu0 %v2865
    %3107 = vmatmul.mubr.f32.gmra.mrb[0].mxu0 %v2864
    %v3108 = vpop.f32.mrb[0].mxu0
    %v3109 = vadd.f32 0.0, %v3108
    %v3110 = vpop.f32.mrb[0].mxu0
    %v3111 = vadd.f32 0.0, %v3110
    %3112 = vdwg.mxu0
    %3113 = vmatprep.subr.mxu0 %v889
    %3114 = vmatpush1.msra.mxu0 %v888
    %3115 = vmatprep.subr.mxu0 %v897
    %3116 = vmatpush1.msra.mxu0 %v896
    %3117 = vmatprep.subr.mxu0 %v905
    %3118 = vmatpush1.msra.mxu0 %v904
    %3119 = vmatprep.subr.mxu0 %v913
    %3120 = vmatpush1.msra.mxu0 %v912
    %3121 = vmatprep.subr.mxu0 %v921
    %3122 = vmatpush1.msra.mxu0 %v920
    %3123 = vmatprep.subr.mxu0 %v929
    %3124 = vmatpush1.msra.mxu0 %v928
    %3125 = vmatprep.subr.mxu0 %v937
    %3126 = vmatpush1.msra.mxu0 %v936
    %3127 = vmatprep.subr.mxu0 %v945
    %3128 = vmatpush1.msra.mxu0 %v944
    %3129 = vmatprep.subr.mxu0 %v953
    %3130 = vmatpush1.msra.mxu0 %v952
    %3131 = vmatprep.subr.mxu0 %v961
    %3132 = vmatpush1.msra.mxu0 %v960
    %3133 = vmatprep.subr.mxu0 %v969
    %3134 = vmatpush1.msra.mxu0 %v968
    %3135 = vmatprep.subr.mxu0 %v977
    %3136 = vmatpush1.msra.mxu0 %v976
    %3137 = vmatprep.subr.mxu0 %v985
    %3138 = vmatpush1.msra.mxu0 %v984
    %3139 = vmatprep.subr.mxu0 %v993
    %3140 = vmatpush1.msra.mxu0 %v992
    %3141 = vmatprep.subr.mxu0 %v1001
    %3142 = vmatpush1.msra.mxu0 %v1000
    %3143 = vmatprep.subr.mxu0 %v1009
    %3144 = vmatpush1.msra.mxu0 %v1008
    %3145 = vmatprep.subr.mxu0 %v1017
    %3146 = vmatpush1.msra.mxu0 %v1016
    %3147 = vmatprep.subr.mxu0 %v1025
    %3148 = vmatpush1.msra.mxu0 %v1024
    %3149 = vmatprep.subr.mxu0 %v1033
    %3150 = vmatpush1.msra.mxu0 %v1032
    %3151 = vmatprep.subr.mxu0 %v1041
    %3152 = vmatpush1.msra.mxu0 %v1040
    %3153 = vmatprep.subr.mxu0 %v1049
    %3154 = vmatpush1.msra.mxu0 %v1048
    %3155 = vmatprep.subr.mxu0 %v1057
    %3156 = vmatpush1.msra.mxu0 %v1056
    %3157 = vmatprep.subr.mxu0 %v1065
    %3158 = vmatpush1.msra.mxu0 %v1064
    %3159 = vmatprep.subr.mxu0 %v1073
    %3160 = vmatpush1.msra.mxu0 %v1072
    %3161 = vmatprep.subr.mxu0 %v1081
    %3162 = vmatpush1.msra.mxu0 %v1080
    %3163 = vmatprep.subr.mxu0 %v1089
    %3164 = vmatpush1.msra.mxu0 %v1088
    %3165 = vmatprep.subr.mxu0 %v1097
    %3166 = vmatpush1.msra.mxu0 %v1096
    %3167 = vmatprep.subr.mxu0 %v1105
    %3168 = vmatpush1.msra.mxu0 %v1104
    %3169 = vmatprep.subr.mxu0 %v1113
    %3170 = vmatpush1.msra.mxu0 %v1112
    %3171 = vmatprep.subr.mxu0 %v1121
    %3172 = vmatpush1.msra.mxu0 %v1120
    %3173 = vmatprep.subr.mxu0 %v1129
    %3174 = vmatpush1.msra.mxu0 %v1128
    %3175 = vmatprep.subr.mxu0 %v1137
    %3176 = vmatpush1.msra.mxu0 %v1136
    %3177 = vmatprep.mubr.f32.mxu0 %v2863
    %3178 = vmatmul.mubr.f32.gmra.mrb[0].mxu0 %v2862
    %v3179 = vpop.f32.mrb[0].mxu0
    %v3180 = vadd.f32 0.0, %v3179
    %v3181 = vpop.f32.mrb[0].mxu0
    %v3182 = vadd.f32 0.0, %v3181
    %3183 = vmatprep.mubr.f32.mxu0 %v2865
    %3184 = vmatmul.mubr.f32.gmra.mrb[0].mxu0 %v2864
    %v3185 = vpop.f32.mrb[0].mxu0
    %v3186 = vadd.f32 0.0, %v3185
    %v3187 = vpop.f32.mrb[0].mxu0
    %v3188 = vadd.f32 0.0, %v3187
    %3189 = vdwg.mxu0
    %v3190 = vadd.f32 %v2866, %v2949
    %v3191 = vadd.f32 %v2867, %v2951
    %v3192 = vadd.f32 %v2868, %v3026
    %v3193 = vadd.f32 %v2869, %v3028
    %v3194 = vadd.f32 %v2870, %v3103
    %v3195 = vadd.f32 %v2871, %v3105
    %v3196 = vadd.f32 %v2872, %v3180
    %v3197 = vadd.f32 %v2873, %v3182
    %v3198 = vadd.f32 %v2874, %v2955
    %v3199 = vadd.f32 %v2875, %v2957
    %v3200 = vadd.f32 %v2876, %v3032
    %v3201 = vadd.f32 %v2877, %v3034
    %v3202 = vadd.f32 %v2878, %v3109
    %v3203 = vadd.f32 %v2879, %v3111
    %v3204 = vadd.f32 %v2880, %v3186
    %v3205 = vadd.f32 %v2881, %v3188
    %v3206 = vxor.u32 %v3190, 2147483648
    %v3207 = vxor.u32 %v3191, 2147483648
    %v3208 = vxor.u32 %v3198, 2147483648
    %v3209 = vxor.u32 %v3199, 2147483648
    %v3210 = vmul.f32 %v3206, 1.442695
    %v3211 = vpow.pop %v3210
    %v3212 = vmul.f32 %v3207, 1.442695
    %v3213 = vpow.pop %v3212
    %v3214 = vmul.f32 %v3208, 1.442695
    %v3215 = vpow.pop %v3214
    %v3216 = vmul.f32 %v3209, 1.442695
    %v3217 = vpow.pop %v3216
    %v3218 = vadd.f32 %v3211, 1.0
    %v3219 = vadd.f32 %v3213, 1.0
    %v3220 = vadd.f32 %v3215, 1.0
    %v3221 = vadd.f32 %v3217, 1.0
    %v3222 = vrcp.pop %v3218
    %v3223 = vmul.f32 1.0, %v3222
    %v3224 = vrcp.pop %v3219
    %v3225 = vmul.f32 1.0, %v3224
    %v3226 = vrcp.pop %v3220
    %v3227 = vmul.f32 1.0, %v3226
    %v3228 = vrcp.pop %v3221
    %v3229 = vmul.f32 1.0, %v3228
    %v3230 = vxor.u32 %v3192, 2147483648
    %v3231 = vxor.u32 %v3193, 2147483648
    %v3232 = vxor.u32 %v3200, 2147483648
    %v3233 = vxor.u32 %v3201, 2147483648
    %v3234 = vmul.f32 %v3230, 1.442695
    %v3235 = vpow.pop %v3234
    %v3236 = vmul.f32 %v3231, 1.442695
    %v3237 = vpow.pop %v3236
    %v3238 = vmul.f32 %v3232, 1.442695
    %v3239 = vpow.pop %v3238
    %v3240 = vmul.f32 %v3233, 1.442695
    %v3241 = vpow.pop %v3240
    %v3242 = vadd.f32 %v3235, 1.0
    %v3243 = vadd.f32 %v3237, 1.0
    %v3244 = vadd.f32 %v3239, 1.0
    %v3245 = vadd.f32 %v3241, 1.0
    %v3246 = vrcp.pop %v3242
    %v3247 = vmul.f32 1.0, %v3246
    %v3248 = vrcp.pop %v3243
    %v3249 = vmul.f32 1.0, %v3248
    %v3250 = vrcp.pop %v3244
    %v3251 = vmul.f32 1.0, %v3250
    %v3252 = vrcp.pop %v3245
    %v3253 = vmul.f32 1.0, %v3252
    %v3254 = vtanh.pop %v3194
    %v3255 = vtanh.pop %v3195
    %v3256 = vtanh.pop %v3202
    %v3257 = vtanh.pop %v3203
    %v3258 = vxor.u32 %v3196, 2147483648
    %v3259 = vxor.u32 %v3197, 2147483648
    %v3260 = vxor.u32 %v3204, 2147483648
    %v3261 = vxor.u32 %v3205, 2147483648
    %v3262 = vmul.f32 %v3258, 1.442695
    %v3263 = vpow.pop %v3262
    %v3264 = vmul.f32 %v3259, 1.442695
    %v3265 = vpow.pop %v3264
    %v3266 = vmul.f32 %v3260, 1.442695
    %v3267 = vpow.pop %v3266
    %v3268 = vmul.f32 %v3261, 1.442695
    %v3269 = vpow.pop %v3268
    %v3270 = vadd.f32 %v3263, 1.0
    %v3271 = vadd.f32 %v3265, 1.0
    %v3272 = vadd.f32 %v3267, 1.0
    %v3273 = vadd.f32 %v3269, 1.0
    %v3274 = vrcp.pop %v3270
    %v3275 = vmul.f32 1.0, %v3274
    %v3276 = vrcp.pop %v3271
    %v3277 = vmul.f32 1.0, %v3276
    %v3278 = vrcp.pop %v3272
    %v3279 = vmul.f32 1.0, %v3278
    %v3280 = vrcp.pop %v3273
    %v3281 = vmul.f32 1.0, %v3280
    %v3282 = vmul.f32 %v3247, %v2854
    %v3283 = vmul.f32 %v3249, %v2855
    %v3284 = vmul.f32 %v3251, %v2856
    %v3285 = vmul.f32 %v3253, %v2857
    %v3286 = vmul.f32 %v3223, %v3254
    %v3287 = vmul.f32 %v3225, %v3255
    %v3288 = vmul.f32 %v3227, %v3256
    %v3289 = vmul.f32 %v3229, %v3257
    %v3290 = vadd.f32 %v3282, %v3286
    %v3291 = vadd.f32 %v3283, %v3287
    %v3292 = vadd.f32 %v3284, %v3288
    %v3293 = vadd.f32 %v3285, %v3289
    %v3294 = vtanh.pop %v3290
    %v3295 = vtanh.pop %v3291
    %v3296 = vtanh.pop %v3292
    %v3297 = vtanh.pop %v3293
    %v3298 = vmul.f32 %v3275, %v3294
    %v3299 = vmul.f32 %v3277, %v3295
    %v3300 = vmul.f32 %v3279, %v3296
    %v3301 = vmul.f32 %v3281, %v3297
    %v3302 = vld [vmem:[#allocation2 + $0x280] sm:$0xff]
    %v3303 = vld [vmem:[#allocation2 + $0x288] sm:$0xff]
    %v3304 = vld [vmem:[#allocation2 + $0x290] sm:$0xff]
    %v3305 = vld [vmem:[#allocation2 + $0x298] sm:$0xff]
    %v3306 = vld [vmem:[#allocation2 + $0x2a0] sm:$0xff]
    %v3307 = vld [vmem:[#allocation2 + $0x2a8] sm:$0xff]
    %v3308 = vld [vmem:[#allocation2 + $0x2b0] sm:$0xff]
    %v3309 = vld [vmem:[#allocation2 + $0x2b8] sm:$0xff]
    %v3310 = vld [vmem:[#allocation2 + $0x2c0] sm:$0xff]
    %v3311 = vld [vmem:[#allocation2 + $0x2c8] sm:$0xff]
    %v3312 = vld [vmem:[#allocation2 + $0x2d0] sm:$0xff]
    %v3313 = vld [vmem:[#allocation2 + $0x2d8] sm:$0xff]
    %v3314 = vld [vmem:[#allocation2 + $0x2e0] sm:$0xff]
    %v3315 = vld [vmem:[#allocation2 + $0x2e8] sm:$0xff]
    %v3316 = vld [vmem:[#allocation2 + $0x2f0] sm:$0xff]
    %v3317 = vld [vmem:[#allocation2 + $0x2f8] sm:$0xff]
    %3318 = vmatprep.subr.mxu0 %v883
    %3319 = vmatpush1.msra.mxu0 %v882
    %3320 = vmatprep.subr.mxu0 %v891
    %3321 = vmatpush1.msra.mxu0 %v890
    %3322 = vmatprep.subr.mxu0 %v899
    %3323 = vmatpush1.msra.mxu0 %v898
    %3324 = vmatprep.subr.mxu0 %v907
    %3325 = vmatpush1.msra.mxu0 %v906
    %3326 = vmatprep.subr.mxu0 %v915
    %3327 = vmatpush1.msra.mxu0 %v914
    %3328 = vmatprep.subr.mxu0 %v923
    %3329 = vmatpush1.msra.mxu0 %v922
    %3330 = vmatprep.subr.mxu0 %v931
    %3331 = vmatpush1.msra.mxu0 %v930
    %3332 = vmatprep.subr.mxu0 %v939
    %3333 = vmatpush1.msra.mxu0 %v938
    %3334 = vmatprep.subr.mxu0 %v947
    %3335 = vmatpush1.msra.mxu0 %v946
    %3336 = vmatprep.subr.mxu0 %v955
    %3337 = vmatpush1.msra.mxu0 %v954
    %3338 = vmatprep.subr.mxu0 %v963
    %3339 = vmatpush1.msra.mxu0 %v962
    %3340 = vmatprep.subr.mxu0 %v971
    %3341 = vmatpush1.msra.mxu0 %v970
    %3342 = vmatprep.subr.mxu0 %v979
    %3343 = vmatpush1.msra.mxu0 %v978
    %3344 = vmatprep.subr.mxu0 %v987
    %3345 = vmatpush1.msra.mxu0 %v986
    %3346 = vmatprep.subr.mxu0 %v995
    %3347 = vmatpush1.msra.mxu0 %v994
    %3348 = vmatprep.subr.mxu0 %v1003
    %3349 = vmatpush1.msra.mxu0 %v1002
    %3350 = vmatprep.subr.mxu0 %v1011
    %3351 = vmatpush1.msra.mxu0 %v1010
    %3352 = vmatprep.subr.mxu0 %v1019
    %3353 = vmatpush1.msra.mxu0 %v1018
    %3354 = vmatprep.subr.mxu0 %v1027
    %3355 = vmatpush1.msra.mxu0 %v1026
    %3356 = vmatprep.subr.mxu0 %v1035
    %3357 = vmatpush1.msra.mxu0 %v1034
    %3358 = vmatprep.subr.mxu0 %v1043
    %3359 = vmatpush1.msra.mxu0 %v1042
    %3360 = vmatprep.subr.mxu0 %v1051
    %3361 = vmatpush1.msra.mxu0 %v1050
    %3362 = vmatprep.subr.mxu0 %v1059
    %3363 = vmatpush1.msra.mxu0 %v1058
    %3364 = vmatprep.subr.mxu0 %v1067
    %3365 = vmatpush1.msra.mxu0 %v1066
    %3366 = vmatprep.subr.mxu0 %v1075
    %3367 = vmatpush1.msra.mxu0 %v1074
    %3368 = vmatprep.subr.mxu0 %v1083
    %3369 = vmatpush1.msra.mxu0 %v1082
    %3370 = vmatprep.subr.mxu0 %v1091
    %3371 = vmatpush1.msra.mxu0 %v1090
    %3372 = vmatprep.subr.mxu0 %v1099
    %3373 = vmatpush1.msra.mxu0 %v1098
    %3374 = vmatprep.subr.mxu0 %v1107
    %3375 = vmatpush1.msra.mxu0 %v1106
    %3376 = vmatprep.subr.mxu0 %v1115
    %3377 = vmatpush1.msra.mxu0 %v1114
    %3378 = vmatprep.subr.mxu0 %v1123
    %3379 = vmatpush1.msra.mxu0 %v1122
    %3380 = vmatprep.subr.mxu0 %v1131
    %3381 = vmatpush1.msra.mxu0 %v1130
    %3382 = vmatprep.mubr.f32.mxu0 %v3299
    %3383 = vmatmul.mubr.f32.gmra.mrb[0].mxu0 %v3298
    %v3384 = vpop.f32.mrb[0].mxu0
    %v3385 = vadd.f32 0.0, %v3384
    %v3386 = vpop.f32.mrb[0].mxu0
    %v3387 = vadd.f32 0.0, %v3386
    %3388 = vmatprep.mubr.f32.mxu0 %v3301
    %3389 = vmatmul.mubr.f32.gmra.mrb[0].mxu0 %v3300
    %v3390 = vpop.f32.mrb[0].mxu0
    %v3391 = vadd.f32 0.0, %v3390
    %v3392 = vpop.f32.mrb[0].mxu0
    %v3393 = vadd.f32 0.0, %v3392
    %3394 = vdwg.mxu0
    %3395 = vmatprep.subr.mxu0 %v885
    %3396 = vmatpush1.msra.mxu0 %v884
    %3397 = vmatprep.subr.mxu0 %v893
    %3398 = vmatpush1.msra.mxu0 %v892
    %3399 = vmatprep.subr.mxu0 %v901
    %3400 = vmatpush1.msra.mxu0 %v900
    %3401 = vmatprep.subr.mxu0 %v909
    %3402 = vmatpush1.msra.mxu0 %v908
    %3403 = vmatprep.subr.mxu0 %v917
    %3404 = vmatpush1.msra.mxu0 %v916
    %3405 = vmatprep.subr.mxu0 %v925
    %3406 = vmatpush1.msra.mxu0 %v924
    %3407 = vmatprep.subr.mxu0 %v933
    %3408 = vmatpush1.msra.mxu0 %v932
    %3409 = vmatprep.subr.mxu0 %v941
    %3410 = vmatpush1.msra.mxu0 %v940
    %3411 = vmatprep.subr.mxu0 %v949
    %3412 = vmatpush1.msra.mxu0 %v948
    %3413 = vmatprep.subr.mxu0 %v957
    %3414 = vmatpush1.msra.mxu0 %v956
    %3415 = vmatprep.subr.mxu0 %v965
    %3416 = vmatpush1.msra.mxu0 %v964
    %3417 = vmatprep.subr.mxu0 %v973
    %3418 = vmatpush1.msra.mxu0 %v972
    %3419 = vmatprep.subr.mxu0 %v981
    %3420 = vmatpush1.msra.mxu0 %v980
    %3421 = vmatprep.subr.mxu0 %v989
    %3422 = vmatpush1.msra.mxu0 %v988
    %3423 = vmatprep.subr.mxu0 %v997
    %3424 = vmatpush1.msra.mxu0 %v996
    %3425 = vmatprep.subr.mxu0 %v1005
    %3426 = vmatpush1.msra.mxu0 %v1004
    %3427 = vmatprep.subr.mxu0 %v1013
    %3428 = vmatpush1.msra.mxu0 %v1012
    %3429 = vmatprep.subr.mxu0 %v1021
    %3430 = vmatpush1.msra.mxu0 %v1020
    %3431 = vmatprep.subr.mxu0 %v1029
    %3432 = vmatpush1.msra.mxu0 %v1028
    %3433 = vmatprep.subr.mxu0 %v1037
    %3434 = vmatpush1.msra.mxu0 %v1036
    %3435 = vmatprep.subr.mxu0 %v1045
    %3436 = vmatpush1.msra.mxu0 %v1044
    %3437 = vmatprep.subr.mxu0 %v1053
    %3438 = vmatpush1.msra.mxu0 %v1052
    %3439 = vmatprep.subr.mxu0 %v1061
    %3440 = vmatpush1.msra.mxu0 %v1060
    %3441 = vmatprep.subr.mxu0 %v1069
    %3442 = vmatpush1.msra.mxu0 %v1068
    %3443 = vmatprep.subr.mxu0 %v1077
    %3444 = vmatpush1.msra.mxu0 %v1076
    %3445 = vmatprep.subr.mxu0 %v1085
    %3446 = vmatpush1.msra.mxu0 %v1084
    %3447 = vmatprep.subr.mxu0 %v1093
    %3448 = vmatpush1.msra.mxu0 %v1092
    %3449 = vmatprep.subr.mxu0 %v1101
    %3450 = vmatpush1.msra.mxu0 %v1100
    %3451 = vmatprep.subr.mxu0 %v1109
    %3452 = vmatpush1.msra.mxu0 %v1108
    %3453 = vmatprep.subr.mxu0 %v1117
    %3454 = vmatpush1.msra.mxu0 %v1116
    %3455 = vmatprep.subr.mxu0 %v1125
    %3456 = vmatpush1.msra.mxu0 %v1124
    %3457 = vmatprep.subr.mxu0 %v1133
    %3458 = vmatpush1.msra.mxu0 %v1132
    %3459 = vmatprep.mubr.f32.mxu0 %v3299
    %3460 = vmatmul.mubr.f32.gmra.mrb[0].mxu0 %v3298
    %v3461 = vpop.f32.mrb[0].mxu0
    %v3462 = vadd.f32 0.0, %v3461
    %v3463 = vpop.f32.mrb[0].mxu0
    %v3464 = vadd.f32 0.0, %v3463
    %3465 = vmatprep.mubr.f32.mxu0 %v3301
    %3466 = vmatmul.mubr.f32.gmra.mrb[0].mxu0 %v3300
    %v3467 = vpop.f32.mrb[0].mxu0
    %v3468 = vadd.f32 0.0, %v3467
    %v3469 = vpop.f32.mrb[0].mxu0
    %v3470 = vadd.f32 0.0, %v3469
    %3471 = vdwg.mxu0
    %3472 = vmatprep.subr.mxu0 %v887
    %3473 = vmatpush1.msra.mxu0 %v886
    %3474 = vmatprep.subr.mxu0 %v895
    %3475 = vmatpush1.msra.mxu0 %v894
    %3476 = vmatprep.subr.mxu0 %v903
    %3477 = vmatpush1.msra.mxu0 %v902
    %3478 = vmatprep.subr.mxu0 %v911
    %3479 = vmatpush1.msra.mxu0 %v910
    %3480 = vmatprep.subr.mxu0 %v919
    %3481 = vmatpush1.msra.mxu0 %v918
    %3482 = vmatprep.subr.mxu0 %v927
    %3483 = vmatpush1.msra.mxu0 %v926
    %3484 = vmatprep.subr.mxu0 %v935
    %3485 = vmatpush1.msra.mxu0 %v934
    %3486 = vmatprep.subr.mxu0 %v943
    %3487 = vmatpush1.msra.mxu0 %v942
    %3488 = vmatprep.subr.mxu0 %v951
    %3489 = vmatpush1.msra.mxu0 %v950
    %3490 = vmatprep.subr.mxu0 %v959
    %3491 = vmatpush1.msra.mxu0 %v958
    %3492 = vmatprep.subr.mxu0 %v967
    %3493 = vmatpush1.msra.mxu0 %v966
    %3494 = vmatprep.subr.mxu0 %v975
    %3495 = vmatpush1.msra.mxu0 %v974
    %3496 = vmatprep.subr.mxu0 %v983
    %3497 = vmatpush1.msra.mxu0 %v982
    %3498 = vmatprep.subr.mxu0 %v991
    %3499 = vmatpush1.msra.mxu0 %v990
    %3500 = vmatprep.subr.mxu0 %v999
    %3501 = vmatpush1.msra.mxu0 %v998
    %3502 = vmatprep.subr.mxu0 %v1007
    %3503 = vmatpush1.msra.mxu0 %v1006
    %3504 = vmatprep.subr.mxu0 %v1015
    %3505 = vmatpush1.msra.mxu0 %v1014
    %3506 = vmatprep.subr.mxu0 %v1023
    %3507 = vmatpush1.msra.mxu0 %v1022
    %3508 = vmatprep.subr.mxu0 %v1031
    %3509 = vmatpush1.msra.mxu0 %v1030
    %3510 = vmatprep.subr.mxu0 %v1039
    %3511 = vmatpush1.msra.mxu0 %v1038
    %3512 = vmatprep.subr.mxu0 %v1047
    %3513 = vmatpush1.msra.mxu0 %v1046
    %3514 = vmatprep.subr.mxu0 %v1055
    %3515 = vmatpush1.msra.mxu0 %v1054
    %3516 = vmatprep.subr.mxu0 %v1063
    %3517 = vmatpush1.msra.mxu0 %v1062
    %3518 = vmatprep.subr.mxu0 %v1071
    %3519 = vmatpush1.msra.mxu0 %v1070
    %3520 = vmatprep.subr.mxu0 %v1079
    %3521 = vmatpush1.msra.mxu0 %v1078
    %3522 = vmatprep.subr.mxu0 %v1087
    %3523 = vmatpush1.msra.mxu0 %v1086
    %3524 = vmatprep.subr.mxu0 %v1095
    %3525 = vmatpush1.msra.mxu0 %v1094
    %3526 = vmatprep.subr.mxu0 %v1103
    %3527 = vmatpush1.msra.mxu0 %v1102
    %3528 = vmatprep.subr.mxu0 %v1111
    %3529 = vmatpush1.msra.mxu0 %v1110
    %3530 = vmatprep.subr.mxu0 %v1119
    %3531 = vmatpush1.msra.mxu0 %v1118
    %3532 = vmatprep.subr.mxu0 %v1127
    %3533 = vmatpush1.msra.mxu0 %v1126
    %3534 = vmatprep.subr.mxu0 %v1135
    %3535 = vmatpush1.msra.mxu0 %v1134
    %3536 = vmatprep.mubr.f32.mxu0 %v3299
    %3537 = vmatmul.mubr.f32.gmra.mrb[0].mxu0 %v3298
    %v3538 = vpop.f32.mrb[0].mxu0
    %v3539 = vadd.f32 0.0, %v3538
    %v3540 = vpop.f32.mrb[0].mxu0
    %v3541 = vadd.f32 0.0, %v3540
    %3542 = vmatprep.mubr.f32.mxu0 %v3301
    %3543 = vmatmul.mubr.f32.gmra.mrb[0].mxu0 %v3300
    %v3544 = vpop.f32.mrb[0].mxu0
    %v3545 = vadd.f32 0.0, %v3544
    %v3546 = vpop.f32.mrb[0].mxu0
    %v3547 = vadd.f32 0.0, %v3546
    %3548 = vdwg.mxu0
    %3549 = vmatprep.subr.mxu0 %v889
    %3550 = vmatpush1.msra.mxu0 %v888
    %3551 = vmatprep.subr.mxu0 %v897
    %3552 = vmatpush1.msra.mxu0 %v896
    %3553 = vmatprep.subr.mxu0 %v905
    %3554 = vmatpush1.msra.mxu0 %v904
    %3555 = vmatprep.subr.mxu0 %v913
    %3556 = vmatpush1.msra.mxu0 %v912
    %3557 = vmatprep.subr.mxu0 %v921
    %3558 = vmatpush1.msra.mxu0 %v920
    %3559 = vmatprep.subr.mxu0 %v929
    %3560 = vmatpush1.msra.mxu0 %v928
    %3561 = vmatprep.subr.mxu0 %v937
    %3562 = vmatpush1.msra.mxu0 %v936
    %3563 = vmatprep.subr.mxu0 %v945
    %3564 = vmatpush1.msra.mxu0 %v944
    %3565 = vmatprep.subr.mxu0 %v953
    %3566 = vmatpush1.msra.mxu0 %v952
    %3567 = vmatprep.subr.mxu0 %v961
    %3568 = vmatpush1.msra.mxu0 %v960
    %3569 = vmatprep.subr.mxu0 %v969
    %3570 = vmatpush1.msra.mxu0 %v968
    %3571 = vmatprep.subr.mxu0 %v977
    %3572 = vmatpush1.msra.mxu0 %v976
    %3573 = vmatprep.subr.mxu0 %v985
    %3574 = vmatpush1.msra.mxu0 %v984
    %3575 = vmatprep.subr.mxu0 %v993
    %3576 = vmatpush1.msra.mxu0 %v992
    %3577 = vmatprep.subr.mxu0 %v1001
    %3578 = vmatpush1.msra.mxu0 %v1000
    %3579 = vmatprep.subr.mxu0 %v1009
    %3580 = vmatpush1.msra.mxu0 %v1008
    %3581 = vmatprep.subr.mxu0 %v1017
    %3582 = vmatpush1.msra.mxu0 %v1016
    %3583 = vmatprep.subr.mxu0 %v1025
    %3584 = vmatpush1.msra.mxu0 %v1024
    %3585 = vmatprep.subr.mxu0 %v1033
    %3586 = vmatpush1.msra.mxu0 %v1032
    %3587 = vmatprep.subr.mxu0 %v1041
    %3588 = vmatpush1.msra.mxu0 %v1040
    %3589 = vmatprep.subr.mxu0 %v1049
    %3590 = vmatpush1.msra.mxu0 %v1048
    %3591 = vmatprep.subr.mxu0 %v1057
    %3592 = vmatpush1.msra.mxu0 %v1056
    %3593 = vmatprep.subr.mxu0 %v1065
    %3594 = vmatpush1.msra.mxu0 %v1064
    %3595 = vmatprep.subr.mxu0 %v1073
    %3596 = vmatpush1.msra.mxu0 %v1072
    %3597 = vmatprep.subr.mxu0 %v1081
    %3598 = vmatpush1.msra.mxu0 %v1080
    %3599 = vmatprep.subr.mxu0 %v1089
    %3600 = vmatpush1.msra.mxu0 %v1088
    %3601 = vmatprep.subr.mxu0 %v1097
    %3602 = vmatpush1.msra.mxu0 %v1096
    %3603 = vmatprep.subr.mxu0 %v1105
    %3604 = vmatpush1.msra.mxu0 %v1104
    %3605 = vmatprep.subr.mxu0 %v1113
    %3606 = vmatpush1.msra.mxu0 %v1112
    %3607 = vmatprep.subr.mxu0 %v1121
    %3608 = vmatpush1.msra.mxu0 %v1120
    %3609 = vmatprep.subr.mxu0 %v1129
    %3610 = vmatpush1.msra.mxu0 %v1128
    %3611 = vmatprep.subr.mxu0 %v1137
    %3612 = vmatpush1.msra.mxu0 %v1136
    %3613 = vmatprep.mubr.f32.mxu0 %v3299
    %3614 = vmatmul.mubr.f32.gmra.mrb[0].mxu0 %v3298
    %v3615 = vpop.f32.mrb[0].mxu0
    %v3616 = vadd.f32 0.0, %v3615
    %v3617 = vpop.f32.mrb[0].mxu0
    %v3618 = vadd.f32 0.0, %v3617
    %3619 = vmatprep.mubr.f32.mxu0 %v3301
    %3620 = vmatmul.mubr.f32.gmra.mrb[0].mxu0 %v3300
    %v3621 = vpop.f32.mrb[0].mxu0
    %v3622 = vadd.f32 0.0, %v3621
    %v3623 = vpop.f32.mrb[0].mxu0
    %v3624 = vadd.f32 0.0, %v3623
    %3625 = vdwg.mxu0
    %v3626 = vadd.f32 %v3302, %v3385
    %v3627 = vadd.f32 %v3303, %v3387
    %v3628 = vadd.f32 %v3304, %v3462
    %v3629 = vadd.f32 %v3305, %v3464
    %v3630 = vadd.f32 %v3306, %v3539
    %v3631 = vadd.f32 %v3307, %v3541
    %v3632 = vadd.f32 %v3308, %v3616
    %v3633 = vadd.f32 %v3309, %v3618
    %v3634 = vadd.f32 %v3310, %v3391
    %v3635 = vadd.f32 %v3311, %v3393
    %v3636 = vadd.f32 %v3312, %v3468
    %v3637 = vadd.f32 %v3313, %v3470
    %v3638 = vadd.f32 %v3314, %v3545
    %v3639 = vadd.f32 %v3315, %v3547
    %v3640 = vadd.f32 %v3316, %v3622
    %v3641 = vadd.f32 %v3317, %v3624
    %v3642 = vxor.u32 %v3626, 2147483648
    %v3643 = vxor.u32 %v3627, 2147483648
    %v3644 = vxor.u32 %v3634, 2147483648
    %v3645 = vxor.u32 %v3635, 2147483648
    %v3646 = vmul.f32 %v3642, 1.442695
    %v3647 = vpow.pop %v3646
    %v3648 = vmul.f32 %v3643, 1.442695
    %v3649 = vpow.pop %v3648
    %v3650 = vmul.f32 %v3644, 1.442695
    %v3651 = vpow.pop %v3650
    %v3652 = vmul.f32 %v3645, 1.442695
    %v3653 = vpow.pop %v3652
    %v3654 = vadd.f32 %v3647, 1.0
    %v3655 = vadd.f32 %v3649, 1.0
    %v3656 = vadd.f32 %v3651, 1.0
    %v3657 = vadd.f32 %v3653, 1.0
    %v3658 = vrcp.pop %v3654
    %v3659 = vmul.f32 1.0, %v3658
    %v3660 = vrcp.pop %v3655
    %v3661 = vmul.f32 1.0, %v3660
    %v3662 = vrcp.pop %v3656
    %v3663 = vmul.f32 1.0, %v3662
    %v3664 = vrcp.pop %v3657
    %v3665 = vmul.f32 1.0, %v3664
    %v3666 = vxor.u32 %v3628, 2147483648
    %v3667 = vxor.u32 %v3629, 2147483648
    %v3668 = vxor.u32 %v3636, 2147483648
    %v3669 = vxor.u32 %v3637, 2147483648
    %v3670 = vmul.f32 %v3666, 1.442695
    %v3671 = vpow.pop %v3670
    %v3672 = vmul.f32 %v3667, 1.442695
    %v3673 = vpow.pop %v3672
    %v3674 = vmul.f32 %v3668, 1.442695
    %v3675 = vpow.pop %v3674
    %v3676 = vmul.f32 %v3669, 1.442695
    %v3677 = vpow.pop %v3676
    %v3678 = vadd.f32 %v3671, 1.0
    %v3679 = vadd.f32 %v3673, 1.0
    %v3680 = vadd.f32 %v3675, 1.0
    %v3681 = vadd.f32 %v3677, 1.0
    %v3682 = vrcp.pop %v3678
    %v3683 = vmul.f32 1.0, %v3682
    %v3684 = vrcp.pop %v3679
    %v3685 = vmul.f32 1.0, %v3684
    %v3686 = vrcp.pop %v3680
    %v3687 = vmul.f32 1.0, %v3686
    %v3688 = vrcp.pop %v3681
    %v3689 = vmul.f32 1.0, %v3688
    %v3690 = vtanh.pop %v3630
    %v3691 = vtanh.pop %v3631
    %v3692 = vtanh.pop %v3638
    %v3693 = vtanh.pop %v3639
    %v3694 = vxor.u32 %v3632, 2147483648
    %v3695 = vxor.u32 %v3633, 2147483648
    %v3696 = vxor.u32 %v3640, 2147483648
    %v3697 = vxor.u32 %v3641, 2147483648
    %v3698 = vmul.f32 %v3694, 1.442695
    %v3699 = vpow.pop %v3698
    %v3700 = vmul.f32 %v3695, 1.442695
    %v3701 = vpow.pop %v3700
    %v3702 = vmul.f32 %v3696, 1.442695
    %v3703 = vpow.pop %v3702
    %v3704 = vmul.f32 %v3697, 1.442695
    %v3705 = vpow.pop %v3704
    %v3706 = vadd.f32 %v3699, 1.0
    %v3707 = vadd.f32 %v3701, 1.0
    %v3708 = vadd.f32 %v3703, 1.0
    %v3709 = vadd.f32 %v3705, 1.0
    %v3710 = vrcp.pop %v3706
    %v3711 = vmul.f32 1.0, %v3710
    %v3712 = vrcp.pop %v3707
    %v3713 = vmul.f32 1.0, %v3712
    %v3714 = vrcp.pop %v3708
    %v3715 = vmul.f32 1.0, %v3714
    %v3716 = vrcp.pop %v3709
    %v3717 = vmul.f32 1.0, %v3716
    %v3718 = vmul.f32 %v3683, %v3290
    %v3719 = vmul.f32 %v3685, %v3291
    %v3720 = vmul.f32 %v3687, %v3292
    %v3721 = vmul.f32 %v3689, %v3293
    %v3722 = vmul.f32 %v3659, %v3690
    %v3723 = vmul.f32 %v3661, %v3691
    %v3724 = vmul.f32 %v3663, %v3692
    %v3725 = vmul.f32 %v3665, %v3693
    %v3726 = vadd.f32 %v3718, %v3722
    %v3727 = vadd.f32 %v3719, %v3723
    %v3728 = vadd.f32 %v3720, %v3724
    %v3729 = vadd.f32 %v3721, %v3725
    %v3730 = vtanh.pop %v3726
    %v3731 = vtanh.pop %v3727
    %v3732 = vtanh.pop %v3728
    %v3733 = vtanh.pop %v3729
    %v3734 = vmul.f32 %v3711, %v3730
    %v3735 = vmul.f32 %v3713, %v3731
    %v3736 = vmul.f32 %v3715, %v3732
    %v3737 = vmul.f32 %v3717, %v3733
    %v3738 = vld [vmem:[#allocation6] sm:$0xff]
    %v3739 = vld [vmem:[#allocation6 + $0x8] sm:$0xff]
    %v3740 = vld [vmem:[#allocation6 + $0x10] sm:$0xff]
    %v3741 = vld [vmem:[#allocation6 + $0x18] sm:$0xff]
    %v3742 = vld [vmem:[#allocation6 + $0x20] sm:$0xff]
    %v3743 = vld [vmem:[#allocation6 + $0x28] sm:$0xff]
    %v3744 = vld [vmem:[#allocation6 + $0x30] sm:$0xff]
    %v3745 = vld [vmem:[#allocation6 + $0x38] sm:$0xff]
    %v3746 = vld [vmem:[#allocation6 + $0x40] sm:$0xff]
    %v3747 = vld [vmem:[#allocation6 + $0x48] sm:$0xff]
    %v3748 = vld [vmem:[#allocation6 + $0x50] sm:$0xff]
    %v3749 = vld [vmem:[#allocation6 + $0x58] sm:$0xff]
    %v3750 = vld [vmem:[#allocation6 + $0x60] sm:$0xff]
    %v3751 = vld [vmem:[#allocation6 + $0x68] sm:$0xff]
    %v3752 = vld [vmem:[#allocation6 + $0x70] sm:$0xff]
    %v3753 = vld [vmem:[#allocation6 + $0x78] sm:$0xff]
    %v3754 = vld [vmem:[#allocation6 + $0x80] sm:$0xff]
    %v3755 = vld [vmem:[#allocation6 + $0x88] sm:$0xff]
    %v3756 = vld [vmem:[#allocation6 + $0x90] sm:$0xff]
    %v3757 = vld [vmem:[#allocation6 + $0x98] sm:$0xff]
    %v3758 = vld [vmem:[#allocation6 + $0xa0] sm:$0xff]
    %v3759 = vld [vmem:[#allocation6 + $0xa8] sm:$0xff]
    %v3760 = vld [vmem:[#allocation6 + $0xb0] sm:$0xff]
    %v3761 = vld [vmem:[#allocation6 + $0xb8] sm:$0xff]
    %v3762 = vld [vmem:[#allocation6 + $0xc0] sm:$0xff]
    %v3763 = vld [vmem:[#allocation6 + $0xc8] sm:$0xff]
    %v3764 = vld [vmem:[#allocation6 + $0xd0] sm:$0xff]
    %v3765 = vld [vmem:[#allocation6 + $0xd8] sm:$0xff]
    %v3766 = vld [vmem:[#allocation6 + $0xe0] sm:$0xff]
    %v3767 = vld [vmem:[#allocation6 + $0xe8] sm:$0xff]
    %v3768 = vld [vmem:[#allocation6 + $0xf0] sm:$0xff]
    %v3769 = vld [vmem:[#allocation6 + $0xf8] sm:$0xff]
    %v3770 = vld [vmem:[#allocation6 + $0x100] sm:$0xff]
    %v3771 = vld [vmem:[#allocation6 + $0x108] sm:$0xff]
    %v3772 = vld [vmem:[#allocation6 + $0x110] sm:$0xff]
    %v3773 = vld [vmem:[#allocation6 + $0x118] sm:$0xff]
    %v3774 = vld [vmem:[#allocation6 + $0x120] sm:$0xff]
    %v3775 = vld [vmem:[#allocation6 + $0x128] sm:$0xff]
    %v3776 = vld [vmem:[#allocation6 + $0x130] sm:$0xff]
    %v3777 = vld [vmem:[#allocation6 + $0x138] sm:$0xff]
    %v3778 = vld [vmem:[#allocation6 + $0x140] sm:$0xff]
    %v3779 = vld [vmem:[#allocation6 + $0x148] sm:$0xff]
    %v3780 = vld [vmem:[#allocation6 + $0x150] sm:$0xff]
    %v3781 = vld [vmem:[#allocation6 + $0x158] sm:$0xff]
    %v3782 = vld [vmem:[#allocation6 + $0x160] sm:$0xff]
    %v3783 = vld [vmem:[#allocation6 + $0x168] sm:$0xff]
    %v3784 = vld [vmem:[#allocation6 + $0x170] sm:$0xff]
    %v3785 = vld [vmem:[#allocation6 + $0x178] sm:$0xff]
    %v3786 = vld [vmem:[#allocation6 + $0x180] sm:$0xff]
    %v3787 = vld [vmem:[#allocation6 + $0x188] sm:$0xff]
    %v3788 = vld [vmem:[#allocation6 + $0x190] sm:$0xff]
    %v3789 = vld [vmem:[#allocation6 + $0x198] sm:$0xff]
    %v3790 = vld [vmem:[#allocation6 + $0x1a0] sm:$0xff]
    %v3791 = vld [vmem:[#allocation6 + $0x1a8] sm:$0xff]
    %v3792 = vld [vmem:[#allocation6 + $0x1b0] sm:$0xff]
    %v3793 = vld [vmem:[#allocation6 + $0x1b8] sm:$0xff]
    %v3794 = vld [vmem:[#allocation6 + $0x1c0] sm:$0xff]
    %v3795 = vld [vmem:[#allocation6 + $0x1c8] sm:$0xff]
    %v3796 = vld [vmem:[#allocation6 + $0x1d0] sm:$0xff]
    %v3797 = vld [vmem:[#allocation6 + $0x1d8] sm:$0xff]
    %v3798 = vld [vmem:[#allocation6 + $0x1e0] sm:$0xff]
    %v3799 = vld [vmem:[#allocation6 + $0x1e8] sm:$0xff]
    %v3800 = vld [vmem:[#allocation6 + $0x1f0] sm:$0xff]
    %v3801 = vld [vmem:[#allocation6 + $0x1f8] sm:$0xff]
    %v3802 = vld [vmem:[#allocation6 + $0x200] sm:$0xff]
    %v3803 = vld [vmem:[#allocation6 + $0x208] sm:$0xff]
    %v3804 = vld [vmem:[#allocation6 + $0x210] sm:$0xff]
    %v3805 = vld [vmem:[#allocation6 + $0x218] sm:$0xff]
    %v3806 = vld [vmem:[#allocation6 + $0x220] sm:$0xff]
    %v3807 = vld [vmem:[#allocation6 + $0x228] sm:$0xff]
    %v3808 = vld [vmem:[#allocation6 + $0x230] sm:$0xff]
    %v3809 = vld [vmem:[#allocation6 + $0x238] sm:$0xff]
    %v3810 = vld [vmem:[#allocation6 + $0x240] sm:$0xff]
    %v3811 = vld [vmem:[#allocation6 + $0x248] sm:$0xff]
    %v3812 = vld [vmem:[#allocation6 + $0x250] sm:$0xff]
    %v3813 = vld [vmem:[#allocation6 + $0x258] sm:$0xff]
    %v3814 = vld [vmem:[#allocation6 + $0x260] sm:$0xff]
    %v3815 = vld [vmem:[#allocation6 + $0x268] sm:$0xff]
    %v3816 = vld [vmem:[#allocation6 + $0x270] sm:$0xff]
    %v3817 = vld [vmem:[#allocation6 + $0x278] sm:$0xff]
    %v3818 = vld [vmem:[#allocation6 + $0x280] sm:$0xff]
    %v3819 = vld [vmem:[#allocation6 + $0x288] sm:$0xff]
    %v3820 = vld [vmem:[#allocation6 + $0x290] sm:$0xff]
    %v3821 = vld [vmem:[#allocation6 + $0x298] sm:$0xff]
    %v3822 = vld [vmem:[#allocation6 + $0x2a0] sm:$0xff]
    %v3823 = vld [vmem:[#allocation6 + $0x2a8] sm:$0xff]
    %v3824 = vld [vmem:[#allocation6 + $0x2b0] sm:$0xff]
    %v3825 = vld [vmem:[#allocation6 + $0x2b8] sm:$0xff]
    %v3826 = vld [vmem:[#allocation6 + $0x2c0] sm:$0xff]
    %v3827 = vld [vmem:[#allocation6 + $0x2c8] sm:$0xff]
    %v3828 = vld [vmem:[#allocation6 + $0x2d0] sm:$0xff]
    %v3829 = vld [vmem:[#allocation6 + $0x2d8] sm:$0xff]
    %v3830 = vld [vmem:[#allocation6 + $0x2e0] sm:$0xff]
    %v3831 = vld [vmem:[#allocation6 + $0x2e8] sm:$0xff]
    %v3832 = vld [vmem:[#allocation6 + $0x2f0] sm:$0xff]
    %v3833 = vld [vmem:[#allocation6 + $0x2f8] sm:$0xff]
    %v3834 = vld [vmem:[#allocation6 + $0x300] sm:$0xff]
    %v3835 = vld [vmem:[#allocation6 + $0x308] sm:$0xff]
    %v3836 = vld [vmem:[#allocation6 + $0x310] sm:$0xff]
    %v3837 = vld [vmem:[#allocation6 + $0x318] sm:$0xff]
    %v3838 = vld [vmem:[#allocation6 + $0x320] sm:$0xff]
    %v3839 = vld [vmem:[#allocation6 + $0x328] sm:$0xff]
    %v3840 = vld [vmem:[#allocation6 + $0x330] sm:$0xff]
    %v3841 = vld [vmem:[#allocation6 + $0x338] sm:$0xff]
    %v3842 = vld [vmem:[#allocation6 + $0x340] sm:$0xff]
    %v3843 = vld [vmem:[#allocation6 + $0x348] sm:$0xff]
    %v3844 = vld [vmem:[#allocation6 + $0x350] sm:$0xff]
    %v3845 = vld [vmem:[#allocation6 + $0x358] sm:$0xff]
    %v3846 = vld [vmem:[#allocation6 + $0x360] sm:$0xff]
    %v3847 = vld [vmem:[#allocation6 + $0x368] sm:$0xff]
    %v3848 = vld [vmem:[#allocation6 + $0x370] sm:$0xff]
    %v3849 = vld [vmem:[#allocation6 + $0x378] sm:$0xff]
    %v3850 = vld [vmem:[#allocation6 + $0x380] sm:$0xff]
    %v3851 = vld [vmem:[#allocation6 + $0x388] sm:$0xff]
    %v3852 = vld [vmem:[#allocation6 + $0x390] sm:$0xff]
    %v3853 = vld [vmem:[#allocation6 + $0x398] sm:$0xff]
    %v3854 = vld [vmem:[#allocation6 + $0x3a0] sm:$0xff]
    %v3855 = vld [vmem:[#allocation6 + $0x3a8] sm:$0xff]
    %v3856 = vld [vmem:[#allocation6 + $0x3b0] sm:$0xff]
    %v3857 = vld [vmem:[#allocation6 + $0x3b8] sm:$0xff]
    %v3858 = vld [vmem:[#allocation6 + $0x3c0] sm:$0xff]
    %v3859 = vld [vmem:[#allocation6 + $0x3c8] sm:$0xff]
    %v3860 = vld [vmem:[#allocation6 + $0x3d0] sm:$0xff]
    %v3861 = vld [vmem:[#allocation6 + $0x3d8] sm:$0xff]
    %v3862 = vld [vmem:[#allocation6 + $0x3e0] sm:$0xff]
    %v3863 = vld [vmem:[#allocation6 + $0x3e8] sm:$0xff]
    %v3864 = vld [vmem:[#allocation6 + $0x3f0] sm:$0xff]
    %v3865 = vld [vmem:[#allocation6 + $0x3f8] sm:$0xff]
    %v3866 = vld [vmem:[#allocation6 + $0x400] sm:$0xff]
    %v3867 = vld [vmem:[#allocation6 + $0x408] sm:$0xff]
    %v3868 = vld [vmem:[#allocation6 + $0x410] sm:$0xff]
    %v3869 = vld [vmem:[#allocation6 + $0x418] sm:$0xff]
    %v3870 = vld [vmem:[#allocation6 + $0x420] sm:$0xff]
    %v3871 = vld [vmem:[#allocation6 + $0x428] sm:$0xff]
    %v3872 = vld [vmem:[#allocation6 + $0x430] sm:$0xff]
    %v3873 = vld [vmem:[#allocation6 + $0x438] sm:$0xff]
    %v3874 = vld [vmem:[#allocation6 + $0x440] sm:$0xff]
    %v3875 = vld [vmem:[#allocation6 + $0x448] sm:$0xff]
    %v3876 = vld [vmem:[#allocation6 + $0x450] sm:$0xff]
    %v3877 = vld [vmem:[#allocation6 + $0x458] sm:$0xff]
    %v3878 = vld [vmem:[#allocation6 + $0x460] sm:$0xff]
    %v3879 = vld [vmem:[#allocation6 + $0x468] sm:$0xff]
    %v3880 = vld [vmem:[#allocation6 + $0x470] sm:$0xff]
    %v3881 = vld [vmem:[#allocation6 + $0x478] sm:$0xff]
    %v3882 = vld [vmem:[#allocation6 + $0x480] sm:$0xff]
    %v3883 = vld [vmem:[#allocation6 + $0x488] sm:$0xff]
    %v3884 = vld [vmem:[#allocation6 + $0x490] sm:$0xff]
    %v3885 = vld [vmem:[#allocation6 + $0x498] sm:$0xff]
    %v3886 = vld [vmem:[#allocation6 + $0x4a0] sm:$0xff]
    %v3887 = vld [vmem:[#allocation6 + $0x4a8] sm:$0xff]
    %v3888 = vld [vmem:[#allocation6 + $0x4b0] sm:$0xff]
    %v3889 = vld [vmem:[#allocation6 + $0x4b8] sm:$0xff]
    %v3890 = vld [vmem:[#allocation6 + $0x4c0] sm:$0xff]
    %v3891 = vld [vmem:[#allocation6 + $0x4c8] sm:$0xff]
    %v3892 = vld [vmem:[#allocation6 + $0x4d0] sm:$0xff]
    %v3893 = vld [vmem:[#allocation6 + $0x4d8] sm:$0xff]
    %v3894 = vld [vmem:[#allocation6 + $0x4e0] sm:$0xff]
    %v3895 = vld [vmem:[#allocation6 + $0x4e8] sm:$0xff]
    %v3896 = vld [vmem:[#allocation6 + $0x4f0] sm:$0xff]
    %v3897 = vld [vmem:[#allocation6 + $0x4f8] sm:$0xff]
    %v3898 = vld [vmem:[#allocation6 + $0x500] sm:$0xff]
    %v3899 = vld [vmem:[#allocation6 + $0x508] sm:$0xff]
    %v3900 = vld [vmem:[#allocation6 + $0x510] sm:$0xff]
    %v3901 = vld [vmem:[#allocation6 + $0x518] sm:$0xff]
    %v3902 = vld [vmem:[#allocation6 + $0x520] sm:$0xff]
    %v3903 = vld [vmem:[#allocation6 + $0x528] sm:$0xff]
    %v3904 = vld [vmem:[#allocation6 + $0x530] sm:$0xff]
    %v3905 = vld [vmem:[#allocation6 + $0x538] sm:$0xff]
    %v3906 = vld [vmem:[#allocation6 + $0x540] sm:$0xff]
    %v3907 = vld [vmem:[#allocation6 + $0x548] sm:$0xff]
    %v3908 = vld [vmem:[#allocation6 + $0x550] sm:$0xff]
    %v3909 = vld [vmem:[#allocation6 + $0x558] sm:$0xff]
    %v3910 = vld [vmem:[#allocation6 + $0x560] sm:$0xff]
    %v3911 = vld [vmem:[#allocation6 + $0x568] sm:$0xff]
    %v3912 = vld [vmem:[#allocation6 + $0x570] sm:$0xff]
    %v3913 = vld [vmem:[#allocation6 + $0x578] sm:$0xff]
    %v3914 = vld [vmem:[#allocation6 + $0x580] sm:$0xff]
    %v3915 = vld [vmem:[#allocation6 + $0x588] sm:$0xff]
    %v3916 = vld [vmem:[#allocation6 + $0x590] sm:$0xff]
    %v3917 = vld [vmem:[#allocation6 + $0x598] sm:$0xff]
    %v3918 = vld [vmem:[#allocation6 + $0x5a0] sm:$0xff]
    %v3919 = vld [vmem:[#allocation6 + $0x5a8] sm:$0xff]
    %v3920 = vld [vmem:[#allocation6 + $0x5b0] sm:$0xff]
    %v3921 = vld [vmem:[#allocation6 + $0x5b8] sm:$0xff]
    %v3922 = vld [vmem:[#allocation6 + $0x5c0] sm:$0xff]
    %v3923 = vld [vmem:[#allocation6 + $0x5c8] sm:$0xff]
    %v3924 = vld [vmem:[#allocation6 + $0x5d0] sm:$0xff]
    %v3925 = vld [vmem:[#allocation6 + $0x5d8] sm:$0xff]
    %v3926 = vld [vmem:[#allocation6 + $0x5e0] sm:$0xff]
    %v3927 = vld [vmem:[#allocation6 + $0x5e8] sm:$0xff]
    %v3928 = vld [vmem:[#allocation6 + $0x5f0] sm:$0xff]
    %v3929 = vld [vmem:[#allocation6 + $0x5f8] sm:$0xff]
    %v3930 = vld [vmem:[%s5] sm:$0x3f]
    %v3932 = vlaneseq
    %v3933 = vshrl.u32 %v3932, 7
    %v3934 = vsub.s32 0, %v3933
    %v3935 = vrot.slane %v3930, %v3934
    %v3936 = vlaneseq
    %v3937 = vshrl.u32 %v3936, 7
    %v3938 = vsub.s32 1, %v3937
    %v3939 = vrot.slane %v3930, %v3938
    %v3940 = vlaneseq
    %v3941 = vshrl.u32 %v3940, 7
    %v3942 = vsub.s32 2, %v3941
    %v3943 = vrot.slane %v3930, %v3942
    %v3944 = vlaneseq
    %v3945 = vshrl.u32 %v3944, 7
    %v3946 = vsub.s32 3, %v3945
    %v3947 = vrot.slane %v3930, %v3946
    %v3948 = vlaneseq
    %v3949 = vshrl.u32 %v3948, 7
    %v3950 = vsub.s32 4, %v3949
    %v3951 = vrot.slane %v3930, %v3950
    %v3952 = vlaneseq
    %v3953 = vshrl.u32 %v3952, 7
    %v3954 = vsub.s32 5, %v3953
    %v3955 = vrot.slane %v3930, %v3954
    %3962 = vmatprep.subr.mxu0 %v3739
    %3963 = vmatpush1.msra.mxu0 %v3738
    %3964 = vmatprep.subr.mxu0 %v3745
    %3965 = vmatpush1.msra.mxu0 %v3744
    %3966 = vmatprep.subr.mxu0 %v3751
    %3967 = vmatpush1.msra.mxu0 %v3750
    %3968 = vmatprep.subr.mxu0 %v3757
    %3969 = vmatpush1.msra.mxu0 %v3756
    %3970 = vmatprep.subr.mxu0 %v3763
    %3971 = vmatpush1.msra.mxu0 %v3762
    %3972 = vmatprep.subr.mxu0 %v3769
    %3973 = vmatpush1.msra.mxu0 %v3768
    %3974 = vmatprep.subr.mxu0 %v3775
    %3975 = vmatpush1.msra.mxu0 %v3774
    %3976 = vmatprep.subr.mxu0 %v3781
    %3977 = vmatpush1.msra.mxu0 %v3780
    %3978 = vmatprep.subr.mxu0 %v3787
    %3979 = vmatpush1.msra.mxu0 %v3786
    %3980 = vmatprep.subr.mxu0 %v3793
    %3981 = vmatpush1.msra.mxu0 %v3792
    %3982 = vmatprep.subr.mxu0 %v3799
    %3983 = vmatpush1.msra.mxu0 %v3798
    %3984 = vmatprep.subr.mxu0 %v3805
    %3985 = vmatpush1.msra.mxu0 %v3804
    %3986 = vmatprep.subr.mxu0 %v3811
    %3987 = vmatpush1.msra.mxu0 %v3810
    %3988 = vmatprep.subr.mxu0 %v3817
    %3989 = vmatpush1.msra.mxu0 %v3816
    %3990 = vmatprep.subr.mxu0 %v3823
    %3991 = vmatpush1.msra.mxu0 %v3822
    %3992 = vmatprep.subr.mxu0 %v3829
    %3993 = vmatpush1.msra.mxu0 %v3828
    %3994 = vmatprep.subr.mxu0 %v3835
    %3995 = vmatpush1.msra.mxu0 %v3834
    %3996 = vmatprep.subr.mxu0 %v3841
    %3997 = vmatpush1.msra.mxu0 %v3840
    %3998 = vmatprep.subr.mxu0 %v3847
    %3999 = vmatpush1.msra.mxu0 %v3846
    %4000 = vmatprep.subr.mxu0 %v3853
    %4001 = vmatpush1.msra.mxu0 %v3852
    %4002 = vmatprep.subr.mxu0 %v3859
    %4003 = vmatpush1.msra.mxu0 %v3858
    %4004 = vmatprep.subr.mxu0 %v3865
    %4005 = vmatpush1.msra.mxu0 %v3864
    %4006 = vmatprep.subr.mxu0 %v3871
    %4007 = vmatpush1.msra.mxu0 %v3870
    %4008 = vmatprep.subr.mxu0 %v3877
    %4009 = vmatpush1.msra.mxu0 %v3876
    %4010 = vmatprep.subr.mxu0 %v3883
    %4011 = vmatpush1.msra.mxu0 %v3882
    %4012 = vmatprep.subr.mxu0 %v3889
    %4013 = vmatpush1.msra.mxu0 %v3888
    %4014 = vmatprep.subr.mxu0 %v3895
    %4015 = vmatpush1.msra.mxu0 %v3894
    %4016 = vmatprep.subr.mxu0 %v3901
    %4017 = vmatpush1.msra.mxu0 %v3900
    %4018 = vmatprep.subr.mxu0 %v3907
    %4019 = vmatpush1.msra.mxu0 %v3906
    %4020 = vmatprep.subr.mxu0 %v3913
    %4021 = vmatpush1.msra.mxu0 %v3912
    %4022 = vmatprep.subr.mxu0 %v3919
    %4023 = vmatpush1.msra.mxu0 %v3918
    %4024 = vmatprep.subr.mxu0 %v3925
    %4025 = vmatpush1.msra.mxu0 %v3924
    %4026 = vmatprep.mubr.f32.mxu0 %v3735
    %4027 = vmatmul.mubr.f32.gmra.mrb[0].mxu0 %v3734
    %v4028 = vpop.f32.mrb[0].mxu0
    %v4029 = vadd.f32 %v3935, %v4028
    %v4030 = vpop.f32.mrb[0].mxu0
    %v4031 = vadd.f32 %v3939, %v4030
    %4032 = vmatprep.mubr.f32.mxu0 %v3737
    %4033 = vmatmul.mubr.f32.gmra.mrb[0].mxu0 %v3736
    %v4034 = vpop.f32.mrb[0].mxu0
    %v4035 = vadd.f32 %v3935, %v4034
    %v4036 = vpop.f32.mrb[0].mxu0
    %v4037 = vadd.f32 %v3939, %v4036
    %4038 = vdwg.mxu0
    %4039 = vmatprep.subr.mxu0 %v3741
    %4040 = vmatpush1.msra.mxu0 %v3740
    %4041 = vmatprep.subr.mxu0 %v3747
    %4042 = vmatpush1.msra.mxu0 %v3746
    %4043 = vmatprep.subr.mxu0 %v3753
    %4044 = vmatpush1.msra.mxu0 %v3752
    %4045 = vmatprep.subr.mxu0 %v3759
    %4046 = vmatpush1.msra.mxu0 %v3758
    %4047 = vmatprep.subr.mxu0 %v3765
    %4048 = vmatpush1.msra.mxu0 %v3764
    %4049 = vmatprep.subr.mxu0 %v3771
    %4050 = vmatpush1.msra.mxu0 %v3770
    %4051 = vmatprep.subr.mxu0 %v3777
    %4052 = vmatpush1.msra.mxu0 %v3776
    %4053 = vmatprep.subr.mxu0 %v3783
    %4054 = vmatpush1.msra.mxu0 %v3782
    %4055 = vmatprep.subr.mxu0 %v3789
    %4056 = vmatpush1.msra.mxu0 %v3788
    %4057 = vmatprep.subr.mxu0 %v3795
    %4058 = vmatpush1.msra.mxu0 %v3794
    %4059 = vmatprep.subr.mxu0 %v3801
    %4060 = vmatpush1.msra.mxu0 %v3800
    %4061 = vmatprep.subr.mxu0 %v3807
    %4062 = vmatpush1.msra.mxu0 %v3806
    %4063 = vmatprep.subr.mxu0 %v3813
    %4064 = vmatpush1.msra.mxu0 %v3812
    %4065 = vmatprep.subr.mxu0 %v3819
    %4066 = vmatpush1.msra.mxu0 %v3818
    %4067 = vmatprep.subr.mxu0 %v3825
    %4068 = vmatpush1.msra.mxu0 %v3824
    %4069 = vmatprep.subr.mxu0 %v3831
    %4070 = vmatpush1.msra.mxu0 %v3830
    %4071 = vmatprep.subr.mxu0 %v3837
    %4072 = vmatpush1.msra.mxu0 %v3836
    %4073 = vmatprep.subr.mxu0 %v3843
    %4074 = vmatpush1.msra.mxu0 %v3842
    %4075 = vmatprep.subr.mxu0 %v3849
    %4076 = vmatpush1.msra.mxu0 %v3848
    %4077 = vmatprep.subr.mxu0 %v3855
    %4078 = vmatpush1.msra.mxu0 %v3854
    %4079 = vmatprep.subr.mxu0 %v3861
    %4080 = vmatpush1.msra.mxu0 %v3860
    %4081 = vmatprep.subr.mxu0 %v3867
    %4082 = vmatpush1.msra.mxu0 %v3866
    %4083 = vmatprep.subr.mxu0 %v3873
    %4084 = vmatpush1.msra.mxu0 %v3872
    %4085 = vmatprep.subr.mxu0 %v3879
    %4086 = vmatpush1.msra.mxu0 %v3878
    %4087 = vmatprep.subr.mxu0 %v3885
    %4088 = vmatpush1.msra.mxu0 %v3884
    %4089 = vmatprep.subr.mxu0 %v3891
    %4090 = vmatpush1.msra.mxu0 %v3890
    %4091 = vmatprep.subr.mxu0 %v3897
    %4092 = vmatpush1.msra.mxu0 %v3896
    %4093 = vmatprep.subr.mxu0 %v3903
    %4094 = vmatpush1.msra.mxu0 %v3902
    %4095 = vmatprep.subr.mxu0 %v3909
    %4096 = vmatpush1.msra.mxu0 %v3908
    %4097 = vmatprep.subr.mxu0 %v3915
    %4098 = vmatpush1.msra.mxu0 %v3914
    %4099 = vmatprep.subr.mxu0 %v3921
    %4100 = vmatpush1.msra.mxu0 %v3920
    %4101 = vmatprep.subr.mxu0 %v3927
    %4102 = vmatpush1.msra.mxu0 %v3926
    %4103 = vmatprep.mubr.f32.mxu0 %v3735
    %4104 = vmatmul.mubr.f32.gmra.mrb[0].mxu0 %v3734
    %v4105 = vpop.f32.mrb[0].mxu0
    %v4106 = vadd.f32 %v3943, %v4105
    %v4107 = vpop.f32.mrb[0].mxu0
    %v4108 = vadd.f32 %v3947, %v4107
    %4109 = vmatprep.mubr.f32.mxu0 %v3737
    %4110 = vmatmul.mubr.f32.gmra.mrb[0].mxu0 %v3736
    %v4111 = vpop.f32.mrb[0].mxu0
    %v4112 = vadd.f32 %v3943, %v4111
    %v4113 = vpop.f32.mrb[0].mxu0
    %v4114 = vadd.f32 %v3947, %v4113
    %4115 = vdwg.mxu0
    %4116 = vmatprep.subr.mxu0 %v3743
    %4117 = vmatpush1.msra.mxu0 %v3742
    %4118 = vmatprep.subr.mxu0 %v3749
    %4119 = vmatpush1.msra.mxu0 %v3748
    %4120 = vmatprep.subr.mxu0 %v3755
    %4121 = vmatpush1.msra.mxu0 %v3754
    %4122 = vmatprep.subr.mxu0 %v3761
    %4123 = vmatpush1.msra.mxu0 %v3760
    %4124 = vmatprep.subr.mxu0 %v3767
    %4125 = vmatpush1.msra.mxu0 %v3766
    %4126 = vmatprep.subr.mxu0 %v3773
    %4127 = vmatpush1.msra.mxu0 %v3772
    %4128 = vmatprep.subr.mxu0 %v3779
    %4129 = vmatpush1.msra.mxu0 %v3778
    %4130 = vmatprep.subr.mxu0 %v3785
    %4131 = vmatpush1.msra.mxu0 %v3784
    %4132 = vmatprep.subr.mxu0 %v3791
    %4133 = vmatpush1.msra.mxu0 %v3790
    %4134 = vmatprep.subr.mxu0 %v3797
    %4135 = vmatpush1.msra.mxu0 %v3796
    %4136 = vmatprep.subr.mxu0 %v3803
    %4137 = vmatpush1.msra.mxu0 %v3802
    %4138 = vmatprep.subr.mxu0 %v3809
    %4139 = vmatpush1.msra.mxu0 %v3808
    %4140 = vmatprep.subr.mxu0 %v3815
    %4141 = vmatpush1.msra.mxu0 %v3814
    %4142 = vmatprep.subr.mxu0 %v3821
    %4143 = vmatpush1.msra.mxu0 %v3820
    %4144 = vmatprep.subr.mxu0 %v3827
    %4145 = vmatpush1.msra.mxu0 %v3826
    %4146 = vmatprep.subr.mxu0 %v3833
    %4147 = vmatpush1.msra.mxu0 %v3832
    %4148 = vmatprep.subr.mxu0 %v3839
    %4149 = vmatpush1.msra.mxu0 %v3838
    %4150 = vmatprep.subr.mxu0 %v3845
    %4151 = vmatpush1.msra.mxu0 %v3844
    %4152 = vmatprep.subr.mxu0 %v3851
    %4153 = vmatpush1.msra.mxu0 %v3850
    %4154 = vmatprep.subr.mxu0 %v3857
    %4155 = vmatpush1.msra.mxu0 %v3856
    %4156 = vmatprep.subr.mxu0 %v3863
    %4157 = vmatpush1.msra.mxu0 %v3862
    %4158 = vmatprep.subr.mxu0 %v3869
    %4159 = vmatpush1.msra.mxu0 %v3868
    %4160 = vmatprep.subr.mxu0 %v3875
    %4161 = vmatpush1.msra.mxu0 %v3874
    %4162 = vmatprep.subr.mxu0 %v3881
    %4163 = vmatpush1.msra.mxu0 %v3880
    %4164 = vmatprep.subr.mxu0 %v3887
    %4165 = vmatpush1.msra.mxu0 %v3886
    %4166 = vmatprep.subr.mxu0 %v3893
    %4167 = vmatpush1.msra.mxu0 %v3892
    %4168 = vmatprep.subr.mxu0 %v3899
    %4169 = vmatpush1.msra.mxu0 %v3898
    %4170 = vmatprep.subr.mxu0 %v3905
    %4171 = vmatpush1.msra.mxu0 %v3904
    %4172 = vmatprep.subr.mxu0 %v3911
    %4173 = vmatpush1.msra.mxu0 %v3910
    %4174 = vmatprep.subr.mxu0 %v3917
    %4175 = vmatpush1.msra.mxu0 %v3916
    %4176 = vmatprep.subr.mxu0 %v3923
    %4177 = vmatpush1.msra.mxu0 %v3922
    %4178 = vmatprep.subr.mxu0 %v3929
    %4179 = vmatpush1.msra.mxu0 %v3928
    %4180 = vmatprep.mubr.f32.mxu0 %v3735
    %4181 = vmatmul.mubr.f32.gmra.mrb[0].mxu0 %v3734
    %v4182 = vpop.f32.mrb[0].mxu0
    %v4183 = vadd.f32 %v3951, %v4182
    %v4184 = vpop.f32.mrb[0].mxu0
    %v4185 = vadd.f32 %v3955, %v4184
    %4186 = vmatprep.mubr.f32.mxu0 %v3737
    %4187 = vmatmul.mubr.f32.gmra.mrb[0].mxu0 %v3736
    %v4188 = vpop.f32.mrb[0].mxu0
    %v4189 = vadd.f32 %v3951, %v4188
    %v4190 = vpop.f32.mrb[0].mxu0
    %v4191 = vadd.f32 %v3955, %v4190
    %4192 = vdwg.mxu0
    %v4193 = vxor.u32 %v4029, 2147483648
    %v4194 = vxor.u32 %v4031, 2147483648
    %v4195 = vxor.u32 %v4035, 2147483648
    %v4196 = vxor.u32 %v4037, 2147483648
    %v4197 = vmul.f32 %v4193, 1.442695
    %v4198 = vpow.pop %v4197
    %v4199 = vmul.f32 %v4194, 1.442695
    %v4200 = vpow.pop %v4199
    %v4201 = vmul.f32 %v4195, 1.442695
    %v4202 = vpow.pop %v4201
    %v4203 = vmul.f32 %v4196, 1.442695
    %v4204 = vpow.pop %v4203
    %v4205 = vadd.f32 %v4198, 1.0
    %v4206 = vadd.f32 %v4200, 1.0
    %v4207 = vadd.f32 %v4202, 1.0
    %v4208 = vadd.f32 %v4204, 1.0
    %v4209 = vrcp.pop %v4205
    %v4210 = vmul.f32 1.0, %v4209
    %v4211 = vrcp.pop %v4206
    %v4212 = vmul.f32 1.0, %v4211
    %v4213 = vrcp.pop %v4207
    %v4214 = vmul.f32 1.0, %v4213
    %v4215 = vrcp.pop %v4208
    %v4216 = vmul.f32 1.0, %v4215
    %v4217 = vtanh.pop %v4106
    %v4218 = vtanh.pop %v4108
    %v4219 = vtanh.pop %v4112
    %v4220 = vtanh.pop %v4114
    %v4221 = vxor.u32 %v4183, 2147483648
    %v4222 = vxor.u32 %v4185, 2147483648
    %v4223 = vxor.u32 %v4189, 2147483648
    %v4224 = vxor.u32 %v4191, 2147483648
    %v4225 = vmul.f32 %v4221, 1.442695
    %v4226 = vpow.pop %v4225
    %v4227 = vmul.f32 %v4222, 1.442695
    %v4228 = vpow.pop %v4227
    %v4229 = vmul.f32 %v4223, 1.442695
    %v4230 = vpow.pop %v4229
    %v4231 = vmul.f32 %v4224, 1.442695
    %v4232 = vpow.pop %v4231
    %v4233 = vadd.f32 %v4226, 1.0
    %v4234 = vadd.f32 %v4228, 1.0
    %v4235 = vadd.f32 %v4230, 1.0
    %v4236 = vadd.f32 %v4232, 1.0
    %v4237 = vrcp.pop %v4233
    %v4238 = vmul.f32 1.0, %v4237
    %v4239 = vrcp.pop %v4234
    %v4240 = vmul.f32 1.0, %v4239
    %v4241 = vrcp.pop %v4235
    %v4242 = vmul.f32 1.0, %v4241
    %v4243 = vrcp.pop %v4236
    %v4244 = vmul.f32 1.0, %v4243
    %v4245 = vmul.f32 %v4210, %v4217
    %v4246 = vmul.f32 %v4212, %v4218
    %v4247 = vmul.f32 %v4214, %v4219
    %v4248 = vmul.f32 %v4216, %v4220
    %v4249 = vtanh.pop %v4245
    %v4250 = vtanh.pop %v4246
    %v4251 = vtanh.pop %v4247
    %v4252 = vtanh.pop %v4248
    %v4253 = vmul.f32 %v4238, %v4249
    %v4254 = vmul.f32 %v4240, %v4250
    %v4255 = vmul.f32 %v4242, %v4251
    %v4256 = vmul.f32 %v4244, %v4252
    %v4257 = vld [vmem:[%s6] sm:$0xff]
    %v4258 = vld [vmem:[%s6 + $0x8] sm:$0xff]
    %v4259 = vld [vmem:[%s6 + $0x10] sm:$0xff]
    %v4260 = vld [vmem:[%s6 + $0x18] sm:$0xff]
    %v4261 = vld [vmem:[%s6 + $0x20] sm:$0xff]
    %v4262 = vld [vmem:[%s6 + $0x28] sm:$0xff]
    %v4263 = vld [vmem:[%s6 + $0x30] sm:$0xff]
    %v4264 = vld [vmem:[%s6 + $0x38] sm:$0xff]
    %v4265 = vld [vmem:[%s6 + $0x40] sm:$0xff]
    %v4266 = vld [vmem:[%s6 + $0x48] sm:$0xff]
    %v4267 = vld [vmem:[%s6 + $0x50] sm:$0xff]
    %v4268 = vld [vmem:[%s6 + $0x58] sm:$0xff]
    %v4269 = vld [vmem:[%s6 + $0x60] sm:$0xff]
    %v4270 = vld [vmem:[%s6 + $0x68] sm:$0xff]
    %v4271 = vld [vmem:[%s6 + $0x70] sm:$0xff]
    %v4272 = vld [vmem:[%s6 + $0x78] sm:$0xff]
    %v4273 = vld [vmem:[%s6 + $0x80] sm:$0xff]
    %v4274 = vld [vmem:[%s6 + $0x88] sm:$0xff]
    %v4275 = vld [vmem:[%s6 + $0x90] sm:$0xff]
    %v4276 = vld [vmem:[%s6 + $0x98] sm:$0xff]
    %v4277 = vld [vmem:[%s6 + $0xa0] sm:$0xff]
    %v4278 = vld [vmem:[%s6 + $0xa8] sm:$0xff]
    %v4279 = vld [vmem:[%s6 + $0xb0] sm:$0xff]
    %v4280 = vld [vmem:[%s6 + $0xb8] sm:$0xff]
    %v4281 = vld [vmem:[%s6 + $0xc0] sm:$0xff]
    %v4282 = vld [vmem:[%s6 + $0xc8] sm:$0xff]
    %v4283 = vld [vmem:[%s6 + $0xd0] sm:$0xff]
    %v4284 = vld [vmem:[%s6 + $0xd8] sm:$0xff]
    %v4285 = vld [vmem:[%s6 + $0xe0] sm:$0xff]
    %v4286 = vld [vmem:[%s6 + $0xe8] sm:$0xff]
    %v4287 = vld [vmem:[%s6 + $0xf0] sm:$0xff]
    %v4288 = vld [vmem:[%s6 + $0xf8] sm:$0xff]
    %v4289 = vld [vmem:[%s7] sm:$0x1]
    %v4291 = vlaneseq
    %v4292 = vshrl.u32 %v4291, 7
    %v4293 = vsub.s32 0, %v4292
    %v4294 = vrot.slane %v4289, %v4293
    %4296 = vmatprep.subr.mxu0 0.0
    %4297 = vmatpush1.msra.mxu0 %v4257
    %4298 = vmatprep.subr.mxu0 0.0
    %4299 = vmatpush1.msra.mxu0 %v4258
    %4300 = vmatprep.subr.mxu0 0.0
    %4301 = vmatpush1.msra.mxu0 %v4259
    %4302 = vmatprep.subr.mxu0 0.0
    %4303 = vmatpush1.msra.mxu0 %v4260
    %4304 = vmatprep.subr.mxu0 0.0
    %4305 = vmatpush1.msra.mxu0 %v4261
    %4306 = vmatprep.subr.mxu0 0.0
    %4307 = vmatpush1.msra.mxu0 %v4262
    %4308 = vmatprep.subr.mxu0 0.0
    %4309 = vmatpush1.msra.mxu0 %v4263
    %4310 = vmatprep.subr.mxu0 0.0
    %4311 = vmatpush1.msra.mxu0 %v4264
    %4312 = vmatprep.subr.mxu0 0.0
    %4313 = vmatpush1.msra.mxu0 %v4265
    %4314 = vmatprep.subr.mxu0 0.0
    %4315 = vmatpush1.msra.mxu0 %v4266
    %4316 = vmatprep.subr.mxu0 0.0
    %4317 = vmatpush1.msra.mxu0 %v4267
    %4318 = vmatprep.subr.mxu0 0.0
    %4319 = vmatpush1.msra.mxu0 %v4268
    %4320 = vmatprep.subr.mxu0 0.0
    %4321 = vmatpush1.msra.mxu0 %v4269
    %4322 = vmatprep.subr.mxu0 0.0
    %4323 = vmatpush1.msra.mxu0 %v4270
    %4324 = vmatprep.subr.mxu0 0.0
    %4325 = vmatpush1.msra.mxu0 %v4271
    %4326 = vmatprep.subr.mxu0 0.0
    %4327 = vmatpush1.msra.mxu0 %v4272
    %4328 = vmatprep.subr.mxu0 0.0
    %4329 = vmatpush1.msra.mxu0 %v4273
    %4330 = vmatprep.subr.mxu0 0.0
    %4331 = vmatpush1.msra.mxu0 %v4274
    %4332 = vmatprep.subr.mxu0 0.0
    %4333 = vmatpush1.msra.mxu0 %v4275
    %4334 = vmatprep.subr.mxu0 0.0
    %4335 = vmatpush1.msra.mxu0 %v4276
    %4336 = vmatprep.subr.mxu0 0.0
    %4337 = vmatpush1.msra.mxu0 %v4277
    %4338 = vmatprep.subr.mxu0 0.0
    %4339 = vmatpush1.msra.mxu0 %v4278
    %4340 = vmatprep.subr.mxu0 0.0
    %4341 = vmatpush1.msra.mxu0 %v4279
    %4342 = vmatprep.subr.mxu0 0.0
    %4343 = vmatpush1.msra.mxu0 %v4280
    %4344 = vmatprep.subr.mxu0 0.0
    %4345 = vmatpush1.msra.mxu0 %v4281
    %4346 = vmatprep.subr.mxu0 0.0
    %4347 = vmatpush1.msra.mxu0 %v4282
    %4348 = vmatprep.subr.mxu0 0.0
    %4349 = vmatpush1.msra.mxu0 %v4283
    %4350 = vmatprep.subr.mxu0 0.0
    %4351 = vmatpush1.msra.mxu0 %v4284
    %4352 = vmatprep.subr.mxu0 0.0
    %4353 = vmatpush1.msra.mxu0 %v4285
    %4354 = vmatprep.subr.mxu0 0.0
    %4355 = vmatpush1.msra.mxu0 %v4286
    %4356 = vmatprep.subr.mxu0 0.0
    %4357 = vmatpush1.msra.mxu0 %v4287
    %4358 = vmatprep.subr.mxu0 0.0
    %4359 = vmatpush1.msra.mxu0 %v4288
    %4360 = vmatprep.mubr.f32.mxu0 %v4254
    %4361 = vmatmul.mubr.f32.gmra.mrb[0].mxu0 %v4253
    %v4362 = vpop.f32.mrb[0].mxu0
    %v4363 = vadd.f32 %v4294, %v4362
    %v4364 = vpop.f32.mrb[0].mxu0
    %4365 = vmatprep.mubr.f32.mxu0 %v4256
    %4366 = vmatmul.mubr.f32.gmra.mrb[0].mxu0 %v4255
    %v4367 = vpop.f32.mrb[0].mxu0
    %v4368 = vadd.f32 %v4294, %v4367
    %v4369 = vpop.f32.mrb[0].mxu0
    %4370 = vdwg.mxu0
    %v4371 = vld [vmem:[%s8] sm:$0x1f]
    %v4372 = vlaneseq
    %v4373 = vshrl.u32 %v4372, 7
    %v4374 = vlaneseq
    %v4375 = vand.u32 %v4374, 127
    %v4376 = vld [vmem:[%s9] sm:$0x1]
    %v4378 = vlaneseq
    %v4379 = vshrl.u32 %v4378, 7
    %v4380 = vsub.s32 0, %v4379
    %v4381 = vrot.slane %v4376, %v4380
    %v4383 = vadd.f32 %v4381, %v4363
    %v4384 = vlaneseq
    %v4385 = vshrl.u32 %v4384, 7
    %v4386 = vsub.s32 0, %v4385
    %v4387 = vrot.slane %v4383, %v4386
    %4389 = vbcast.lane.b32.xlu0 %v4387, 256
    %v4390 = vpop.permute.xlu0 %4389
    %v4391 = vlaneseq
    %v4392 = vshrl.u32 %v4391, 7
    %v4393 = vsub.s32 1, %v4392
    %v4394 = vrot.slane %v4383, %v4393
    %4396 = vbcast.lane.b32.xlu0 %v4394, 256
    %v4397 = vpop.permute.xlu0 %4396
    %v4398 = vadd.f32 %v4390, %v4371
    %v4399 = vadd.f32 %v4397, %v4371
    %vm4400 = vcmask 36864
    %v4401 = vsel %vm4400, %v4398, -inf
    %v4402 = vrot.slane %v4401, 4
    %v4403 = vmax.f32 %v4401, %v4402
    %v4404 = vrot.slane %v4403, 2
    %v4405 = vmax.f32 %v4403, %v4404
    %v4406 = vrot.slane %v4405, 1
    %v4407 = vmax.f32 %v4405, %v4406
    %v4408 = vsel %vm4400, %v4399, -inf
    %v4409 = vrot.slane %v4408, 4
    %v4410 = vmax.f32 %v4408, %v4409
    %v4411 = vrot.slane %v4410, 2
    %v4412 = vmax.f32 %v4410, %v4411
    %v4413 = vrot.slane %v4412, 1
    %v4414 = vmax.f32 %v4412, %v4413
    %vm4415 = vcmp.eq.f32.partialorder %v4398, %v4407
    %vm4416 = vcmp.eq.f32.partialorder %v4399, %v4414
    %v4417 = vsel %vm4415, %v4373, 5
    %v4418 = vsel %vm4416, %v4373, 5
    %v4419 = vsel %vm4400, %v4417, 2147483647
    %v4420 = vrot.slane %v4419, 4
    %vm4421 = vcmp.lt.s32.totalorder %v4419, %v4420
    %v4422 = vsel %vm4421, %v4419, %v4420
    %v4423 = vrot.slane %v4422, 2
    %vm4424 = vcmp.lt.s32.totalorder %v4422, %v4423
    %v4425 = vsel %vm4424, %v4422, %v4423
    %v4426 = vrot.slane %v4425, 1
    %vm4427 = vcmp.lt.s32.totalorder %v4425, %v4426
    %v4428 = vsel %vm4427, %v4425, %v4426
    %v4429 = vsel %vm4400, %v4418, 2147483647
    %v4430 = vrot.slane %v4429, 4
    %vm4431 = vcmp.lt.s32.totalorder %v4429, %v4430
    %v4432 = vsel %vm4431, %v4429, %v4430
    %v4433 = vrot.slane %v4432, 2
    %vm4434 = vcmp.lt.s32.totalorder %v4432, %v4433
    %v4435 = vsel %vm4434, %v4432, %v4433
    %v4436 = vrot.slane %v4435, 1
    %vm4437 = vcmp.lt.s32.totalorder %v4435, %v4436
    %v4438 = vsel %vm4437, %v4435, %v4436
    %v4440 = vrot.slane %v4363, 2
    %v4441 = vrot.slane %v4363, 3
    %v4444 = vadd.f32 %v4407, %v4440
    %v4445 = vadd.f32 %v4414, %v4441
    %v4446 = vlaneseq
    %v4447 = vshrl.u32 %v4446, 7
    %v4448 = vsub.s32 0, %v4447
    %v4449 = vrot.slane %v4444, %v4448
    %4451 = vbcast.lane.b32.xlu0 %v4449, 256
    %v4452 = vpop.permute.xlu0 %4451
    %v4453 = vlaneseq
    %v4454 = vshrl.u32 %v4453, 7
    %v4455 = vsub.s32 0, %v4454
    %v4456 = vrot.slane %v4445, %v4455
    %4458 = vbcast.lane.b32.xlu0 %v4456, 256
    %v4459 = vpop.permute.xlu0 %4458
    %v4460 = vadd.f32 %v4452, %v4371
    %v4461 = vadd.f32 %v4459, %v4371
    %v4462 = vsel %vm4400, %v4460, -inf
    %v4463 = vrot.slane %v4462, 4
    %v4464 = vmax.f32 %v4462, %v4463
    %v4465 = vrot.slane %v4464, 2
    %v4466 = vmax.f32 %v4464, %v4465
    %v4467 = vrot.slane %v4466, 1
    %v4468 = vmax.f32 %v4466, %v4467
    %v4469 = vsel %vm4400, %v4461, -inf
    %v4470 = vrot.slane %v4469, 4
    %v4471 = vmax.f32 %v4469, %v4470
    %v4472 = vrot.slane %v4471, 2
    %v4473 = vmax.f32 %v4471, %v4472
    %v4474 = vrot.slane %v4473, 1
    %v4475 = vmax.f32 %v4473, %v4474
    %vm4476 = vcmp.eq.f32.partialorder %v4460, %v4468
    %vm4477 = vcmp.eq.f32.partialorder %v4461, %v4475
    %v4478 = vsel %vm4476, %v4373, 5
    %v4479 = vsel %vm4477, %v4373, 5
    %v4480 = vsel %vm4400, %v4478, 2147483647
    %v4481 = vrot.slane %v4480, 4
    %vm4482 = vcmp.lt.s32.totalorder %v4480, %v4481
    %v4483 = vsel %vm4482, %v4480, %v4481
    %v4484 = vrot.slane %v4483, 2
    %vm4485 = vcmp.lt.s32.totalorder %v4483, %v4484
    %v4486 = vsel %vm4485, %v4483, %v4484
    %v4487 = vrot.slane %v4486, 1
    %vm4488 = vcmp.lt.s32.totalorder %v4486, %v4487
    %v4489 = vsel %vm4488, %v4486, %v4487
    %v4490 = vsel %vm4400, %v4479, 2147483647
    %v4491 = vrot.slane %v4490, 4
    %vm4492 = vcmp.lt.s32.totalorder %v4490, %v4491
    %v4493 = vsel %vm4492, %v4490, %v4491
    %v4494 = vrot.slane %v4493, 2
    %vm4495 = vcmp.lt.s32.totalorder %v4493, %v4494
    %v4496 = vsel %vm4495, %v4493, %v4494
    %v4497 = vrot.slane %v4496, 1
    %vm4498 = vcmp.lt.s32.totalorder %v4496, %v4497
    %v4499 = vsel %vm4498, %v4496, %v4497
    %v4500 = vrot.slane %v4363, 4
    %v4501 = vrot.slane %v4363, 5
    %v4504 = vadd.f32 %v4468, %v4500
    %v4505 = vadd.f32 %v4475, %v4501
    %v4506 = vlaneseq
    %v4507 = vshrl.u32 %v4506, 7
    %v4508 = vsub.s32 0, %v4507
    %v4509 = vrot.slane %v4504, %v4508
    %4511 = vbcast.lane.b32.xlu0 %v4509, 256
    %v4512 = vpop.permute.xlu0 %4511
    %v4513 = vlaneseq
    %v4514 = vshrl.u32 %v4513, 7
    %v4515 = vsub.s32 0, %v4514
    %v4516 = vrot.slane %v4505, %v4515
    %4518 = vbcast.lane.b32.xlu0 %v4516, 256
    %v4519 = vpop.permute.xlu0 %4518
    %v4520 = vadd.f32 %v4512, %v4371
    %v4521 = vadd.f32 %v4519, %v4371
    %v4522 = vsel %vm4400, %v4520, -inf
    %v4523 = vrot.slane %v4522, 4
    %v4524 = vmax.f32 %v4522, %v4523
    %v4525 = vrot.slane %v4524, 2
    %v4526 = vmax.f32 %v4524, %v4525
    %v4527 = vrot.slane %v4526, 1
    %v4528 = vmax.f32 %v4526, %v4527
    %v4529 = vsel %vm4400, %v4521, -inf
    %v4530 = vrot.slane %v4529, 4
    %v4531 = vmax.f32 %v4529, %v4530
    %v4532 = vrot.slane %v4531, 2
    %v4533 = vmax.f32 %v4531, %v4532
    %v4534 = vrot.slane %v4533, 1
    %v4535 = vmax.f32 %v4533, %v4534
    %vm4536 = vcmp.eq.f32.partialorder %v4520, %v4528
    %vm4537 = vcmp.eq.f32.partialorder %v4521, %v4535
    %v4538 = vsel %vm4536, %v4373, 5
    %v4539 = vsel %vm4537, %v4373, 5
    %v4540 = vsel %vm4400, %v4538, 2147483647
    %v4541 = vrot.slane %v4540, 4
    %vm4542 = vcmp.lt.s32.totalorder %v4540, %v4541
    %v4543 = vsel %vm4542, %v4540, %v4541
    %v4544 = vrot.slane %v4543, 2
    %vm4545 = vcmp.lt.s32.totalorder %v4543, %v4544
    %v4546 = vsel %vm4545, %v4543, %v4544
    %v4547 = vrot.slane %v4546, 1
    %vm4548 = vcmp.lt.s32.totalorder %v4546, %v4547
    %v4549 = vsel %vm4548, %v4546, %v4547
    %v4550 = vsel %vm4400, %v4539, 2147483647
    %v4551 = vrot.slane %v4550, 4
    %vm4552 = vcmp.lt.s32.totalorder %v4550, %v4551
    %v4553 = vsel %vm4552, %v4550, %v4551
    %v4554 = vrot.slane %v4553, 2
    %vm4555 = vcmp.lt.s32.totalorder %v4553, %v4554
    %v4556 = vsel %vm4555, %v4553, %v4554
    %v4557 = vrot.slane %v4556, 1
    %vm4558 = vcmp.lt.s32.totalorder %v4556, %v4557
    %v4559 = vsel %vm4558, %v4556, %v4557
    %v4560 = vrot.slane %v4363, 6
    %v4561 = vrot.slane %v4363, 7
    %v4564 = vadd.f32 %v4528, %v4560
    %v4565 = vadd.f32 %v4535, %v4561
    %v4566 = vlaneseq
    %v4567 = vshrl.u32 %v4566, 7
    %v4568 = vsub.s32 0, %v4567
    %v4569 = vrot.slane %v4564, %v4568
    %4571 = vbcast.lane.b32.xlu0 %v4569, 256
    %v4572 = vpop.permute.xlu0 %4571
    %v4573 = vlaneseq
    %v4574 = vshrl.u32 %v4573, 7
    %v4575 = vsub.s32 0, %v4574
    %v4576 = vrot.slane %v4565, %v4575
    %4578 = vbcast.lane.b32.xlu0 %v4576, 256
    %v4579 = vpop.permute.xlu0 %4578
    %v4580 = vadd.f32 %v4572, %v4371
    %v4581 = vadd.f32 %v4579, %v4371
    %v4582 = vsel %vm4400, %v4580, -inf
    %v4583 = vrot.slane %v4582, 4
    %v4584 = vmax.f32 %v4582, %v4583
    %v4585 = vrot.slane %v4584, 2
    %v4586 = vmax.f32 %v4584, %v4585
    %v4587 = vrot.slane %v4586, 1
    %v4588 = vmax.f32 %v4586, %v4587
    %v4589 = vsel %vm4400, %v4581, -inf
    %v4590 = vrot.slane %v4589, 4
    %v4591 = vmax.f32 %v4589, %v4590
    %v4592 = vrot.slane %v4591, 2
    %v4593 = vmax.f32 %v4591, %v4592
    %v4594 = vrot.slane %v4593, 1
    %v4595 = vmax.f32 %v4593, %v4594
    %vm4596 = vcmp.eq.f32.partialorder %v4580, %v4588
    %vm4597 = vcmp.eq.f32.partialorder %v4581, %v4595
    %v4598 = vsel %vm4596, %v4373, 5
    %v4599 = vsel %vm4597, %v4373, 5
    %v4600 = vsel %vm4400, %v4598, 2147483647
    %v4601 = vrot.slane %v4600, 4
    %vm4602 = vcmp.lt.s32.totalorder %v4600, %v4601
    %v4603 = vsel %vm4602, %v4600, %v4601
    %v4604 = vrot.slane %v4603, 2
    %vm4605 = vcmp.lt.s32.totalorder %v4603, %v4604
    %v4606 = vsel %vm4605, %v4603, %v4604
    %v4607 = vrot.slane %v4606, 1
    %vm4608 = vcmp.lt.s32.totalorder %v4606, %v4607
    %v4609 = vsel %vm4608, %v4606, %v4607
    %v4610 = vsel %vm4400, %v4599, 2147483647
    %v4611 = vrot.slane %v4610, 4
    %vm4612 = vcmp.lt.s32.totalorder %v4610, %v4611
    %v4613 = vsel %vm4612, %v4610, %v4611
    %v4614 = vrot.slane %v4613, 2
    %vm4615 = vcmp.lt.s32.totalorder %v4613, %v4614
    %v4616 = vsel %vm4615, %v4613, %v4614
    %v4617 = vrot.slane %v4616, 1
    %vm4618 = vcmp.lt.s32.totalorder %v4616, %v4617
    %v4619 = vsel %vm4618, %v4616, %v4617
    %v4621 = vrot.slane %v4368, 1
    %v4624 = vadd.f32 %v4588, %v4368
    %v4625 = vadd.f32 %v4595, %v4621
    %v4626 = vlaneseq
    %v4627 = vshrl.u32 %v4626, 7
    %v4628 = vsub.s32 0, %v4627
    %v4629 = vrot.slane %v4624, %v4628
    %4631 = vbcast.lane.b32.xlu0 %v4629, 256
    %v4632 = vpop.permute.xlu0 %4631
    %v4633 = vlaneseq
    %v4634 = vshrl.u32 %v4633, 7
    %v4635 = vsub.s32 0, %v4634
    %v4636 = vrot.slane %v4625, %v4635
    %4638 = vbcast.lane.b32.xlu0 %v4636, 256
    %v4639 = vpop.permute.xlu0 %4638
    %v4640 = vadd.f32 %v4632, %v4371
    %v4641 = vadd.f32 %v4639, %v4371
    %v4642 = vsel %vm4400, %v4640, -inf
    %v4643 = vrot.slane %v4642, 4
    %v4644 = vmax.f32 %v4642, %v4643
    %v4645 = vrot.slane %v4644, 2
    %v4646 = vmax.f32 %v4644, %v4645
    %v4647 = vrot.slane %v4646, 1
    %v4648 = vmax.f32 %v4646, %v4647
    %v4649 = vsel %vm4400, %v4641, -inf
    %v4650 = vrot.slane %v4649, 4
    %v4651 = vmax.f32 %v4649, %v4650
    %v4652 = vrot.slane %v4651, 2
    %v4653 = vmax.f32 %v4651, %v4652
    %v4654 = vrot.slane %v4653, 1
    %v4655 = vmax.f32 %v4653, %v4654
    %vm4656 = vcmp.eq.f32.partialorder %v4640, %v4648
    %vm4657 = vcmp.eq.f32.partialorder %v4641, %v4655
    %v4658 = vsel %vm4656, %v4373, 5
    %v4659 = vsel %vm4657, %v4373, 5
    %v4660 = vsel %vm4400, %v4658, 2147483647
    %v4661 = vrot.slane %v4660, 4
    %vm4662 = vcmp.lt.s32.totalorder %v4660, %v4661
    %v4663 = vsel %vm4662, %v4660, %v4661
    %v4664 = vrot.slane %v4663, 2
    %vm4665 = vcmp.lt.s32.totalorder %v4663, %v4664
    %v4666 = vsel %vm4665, %v4663, %v4664
    %v4667 = vrot.slane %v4666, 1
    %vm4668 = vcmp.lt.s32.totalorder %v4666, %v4667
    %v4669 = vsel %vm4668, %v4666, %v4667
    %v4670 = vsel %vm4400, %v4659, 2147483647
    %v4671 = vrot.slane %v4670, 4
    %vm4672 = vcmp.lt.s32.totalorder %v4670, %v4671
    %v4673 = vsel %vm4672, %v4670, %v4671
    %v4674 = vrot.slane %v4673, 2
    %vm4675 = vcmp.lt.s32.totalorder %v4673, %v4674
    %v4676 = vsel %vm4675, %v4673, %v4674
    %v4677 = vrot.slane %v4676, 1
    %vm4678 = vcmp.lt.s32.totalorder %v4676, %v4677
    %v4679 = vsel %vm4678, %v4676, %v4677
    %v4680 = vrot.slane %v4368, 2
    %v4681 = vrot.slane %v4368, 3
    %v4684 = vadd.f32 %v4648, %v4680
    %v4685 = vadd.f32 %v4655, %v4681
    %v4686 = vlaneseq
    %v4687 = vshrl.u32 %v4686, 7
    %v4688 = vsub.s32 0, %v4687
    %v4689 = vrot.slane %v4684, %v4688
    %4691 = vbcast.lane.b32.xlu0 %v4689, 256
    %v4692 = vpop.permute.xlu0 %4691
    %v4693 = vlaneseq
    %v4694 = vshrl.u32 %v4693, 7
    %v4695 = vsub.s32 0, %v4694
    %v4696 = vrot.slane %v4685, %v4695
    %4698 = vbcast.lane.b32.xlu0 %v4696, 256
    %v4699 = vpop.permute.xlu0 %4698
    %v4700 = vadd.f32 %v4692, %v4371
    %v4701 = vadd.f32 %v4699, %v4371
    %v4702 = vsel %vm4400, %v4700, -inf
    %v4703 = vrot.slane %v4702, 4
    %v4704 = vmax.f32 %v4702, %v4703
    %v4705 = vrot.slane %v4704, 2
    %v4706 = vmax.f32 %v4704, %v4705
    %v4707 = vrot.slane %v4706, 1
    %v4708 = vmax.f32 %v4706, %v4707
    %v4709 = vsel %vm4400, %v4701, -inf
    %v4710 = vrot.slane %v4709, 4
    %v4711 = vmax.f32 %v4709, %v4710
    %v4712 = vrot.slane %v4711, 2
    %v4713 = vmax.f32 %v4711, %v4712
    %v4714 = vrot.slane %v4713, 1
    %v4715 = vmax.f32 %v4713, %v4714
    %vm4716 = vcmp.eq.f32.partialorder %v4700, %v4708
    %vm4717 = vcmp.eq.f32.partialorder %v4701, %v4715
    %v4718 = vsel %vm4716, %v4373, 5
    %v4719 = vsel %vm4717, %v4373, 5
    %v4720 = vsel %vm4400, %v4718, 2147483647
    %v4721 = vrot.slane %v4720, 4
    %vm4722 = vcmp.lt.s32.totalorder %v4720, %v4721
    %v4723 = vsel %vm4722, %v4720, %v4721
    %v4724 = vrot.slane %v4723, 2
    %vm4725 = vcmp.lt.s32.totalorder %v4723, %v4724
    %v4726 = vsel %vm4725, %v4723, %v4724
    %v4727 = vrot.slane %v4726, 1
    %vm4728 = vcmp.lt.s32.totalorder %v4726, %v4727
    %v4729 = vsel %vm4728, %v4726, %v4727
    %v4730 = vsel %vm4400, %v4719, 2147483647
    %v4731 = vrot.slane %v4730, 4
    %vm4732 = vcmp.lt.s32.totalorder %v4730, %v4731
    %v4733 = vsel %vm4732, %v4730, %v4731
    %v4734 = vrot.slane %v4733, 2
    %vm4735 = vcmp.lt.s32.totalorder %v4733, %v4734
    %v4736 = vsel %vm4735, %v4733, %v4734
    %v4737 = vrot.slane %v4736, 1
    %vm4738 = vcmp.lt.s32.totalorder %v4736, %v4737
    %v4739 = vsel %vm4738, %v4736, %v4737
    %v4740 = vrot.slane %v4368, 4
    %v4741 = vrot.slane %v4368, 5
    %v4744 = vadd.f32 %v4708, %v4740
    %v4745 = vadd.f32 %v4715, %v4741
    %v4746 = vlaneseq
    %v4747 = vshrl.u32 %v4746, 7
    %v4748 = vsub.s32 0, %v4747
    %v4749 = vrot.slane %v4744, %v4748
    %4751 = vbcast.lane.b32.xlu0 %v4749, 256
    %v4752 = vpop.permute.xlu0 %4751
    %v4753 = vlaneseq
    %v4754 = vshrl.u32 %v4753, 7
    %v4755 = vsub.s32 0, %v4754
    %v4756 = vrot.slane %v4745, %v4755
    %4758 = vbcast.lane.b32.xlu0 %v4756, 256
    %v4759 = vpop.permute.xlu0 %4758
    %v4760 = vadd.f32 %v4752, %v4371
    %v4761 = vadd.f32 %v4759, %v4371
    %v4762 = vsel %vm4400, %v4760, -inf
    %v4763 = vrot.slane %v4762, 4
    %v4764 = vmax.f32 %v4762, %v4763
    %v4765 = vrot.slane %v4764, 2
    %v4766 = vmax.f32 %v4764, %v4765
    %v4767 = vrot.slane %v4766, 1
    %v4768 = vmax.f32 %v4766, %v4767
    %v4769 = vsel %vm4400, %v4761, -inf
    %v4770 = vrot.slane %v4769, 4
    %v4771 = vmax.f32 %v4769, %v4770
    %v4772 = vrot.slane %v4771, 2
    %v4773 = vmax.f32 %v4771, %v4772
    %v4774 = vrot.slane %v4773, 1
    %v4775 = vmax.f32 %v4773, %v4774
    %vm4776 = vcmp.eq.f32.partialorder %v4760, %v4768
    %vm4777 = vcmp.eq.f32.partialorder %v4761, %v4775
    %v4778 = vsel %vm4776, %v4373, 5
    %v4779 = vsel %vm4777, %v4373, 5
    %v4780 = vsel %vm4400, %v4778, 2147483647
    %v4781 = vrot.slane %v4780, 4
    %vm4782 = vcmp.lt.s32.totalorder %v4780, %v4781
    %v4783 = vsel %vm4782, %v4780, %v4781
    %v4784 = vrot.slane %v4783, 2
    %vm4785 = vcmp.lt.s32.totalorder %v4783, %v4784
    %v4786 = vsel %vm4785, %v4783, %v4784
    %v4787 = vrot.slane %v4786, 1
    %vm4788 = vcmp.lt.s32.totalorder %v4786, %v4787
    %v4789 = vsel %vm4788, %v4786, %v4787
    %v4790 = vsel %vm4400, %v4779, 2147483647
    %v4791 = vrot.slane %v4790, 4
    %vm4792 = vcmp.lt.s32.totalorder %v4790, %v4791
    %v4793 = vsel %vm4792, %v4790, %v4791
    %v4794 = vrot.slane %v4793, 2
    %vm4795 = vcmp.lt.s32.totalorder %v4793, %v4794
    %v4796 = vsel %vm4795, %v4793, %v4794
    %v4797 = vrot.slane %v4796, 1
    %vm4798 = vcmp.lt.s32.totalorder %v4796, %v4797
    %v4799 = vsel %vm4798, %v4796, %v4797
    %v4800 = vrot.slane %v4368, 6
    %v4801 = vrot.slane %v4368, 7
    %v4804 = vadd.f32 %v4768, %v4800
    %v4805 = vadd.f32 %v4775, %v4801
    %v4806 = vld [vmem:[%s10] sm:$0x1]
    %v4808 = vlaneseq
    %v4809 = vshrl.u32 %v4808, 7
    %v4810 = vsub.s32 0, %v4809
    %v4811 = vrot.slane %v4806, %v4810
    %v4813 = vadd.f32 %v4804, %v4811
    %v4814 = vadd.f32 %v4805, %v4811
    %v4817 = vrot.slane %v4814, 7
    %vm4818 = vcmask 1041409
    %v4819 = vsel %vm4818, %v4817, %v4813
    %vm4821 = vcmask 33792
    %v4822 = vsel %vm4821, %v4819, -inf
    %4823 = vmax.xlane.f32.xlu0 %v4822
    %v4824 = vpop.xlane.xlu0 %4823
    %v4826 = vrot.slane %v4824, 1
    %vm4829 = vcmp.eq.f32.partialorder %v4813, %v4824
    %vm4830 = vcmp.eq.f32.partialorder %v4814, %v4826
    %v4831 = vsel %vm4829, %v4375, 5
    %v4832 = vsel %vm4830, %v4375, 5
    %v4833 = vrot.slane %v4832, 7
    %v4834 = vsel %vm4818, %v4833, %v4831
    %v4835 = vsel %vm4821, %v4834, 2147483647
    %v4836 = vand.u32 %v4835, 65535
    %v4837 = vshra.s32 %v4835, 16
    %v4838 = vcvt.s32.f32 %v4836
    %v4839 = vcvt.s32.f32 %v4837
    %4840 = vmin.xlane.f32.xlu0 %v4839
    %v4841 = vpop.xlane.xlu0 %4840
    %vm4842 = vcmp.eq.f32.partialorder %v4839, %v4841
    %v4843 = vsel %vm4842, %v4838, inf
    %4844 = vmin.xlane.f32.xlu0 %v4843
    %v4845 = vpop.xlane.xlu0 %4844
    %v4846 = vcvt.f32.s32 %v4845
    %v4847 = vcvt.f32.s32 %v4841
    %v4848 = vshll.u32 %v4847, 16
    %v4849 = vadd.s32 %v4848, %v4846
    %vm4850 = vcmp.eq.s32.totalorder %v4375, 7
    %v4851 = vsel %vm4850, %v4849, 0
    %vm4852 = vcmp.eq.s32.totalorder %v4375, %v4849
    %v4853 = vsel %vm4818, %v4799, %v4789
    %v4854 = vsel %vm4852, %v4853, 0
    %v4855 = vsel %vm4821, %v4854, 0
    %v4856 = vand.u32 %v4855, 65535
    %v4857 = vshrl.u32 %v4855, 16
    %v4858 = vcvt.s32.f32 %v4856
    %v4859 = vcvt.s32.f32 %v4857
    %4860 = vadd.xlane.f32.xlu0 %v4858
    %v4861 = vpop.xlane.xlu0 %4860
    %4862 = vadd.xlane.f32.xlu0 %v4859
    %v4863 = vpop.xlane.xlu0 %4862
    %v4864 = vcvt.f32.s32 %v4861
    %v4865 = vcvt.f32.s32 %v4863
    %v4866 = vshll.u32 %v4865, 16
    %v4867 = vadd.s32 %v4866, %v4864
    %vm4868 = vcmp.eq.s32.totalorder %v4375, 6
    %v4869 = vsel %vm4868, %v4867, %v4851
    %vm4870 = vcmp.eq.s32.totalorder %v4375, %v4867
    %v4871 = vsel %vm4818, %v4739, %v4729
    %v4872 = vsel %vm4870, %v4871, 0
    %v4873 = vsel %vm4821, %v4872, 0
    %v4874 = vand.u32 %v4873, 65535
    %v4875 = vshrl.u32 %v4873, 16
    %v4876 = vcvt.s32.f32 %v4874
    %v4877 = vcvt.s32.f32 %v4875
    %4878 = vadd.xlane.f32.xlu0 %v4876
    %v4879 = vpop.xlane.xlu0 %4878
    %4880 = vadd.xlane.f32.xlu0 %v4877
    %v4881 = vpop.xlane.xlu0 %4880
    %v4882 = vcvt.f32.s32 %v4879
    %v4883 = vcvt.f32.s32 %v4881
    %v4884 = vshll.u32 %v4883, 16
    %v4885 = vadd.s32 %v4884, %v4882
    %vm4886 = vcmp.eq.s32.totalorder %v4375, 5
    %v4887 = vsel %vm4886, %v4885, %v4869
    %vm4888 = vcmp.eq.s32.totalorder %v4375, %v4885
    %v4889 = vsel %vm4818, %v4679, %v4669
    %v4890 = vsel %vm4888, %v4889, 0
    %v4891 = vsel %vm4821, %v4890, 0
    %v4892 = vand.u32 %v4891, 65535
    %v4893 = vshrl.u32 %v4891, 16
    %v4894 = vcvt.s32.f32 %v4892
    %v4895 = vcvt.s32.f32 %v4893
    %4896 = vadd.xlane.f32.xlu0 %v4894
    %v4897 = vpop.xlane.xlu0 %4896
    %4898 = vadd.xlane.f32.xlu0 %v4895
    %v4899 = vpop.xlane.xlu0 %4898
    %v4900 = vcvt.f32.s32 %v4897
    %v4901 = vcvt.f32.s32 %v4899
    %v4902 = vshll.u32 %v4901, 16
    %v4903 = vadd.s32 %v4902, %v4900
    %vm4904 = vcmp.eq.s32.totalorder %v4375, 4
    %v4905 = vsel %vm4904, %v4903, %v4887
    %vm4906 = vcmp.eq.s32.totalorder %v4375, %v4903
    %v4907 = vsel %vm4818, %v4619, %v4609
    %v4908 = vsel %vm4906, %v4907, 0
    %v4909 = vsel %vm4821, %v4908, 0
    %v4910 = vand.u32 %v4909, 65535
    %v4911 = vshrl.u32 %v4909, 16
    %v4912 = vcvt.s32.f32 %v4910
    %v4913 = vcvt.s32.f32 %v4911
    %4914 = vadd.xlane.f32.xlu0 %v4912
    %v4915 = vpop.xlane.xlu0 %4914
    %4916 = vadd.xlane.f32.xlu0 %v4913
    %v4917 = vpop.xlane.xlu0 %4916
    %v4918 = vcvt.f32.s32 %v4915
    %v4919 = vcvt.f32.s32 %v4917
    %v4920 = vshll.u32 %v4919, 16
    %v4921 = vadd.s32 %v4920, %v4918
    %vm4922 = vcmp.eq.s32.totalorder %v4375, 3
    %v4923 = vsel %vm4922, %v4921, %v4905
    %vm4924 = vcmp.eq.s32.totalorder %v4375, %v4921
    %v4925 = vsel %vm4818, %v4559, %v4549
    %v4926 = vsel %vm4924, %v4925, 0
    %v4927 = vsel %vm4821, %v4926, 0
    %v4928 = vand.u32 %v4927, 65535
    %v4929 = vshrl.u32 %v4927, 16
    %v4930 = vcvt.s32.f32 %v4928
    %v4931 = vcvt.s32.f32 %v4929
    %4932 = vadd.xlane.f32.xlu0 %v4930
    %v4933 = vpop.xlane.xlu0 %4932
    %4934 = vadd.xlane.f32.xlu0 %v4931
    %v4935 = vpop.xlane.xlu0 %4934
    %v4936 = vcvt.f32.s32 %v4933
    %v4937 = vcvt.f32.s32 %v4935
    %v4938 = vshll.u32 %v4937, 16
    %v4939 = vadd.s32 %v4938, %v4936
    %vm4940 = vcmp.eq.s32.totalorder %v4375, 2
    %v4941 = vsel %vm4940, %v4939, %v4923
    %vm4942 = vcmp.eq.s32.totalorder %v4375, %v4939
    %v4943 = vsel %vm4818, %v4499, %v4489
    %v4944 = vsel %vm4942, %v4943, 0
    %v4945 = vsel %vm4821, %v4944, 0
    %v4946 = vand.u32 %v4945, 65535
    %v4947 = vshrl.u32 %v4945, 16
    %v4948 = vcvt.s32.f32 %v4946
    %v4949 = vcvt.s32.f32 %v4947
    %4950 = vadd.xlane.f32.xlu0 %v4948
    %v4951 = vpop.xlane.xlu0 %4950
    %4952 = vadd.xlane.f32.xlu0 %v4949
    %v4953 = vpop.xlane.xlu0 %4952
    %v4954 = vcvt.f32.s32 %v4951
    %v4955 = vcvt.f32.s32 %v4953
    %v4956 = vshll.u32 %v4955, 16
    %v4957 = vadd.s32 %v4956, %v4954
    %vm4958 = vcmp.eq.s32.totalorder %v4375, 1
    %v4959 = vsel %vm4958, %v4957, %v4941
    %vm4960 = vcmp.eq.s32.totalorder %v4375, %v4957
    %v4961 = vsel %vm4818, %v4438, %v4428
    %v4962 = vsel %vm4960, %v4961, 0
    %v4963 = vsel %vm4821, %v4962, 0
    %v4964 = vand.u32 %v4963, 65535
    %v4965 = vshrl.u32 %v4963, 16
    %v4966 = vcvt.s32.f32 %v4964
    %v4967 = vcvt.s32.f32 %v4965
    %4968 = vadd.xlane.f32.xlu0 %v4966
    %v4969 = vpop.xlane.xlu0 %4968
    %4970 = vadd.xlane.f32.xlu0 %v4967
    %v4971 = vpop.xlane.xlu0 %4970
    %v4972 = vcvt.f32.s32 %v4969
    %v4973 = vcvt.f32.s32 %v4971
    %v4974 = vshll.u32 %v4973, 16
    %v4975 = vadd.s32 %v4974, %v4972
    %vm4976 = vcmp.eq.s32.totalorder %v4375, 0
    %v4977 = vsel %vm4976, %v4975, %v4959
    %vm4978 = vcmask 58368
    %4979 = vst.msk [vmem:[#allocation8] sm:$0x3] %vm4978, %v4977
    // Predicated region
    $region54: #{ner_forward.1} parent=1 // pred_check
      _
    $region55: #{ner_forward.1} parent=1 // pred_check_branch
      %4981 = sbr.rel (0) target = $region57
    $region56: #{ner_forward.1} parent=1 // pred_region
      %s4983 = ssub.s32 32, 32
      %4984 = vsyncadd [#allocation5], %s4983
      %s4986 = sshll.u32 [#allocation8], 4
      %s4987 = int_to_ptr.vmem [resolvable:$true] %s4986
      %4989 = dma.vmem_to_hbm [thread:$0]  %s4987, 32, %s11, [#allocation5]
    $region57: #{ner_forward.1} parent=1 // pred_fallthru
      _
    // Predicated region
    $region58: #{ner_forward.1} parent=1 // pred_check
      _
    $region59: #{ner_forward.1} parent=1 // pred_check_branch
      %4991 = sbr.rel (0) target = $region61
    $region60: #{ner_forward.1} parent=1 // pred_region
      %4992 = dma.done [#allocation5], 32
    $region61: #{ner_forward.1} parent=1 // pred_fallthru
      _
    %4993 = vsyncpa [#allocation4], 1
    %4994 = vsyncpa [#allocation7], 1
    %4995 = vsyncpa [#allocation5], 1

</llo_original>
